<compile_context>
chip_gen: v7x
topology: tpu7x:2x2x1
jax: 0.10.0
libtpu: 0.0.40
codegen_flags: <defaults>
</compile_context>

<pallas_src>
import jax
import jax.numpy as jnp
from jax.experimental import pallas as pl
from jax.experimental.pallas import tpu as pltpu


def _make_attention_kernel(S, r):
    """Kernel specialized to S stacked inputs and lane-packing factor r."""

    def kernel(b_ref, wred_ref, wbc_ref, *refs):
        # b_ref: (1,) in SMEM; wred_ref: (Cp, r) block-diag Linear weights;
        # wbc_ref: (r, Cp) block-diag ones (segment broadcast);
        # refs[:S]: S x (TN, Cp) inputs; refs[S]: (TN, Cp) output.
        x_refs = refs[:S]
        o_ref = refs[S]

        b = b_ref[0].astype(jnp.float32)           # scalar
        wred = wred_ref[...]                       # (Cp, r) f32
        wbc = wbc_ref[...]                         # (r, Cp) f32 (unused if r == 1)

        def score(xs):
            # (TN, Cp) -> (TN, r): per-row Linear(C->1) via block-diag matmul (MXU).
            return jnp.dot(xs, wred, preferred_element_type=jnp.float32) + b

        def bcast(v):
            # (TN, r) -> per-segment lane broadcast to (TN, Cp).
            if r == 1:
                return v                           # plain lane broadcast via jnp rules
            return jnp.dot(v, wbc, preferred_element_type=jnp.float32)

        # ---- one-pass online softmax over the S stacked inputs ----
        # Each input is read & cast exactly once; the accumulator stays
        # unnormalized until a single final normalization.
        x0 = x_refs[0][...].astype(jnp.float32)    # (TN, Cp)
        m = score(x0)                              # running max              (TN, r)
        denom = jnp.ones_like(m)                   # running sum of exp       (TN, r)
        acc = x0                                   # unnormalized weighted sum (TN, Cp)
        for s in range(1, S):
            xs = x_refs[s][...].astype(jnp.float32)
            sc = score(xs)
            m_new = jnp.maximum(m, sc)
            alpha = jnp.exp(m - m_new)             # rescale factor for old terms
            p = jnp.exp(sc - m_new)
            denom = alpha * denom + p
            acc = acc * bcast(alpha) + xs * bcast(p)
            m = m_new

        # Normalize once; approx reciprocal runs on the EUP slot (~free).
        inv = pl.reciprocal(denom, approx=True)    # (TN, r)
        o_ref[...] = (acc * bcast(inv)).astype(o_ref.dtype)

    return kernel


def _sublane_multiple(dtype):
    """Row-tile granularity per dtype packing: 8 (f32) / 16 (bf16) / 32 (int8/fp8)."""
    itemsize = jnp.dtype(dtype).itemsize
    if itemsize >= 4:
        return 8
    if itemsize == 2:
        return 16
    return 32


def _choose_block_rows(n_rows, S, lane_width, in_itemsize, sub,
                       budget_bytes=16 * 1024 * 1024, max_rows=1024):
    """Pick a (packed-)row tile size.

    Accounts for double-buffered input/output blocks AND in-kernel f32
    temporaries (acc, casted input, segment broadcasts, narrow softmax state),
    caps at 1024 rows, and keeps >= 2 grid steps for mid/large N so the
    "parallel" grid axis can shard across both v7x TensorCores.
    """
    if n_rows <= sub:
        return n_rows
    per_row = (2 * (S + 1) * lane_width * max(int(in_itemsize), 1)  # pipelined blocks
               + 10 * lane_width * 4)                               # f32 temporaries
    tn = budget_bytes // per_row
    tn = max(sub, (tn // sub) * sub)
    tn = min(tn, max_rows)
    if tn >= n_rows:
        if n_rows >= 2 * sub:
            half = ((n_rows + 1) // 2 // sub) * sub
            return max(sub, half)                  # ~half -> 2 grid steps
        return n_rows
    return tn


def attention_forward(inputs, weight, bias, *, block_rows=None):
    """inputs: list of S (N, C) arrays; weight: (1, C); bias: (1,). Returns (N, C).

    block_rows (optional) is in units of *packed* rows (after folding r=128//C
    original rows into lanes).
    """
    S = len(inputs)
    N, C = inputs[0].shape
    dtype = inputs[0].dtype
    w = weight.reshape(C).astype(jnp.float32)
    b = bias.reshape(1).astype(jnp.float32)

    # --- lane packing: fold r rows into lanes so the block's last dim is 128 ---
    if C < 128 and 128 % C == 0:
        r = 128 // C
    else:
        r = 1
    Np = ((N + r - 1) // r) * r
    if Np != N:
        pad = Np - N
        inputs = [jnp.pad(x, ((0, pad), (0, 0))) for x in inputs]
    Cp = r * C
    Nr = Np // r
    xs = [x.reshape(Nr, Cp) for x in inputs]       # contiguous row-major -> free reshape

    eye = jnp.eye(r, dtype=jnp.float32)
    wred = jnp.kron(eye, w.reshape(C, 1))                   # (Cp, r) block-diag reduce
    wbc = jnp.kron(eye, jnp.ones((1, C), jnp.float32))      # (r, Cp) segment broadcast

    sub = _sublane_multiple(dtype)
    itemsize = jnp.dtype(dtype).itemsize
    if block_rows is None:
        tn = _choose_block_rows(Nr, S, Cp, itemsize, sub)
    else:
        tn = min(block_rows, Nr)
        if tn != Nr:
            tn = max(sub, (tn // sub) * sub)       # keep the (sub, 128) block rule

    grid = (pl.cdiv(Nr, tn),)
    x_spec = pl.BlockSpec((tn, Cp), lambda i: (i, 0))

    out_packed = pl.pallas_call(
        _make_attention_kernel(S, r),
        out_shape=jax.ShapeDtypeStruct((Nr, Cp), dtype),
        grid=grid,
        in_specs=[
            pl.BlockSpec(memory_space=pltpu.MemorySpace.SMEM),  # bias: scalar in SMEM
            pl.BlockSpec((Cp, r), lambda i: (0, 0)),            # resident reduce weights
            pl.BlockSpec((r, Cp), lambda i: (0, 0)),            # resident broadcast ones
        ] + [x_spec] * S,                                       # S row-tiled inputs
        out_specs=pl.BlockSpec((tn, Cp), lambda i: (i, 0)),
        compiler_params=pltpu.CompilerParams(
            dimension_semantics=("parallel",),                  # megacore on v7x
            vmem_limit_bytes=32 * 1024 * 1024,                  # explicit, safe on v5e/v6e/v7x
        ),
    )(b, wred, wbc, *xs)

    out = out_packed.reshape(Np, C)
    if Np != N:
        out = out[:N]
    return out


if __name__ == "__main__":
    key = jax.random.PRNGKey(0)
    # N not divisible by r=4 and block_rows=24 -> exercises row padding,
    # multiple grid steps (grid=(3,)) and a partial last tile.
    N, S, C = 250, 8, 32                 # batch, #stacked inputs, in_channels
    k_x, k_w, k_b = jax.random.split(key, 3)

    # The module's forward takes a *list* of (N, C) tensors.
    inputs = [
        jax.random.normal(jax.random.fold_in(k_x, s), (N, C), jnp.float32)
        for s in range(S)
    ]

    # Deterministic Linear(C, 1) init (torch default: U(-1/sqrt(C), 1/sqrt(C)))
    bound = 1.0 / (C ** 0.5)
    weight = jax.random.uniform(k_w, (1, C), jnp.float32, -bound, bound)
    bias = jax.random.uniform(k_b, (1,), jnp.float32, -bound, bound)

    out = attention_forward(inputs, weight, bias, block_rows=24)
    out = jax.block_until_ready(out)

    # Pure-JAX reference check (tolerance loosened for pl.reciprocal(approx=True))
    x = jnp.stack(inputs, axis=1)                              # (N, S, C)
    scores = x @ weight.T + bias                               # (N, S, 1)
    wts = jax.nn.softmax(scores, axis=1)
    ref = jnp.sum(x * wts, axis=1)                             # (N, C)
    assert out.shape == (N, C)
    assert jnp.allclose(out, ref, atol=5e-3, rtol=5e-3), "mismatch vs reference"

    print("KERNEL_OK")
</pallas_src>

<mosaic_0001>
module attributes {stable_mosaic.version = 11 : i64} {
  func.func @kernel(%arg0: i32, %arg1: memref<1xf32, #tpu.memory_space<smem>>, %arg2: memref<128x4xf32, #tpu.memory_space<vmem>>, %arg3: memref<4x128xf32, #tpu.memory_space<vmem>>, %arg4: memref<24x128xf32, #tpu.memory_space<vmem>>, %arg5: memref<24x128xf32, #tpu.memory_space<vmem>>, %arg6: memref<24x128xf32, #tpu.memory_space<vmem>>, %arg7: memref<24x128xf32, #tpu.memory_space<vmem>>, %arg8: memref<24x128xf32, #tpu.memory_space<vmem>>, %arg9: memref<24x128xf32, #tpu.memory_space<vmem>>, %arg10: memref<24x128xf32, #tpu.memory_space<vmem>>, %arg11: memref<24x128xf32, #tpu.memory_space<vmem>>, %arg12: memref<24x128xf32, #tpu.memory_space<vmem>>) attributes {dimension_semantics = [#tpu.dimension_semantics<parallel>], iteration_bounds = array<i64: 3>, scalar_prefetch = 0 : i64, scratch_operands = 0 : i64, tpu.core_type = #tpu.core_type<tc>, window_params = [{transform_indices = @transform_0, window_bounds = array<i64: 1>}, {pipeline_mode = #tpu.pipeline_mode<synchronous>, transform_indices = @transform_1, window_bounds = array<i64: 128, 4>}, {pipeline_mode = #tpu.pipeline_mode<synchronous>, transform_indices = @transform_2, window_bounds = array<i64: 4, 128>}, {transform_indices = @transform_3, window_bounds = array<i64: 24, 128>}, {transform_indices = @transform_4, window_bounds = array<i64: 24, 128>}, {transform_indices = @transform_5, window_bounds = array<i64: 24, 128>}, {transform_indices = @transform_6, window_bounds = array<i64: 24, 128>}, {transform_indices = @transform_7, window_bounds = array<i64: 24, 128>}, {transform_indices = @transform_8, window_bounds = array<i64: 24, 128>}, {transform_indices = @transform_9, window_bounds = array<i64: 24, 128>}, {transform_indices = @transform_10, window_bounds = array<i64: 24, 128>}, {transform_indices = @transform_11, window_bounds = array<i64: 24, 128>}]} {
    %c0 = arith.constant 0 : index
    %0 = memref.load %arg1[%c0] : memref<1xf32, #tpu.memory_space<smem>>
    %c0_0 = arith.constant 0 : index
    %c0_1 = arith.constant 0 : index
    %1 = vector.load %arg2[%c0_0, %c0_1] : memref<128x4xf32, #tpu.memory_space<vmem>>, vector<128x4xf32>
    %c0_2 = arith.constant 0 : index
    %c0_3 = arith.constant 0 : index
    %2 = vector.load %arg3[%c0_2, %c0_3] : memref<4x128xf32, #tpu.memory_space<vmem>>, vector<4x128xf32>
    %c0_4 = arith.constant 0 : index
    %c0_5 = arith.constant 0 : index
    %3 = vector.load %arg4[%c0_4, %c0_5] : memref<24x128xf32, #tpu.memory_space<vmem>>, vector<24x128xf32>
    %cst = arith.constant dense<0.000000e+00> : vector<24x4xf32>
    %4 = tpu.matmul %3, %1, %cst {dimension_numbers = #tpu.dot_dimension_numbers<[1], [0], [0], [1], [0, 0, 1, 1], [], []>} : vector<24x128xf32>, vector<128x4xf32>, vector<24x4xf32> -> vector<24x4xf32>
    %5 = vector.broadcast %0 : f32 to vector<24x4xf32>
    %6 = arith.addf %4, %5 : vector<24x4xf32>
    %cst_6 = arith.constant 1.000000e+00 : f32
    %7 = vector.broadcast %cst_6 : f32 to vector<24x4xf32>
    %c0_7 = arith.constant 0 : index
    %c0_8 = arith.constant 0 : index
    %8 = vector.load %arg5[%c0_7, %c0_8] : memref<24x128xf32, #tpu.memory_space<vmem>>, vector<24x128xf32>
    %cst_9 = arith.constant dense<0.000000e+00> : vector<24x4xf32>
    %9 = tpu.matmul %8, %1, %cst_9 {dimension_numbers = #tpu.dot_dimension_numbers<[1], [0], [0], [1], [0, 0, 1, 1], [], []>} : vector<24x128xf32>, vector<128x4xf32>, vector<24x4xf32> -> vector<24x4xf32>
    %10 = vector.broadcast %0 : f32 to vector<24x4xf32>
    %11 = arith.addf %9, %10 : vector<24x4xf32>
    %12 = arith.maximumf %6, %11 : vector<24x4xf32>
    %13 = arith.subf %6, %12 : vector<24x4xf32>
    %14 = math.exp %13 : vector<24x4xf32>
    %15 = arith.subf %11, %12 : vector<24x4xf32>
    %16 = math.exp %15 : vector<24x4xf32>
    %17 = arith.mulf %14, %7 : vector<24x4xf32>
    %18 = arith.addf %17, %16 : vector<24x4xf32>
    %cst_10 = arith.constant dense<0.000000e+00> : vector<24x128xf32>
    %19 = tpu.matmul %14, %2, %cst_10 {dimension_numbers = #tpu.dot_dimension_numbers<[1], [0], [0], [1], [0, 0, 1, 1], [], []>} : vector<24x4xf32>, vector<4x128xf32>, vector<24x128xf32> -> vector<24x128xf32>
    %20 = arith.mulf %3, %19 : vector<24x128xf32>
    %cst_11 = arith.constant dense<0.000000e+00> : vector<24x128xf32>
    %21 = tpu.matmul %16, %2, %cst_11 {dimension_numbers = #tpu.dot_dimension_numbers<[1], [0], [0], [1], [0, 0, 1, 1], [], []>} : vector<24x4xf32>, vector<4x128xf32>, vector<24x128xf32> -> vector<24x128xf32>
    %22 = arith.mulf %8, %21 : vector<24x128xf32>
    %23 = arith.addf %20, %22 : vector<24x128xf32>
    %c0_12 = arith.constant 0 : index
    %c0_13 = arith.constant 0 : index
    %24 = vector.load %arg6[%c0_12, %c0_13] : memref<24x128xf32, #tpu.memory_space<vmem>>, vector<24x128xf32>
    %cst_14 = arith.constant dense<0.000000e+00> : vector<24x4xf32>
    %25 = tpu.matmul %24, %1, %cst_14 {dimension_numbers = #tpu.dot_dimension_numbers<[1], [0], [0], [1], [0, 0, 1, 1], [], []>} : vector<24x128xf32>, vector<128x4xf32>, vector<24x4xf32> -> vector<24x4xf32>
    %26 = vector.broadcast %0 : f32 to vector<24x4xf32>
    %27 = arith.addf %25, %26 : vector<24x4xf32>
    %28 = arith.maximumf %12, %27 : vector<24x4xf32>
    %29 = arith.subf %12, %28 : vector<24x4xf32>
    %30 = math.exp %29 : vector<24x4xf32>
    %31 = arith.subf %27, %28 : vector<24x4xf32>
    %32 = math.exp %31 : vector<24x4xf32>
    %33 = arith.mulf %30, %18 : vector<24x4xf32>
    %34 = arith.addf %33, %32 : vector<24x4xf32>
    %cst_15 = arith.constant dense<0.000000e+00> : vector<24x128xf32>
    %35 = tpu.matmul %30, %2, %cst_15 {dimension_numbers = #tpu.dot_dimension_numbers<[1], [0], [0], [1], [0, 0, 1, 1], [], []>} : vector<24x4xf32>, vector<4x128xf32>, vector<24x128xf32> -> vector<24x128xf32>
    %36 = arith.mulf %23, %35 : vector<24x128xf32>
    %cst_16 = arith.constant dense<0.000000e+00> : vector<24x128xf32>
    %37 = tpu.matmul %32, %2, %cst_16 {dimension_numbers = #tpu.dot_dimension_numbers<[1], [0], [0], [1], [0, 0, 1, 1], [], []>} : vector<24x4xf32>, vector<4x128xf32>, vector<24x128xf32> -> vector<24x128xf32>
    %38 = arith.mulf %24, %37 : vector<24x128xf32>
    %39 = arith.addf %36, %38 : vector<24x128xf32>
    %c0_17 = arith.constant 0 : index
    %c0_18 = arith.constant 0 : index
    %40 = vector.load %arg7[%c0_17, %c0_18] : memref<24x128xf32, #tpu.memory_space<vmem>>, vector<24x128xf32>
    %cst_19 = arith.constant dense<0.000000e+00> : vector<24x4xf32>
    %41 = tpu.matmul %40, %1, %cst_19 {dimension_numbers = #tpu.dot_dimension_numbers<[1], [0], [0], [1], [0, 0, 1, 1], [], []>} : vector<24x128xf32>, vector<128x4xf32>, vector<24x4xf32> -> vector<24x4xf32>
    %42 = vector.broadcast %0 : f32 to vector<24x4xf32>
    %43 = arith.addf %41, %42 : vector<24x4xf32>
    %44 = arith.maximumf %28, %43 : vector<24x4xf32>
    %45 = arith.subf %28, %44 : vector<24x4xf32>
    %46 = math.exp %45 : vector<24x4xf32>
    %47 = arith.subf %43, %44 : vector<24x4xf32>
    %48 = math.exp %47 : vector<24x4xf32>
    %49 = arith.mulf %46, %34 : vector<24x4xf32>
    %50 = arith.addf %49, %48 : vector<24x4xf32>
    %cst_20 = arith.constant dense<0.000000e+00> : vector<24x128xf32>
    %51 = tpu.matmul %46, %2, %cst_20 {dimension_numbers = #tpu.dot_dimension_numbers<[1], [0], [0], [1], [0, 0, 1, 1], [], []>} : vector<24x4xf32>, vector<4x128xf32>, vector<24x128xf32> -> vector<24x128xf32>
    %52 = arith.mulf %39, %51 : vector<24x128xf32>
    %cst_21 = arith.constant dense<0.000000e+00> : vector<24x128xf32>
    %53 = tpu.matmul %48, %2, %cst_21 {dimension_numbers = #tpu.dot_dimension_numbers<[1], [0], [0], [1], [0, 0, 1, 1], [], []>} : vector<24x4xf32>, vector<4x128xf32>, vector<24x128xf32> -> vector<24x128xf32>
    %54 = arith.mulf %40, %53 : vector<24x128xf32>
    %55 = arith.addf %52, %54 : vector<24x128xf32>
    %c0_22 = arith.constant 0 : index
    %c0_23 = arith.constant 0 : index
    %56 = vector.load %arg8[%c0_22, %c0_23] : memref<24x128xf32, #tpu.memory_space<vmem>>, vector<24x128xf32>
    %cst_24 = arith.constant dense<0.000000e+00> : vector<24x4xf32>
    %57 = tpu.matmul %56, %1, %cst_24 {dimension_numbers = #tpu.dot_dimension_numbers<[1], [0], [0], [1], [0, 0, 1, 1], [], []>} : vector<24x128xf32>, vector<128x4xf32>, vector<24x4xf32> -> vector<24x4xf32>
    %58 = vector.broadcast %0 : f32 to vector<24x4xf32>
    %59 = arith.addf %57, %58 : vector<24x4xf32>
    %60 = arith.maximumf %44, %59 : vector<24x4xf32>
    %61 = arith.subf %44, %60 : vector<24x4xf32>
    %62 = math.exp %61 : vector<24x4xf32>
    %63 = arith.subf %59, %60 : vector<24x4xf32>
    %64 = math.exp %63 : vector<24x4xf32>
    %65 = arith.mulf %62, %50 : vector<24x4xf32>
    %66 = arith.addf %65, %64 : vector<24x4xf32>
    %cst_25 = arith.constant dense<0.000000e+00> : vector<24x128xf32>
    %67 = tpu.matmul %62, %2, %cst_25 {dimension_numbers = #tpu.dot_dimension_numbers<[1], [0], [0], [1], [0, 0, 1, 1], [], []>} : vector<24x4xf32>, vector<4x128xf32>, vector<24x128xf32> -> vector<24x128xf32>
    %68 = arith.mulf %55, %67 : vector<24x128xf32>
    %cst_26 = arith.constant dense<0.000000e+00> : vector<24x128xf32>
    %69 = tpu.matmul %64, %2, %cst_26 {dimension_numbers = #tpu.dot_dimension_numbers<[1], [0], [0], [1], [0, 0, 1, 1], [], []>} : vector<24x4xf32>, vector<4x128xf32>, vector<24x128xf32> -> vector<24x128xf32>
    %70 = arith.mulf %56, %69 : vector<24x128xf32>
    %71 = arith.addf %68, %70 : vector<24x128xf32>
    %c0_27 = arith.constant 0 : index
    %c0_28 = arith.constant 0 : index
    %72 = vector.load %arg9[%c0_27, %c0_28] : memref<24x128xf32, #tpu.memory_space<vmem>>, vector<24x128xf32>
    %cst_29 = arith.constant dense<0.000000e+00> : vector<24x4xf32>
    %73 = tpu.matmul %72, %1, %cst_29 {dimension_numbers = #tpu.dot_dimension_numbers<[1], [0], [0], [1], [0, 0, 1, 1], [], []>} : vector<24x128xf32>, vector<128x4xf32>, vector<24x4xf32> -> vector<24x4xf32>
    %74 = vector.broadcast %0 : f32 to vector<24x4xf32>
    %75 = arith.addf %73, %74 : vector<24x4xf32>
    %76 = arith.maximumf %60, %75 : vector<24x4xf32>
    %77 = arith.subf %60, %76 : vector<24x4xf32>
    %78 = math.exp %77 : vector<24x4xf32>
    %79 = arith.subf %75, %76 : vector<24x4xf32>
    %80 = math.exp %79 : vector<24x4xf32>
    %81 = arith.mulf %78, %66 : vector<24x4xf32>
    %82 = arith.addf %81, %80 : vector<24x4xf32>
    %cst_30 = arith.constant dense<0.000000e+00> : vector<24x128xf32>
    %83 = tpu.matmul %78, %2, %cst_30 {dimension_numbers = #tpu.dot_dimension_numbers<[1], [0], [0], [1], [0, 0, 1, 1], [], []>} : vector<24x4xf32>, vector<4x128xf32>, vector<24x128xf32> -> vector<24x128xf32>
    %84 = arith.mulf %71, %83 : vector<24x128xf32>
    %cst_31 = arith.constant dense<0.000000e+00> : vector<24x128xf32>
    %85 = tpu.matmul %80, %2, %cst_31 {dimension_numbers = #tpu.dot_dimension_numbers<[1], [0], [0], [1], [0, 0, 1, 1], [], []>} : vector<24x4xf32>, vector<4x128xf32>, vector<24x128xf32> -> vector<24x128xf32>
    %86 = arith.mulf %72, %85 : vector<24x128xf32>
    %87 = arith.addf %84, %86 : vector<24x128xf32>
    %c0_32 = arith.constant 0 : index
    %c0_33 = arith.constant 0 : index
    %88 = vector.load %arg10[%c0_32, %c0_33] : memref<24x128xf32, #tpu.memory_space<vmem>>, vector<24x128xf32>
    %cst_34 = arith.constant dense<0.000000e+00> : vector<24x4xf32>
    %89 = tpu.matmul %88, %1, %cst_34 {dimension_numbers = #tpu.dot_dimension_numbers<[1], [0], [0], [1], [0, 0, 1, 1], [], []>} : vector<24x128xf32>, vector<128x4xf32>, vector<24x4xf32> -> vector<24x4xf32>
    %90 = vector.broadcast %0 : f32 to vector<24x4xf32>
    %91 = arith.addf %89, %90 : vector<24x4xf32>
    %92 = arith.maximumf %76, %91 : vector<24x4xf32>
    %93 = arith.subf %76, %92 : vector<24x4xf32>
    %94 = math.exp %93 : vector<24x4xf32>
    %95 = arith.subf %91, %92 : vector<24x4xf32>
    %96 = math.exp %95 : vector<24x4xf32>
    %97 = arith.mulf %94, %82 : vector<24x4xf32>
    %98 = arith.addf %97, %96 : vector<24x4xf32>
    %cst_35 = arith.constant dense<0.000000e+00> : vector<24x128xf32>
    %99 = tpu.matmul %94, %2, %cst_35 {dimension_numbers = #tpu.dot_dimension_numbers<[1], [0], [0], [1], [0, 0, 1, 1], [], []>} : vector<24x4xf32>, vector<4x128xf32>, vector<24x128xf32> -> vector<24x128xf32>
    %100 = arith.mulf %87, %99 : vector<24x128xf32>
    %cst_36 = arith.constant dense<0.000000e+00> : vector<24x128xf32>
    %101 = tpu.matmul %96, %2, %cst_36 {dimension_numbers = #tpu.dot_dimension_numbers<[1], [0], [0], [1], [0, 0, 1, 1], [], []>} : vector<24x4xf32>, vector<4x128xf32>, vector<24x128xf32> -> vector<24x128xf32>
    %102 = arith.mulf %88, %101 : vector<24x128xf32>
    %103 = arith.addf %100, %102 : vector<24x128xf32>
    %c0_37 = arith.constant 0 : index
    %c0_38 = arith.constant 0 : index
    %104 = vector.load %arg11[%c0_37, %c0_38] : memref<24x128xf32, #tpu.memory_space<vmem>>, vector<24x128xf32>
    %cst_39 = arith.constant dense<0.000000e+00> : vector<24x4xf32>
    %105 = tpu.matmul %104, %1, %cst_39 {dimension_numbers = #tpu.dot_dimension_numbers<[1], [0], [0], [1], [0, 0, 1, 1], [], []>} : vector<24x128xf32>, vector<128x4xf32>, vector<24x4xf32> -> vector<24x4xf32>
    %106 = vector.broadcast %0 : f32 to vector<24x4xf32>
    %107 = arith.addf %105, %106 : vector<24x4xf32>
    %108 = arith.maximumf %92, %107 : vector<24x4xf32>
    %109 = arith.subf %92, %108 : vector<24x4xf32>
    %110 = math.exp %109 : vector<24x4xf32>
    %111 = arith.subf %107, %108 : vector<24x4xf32>
    %112 = math.exp %111 : vector<24x4xf32>
    %113 = arith.mulf %110, %98 : vector<24x4xf32>
    %114 = arith.addf %113, %112 : vector<24x4xf32>
    %cst_40 = arith.constant dense<0.000000e+00> : vector<24x128xf32>
    %115 = tpu.matmul %110, %2, %cst_40 {dimension_numbers = #tpu.dot_dimension_numbers<[1], [0], [0], [1], [0, 0, 1, 1], [], []>} : vector<24x4xf32>, vector<4x128xf32>, vector<24x128xf32> -> vector<24x128xf32>
    %116 = arith.mulf %103, %115 : vector<24x128xf32>
    %cst_41 = arith.constant dense<0.000000e+00> : vector<24x128xf32>
    %117 = tpu.matmul %112, %2, %cst_41 {dimension_numbers = #tpu.dot_dimension_numbers<[1], [0], [0], [1], [0, 0, 1, 1], [], []>} : vector<24x4xf32>, vector<4x128xf32>, vector<24x128xf32> -> vector<24x128xf32>
    %118 = arith.mulf %104, %117 : vector<24x128xf32>
    %119 = arith.addf %116, %118 : vector<24x128xf32>
    %120 = tpu.reciprocal %114 {approx = true} : vector<24x4xf32> -> vector<24x4xf32>
    %cst_42 = arith.constant dense<0.000000e+00> : vector<24x128xf32>
    %121 = tpu.matmul %120, %2, %cst_42 {dimension_numbers = #tpu.dot_dimension_numbers<[1], [0], [0], [1], [0, 0, 1, 1], [], []>} : vector<24x4xf32>, vector<4x128xf32>, vector<24x128xf32> -> vector<24x128xf32>
    %122 = arith.mulf %119, %121 : vector<24x128xf32>
    %c0_43 = arith.constant 0 : index
    %c0_44 = arith.constant 0 : index
    %123 = vector.load %arg12[%c0_43, %c0_44] : memref<24x128xf32, #tpu.memory_space<vmem>>, vector<24x128xf32>
    tpu.vector_store %arg12[%c0_43, %c0_44], %122 {strides = array<i32>} : memref<24x128xf32, #tpu.memory_space<vmem>>, vector<24x128xf32>,
    return
  }
  func.func @transform_0(%arg0: i32) -> i32 {
    %c0_i32 = arith.constant 0 : i32
    %c0_i32_0 = arith.constant 0 : i32
    return %c0_i32 : i32
  }
  func.func @transform_1(%arg0: i32) -> (i32, i32) {
    %c0_i32 = arith.constant 0 : i32
    %c0_i32_0 = arith.constant 0 : i32
    %c0_i32_1 = arith.constant 0 : i32
    return %c0_i32, %c0_i32_0 : i32, i32
  }
  func.func @transform_2(%arg0: i32) -> (i32, i32) {
    %c0_i32 = arith.constant 0 : i32
    %c0_i32_0 = arith.constant 0 : i32
    %c0_i32_1 = arith.constant 0 : i32
    return %c0_i32, %c0_i32_0 : i32, i32
  }
  func.func @transform_3(%arg0: i32) -> (i32, i32) {
    %c0_i32 = arith.constant 0 : i32
    %c0_i32_0 = arith.constant 0 : i32
    return %arg0, %c0_i32 : i32, i32
  }
  func.func @transform_4(%arg0: i32) -> (i32, i32) {
    %c0_i32 = arith.constant 0 : i32
    %c0_i32_0 = arith.constant 0 : i32
    return %arg0, %c0_i32 : i32, i32
  }
  func.func @transform_5(%arg0: i32) -> (i32, i32) {
    %c0_i32 = arith.constant 0 : i32
    %c0_i32_0 = arith.constant 0 : i32
    return %arg0, %c0_i32 : i32, i32
  }
  func.func @transform_6(%arg0: i32) -> (i32, i32) {
    %c0_i32 = arith.constant 0 : i32
    %c0_i32_0 = arith.constant 0 : i32
    return %arg0, %c0_i32 : i32, i32
  }
  func.func @transform_7(%arg0: i32) -> (i32, i32) {
    %c0_i32 = arith.constant 0 : i32
    %c0_i32_0 = arith.constant 0 : i32
    return %arg0, %c0_i32 : i32, i32
  }
  func.func @transform_8(%arg0: i32) -> (i32, i32) {
    %c0_i32 = arith.constant 0 : i32
    %c0_i32_0 = arith.constant 0 : i32
    return %arg0, %c0_i32 : i32, i32
  }
  func.func @transform_9(%arg0: i32) -> (i32, i32) {
    %c0_i32 = arith.constant 0 : i32
    %c0_i32_0 = arith.constant 0 : i32
    return %arg0, %c0_i32 : i32, i32
  }
  func.func @transform_10(%arg0: i32) -> (i32, i32) {
    %c0_i32 = arith.constant 0 : i32
    %c0_i32_0 = arith.constant 0 : i32
    return %arg0, %c0_i32 : i32, i32
  }
  func.func @transform_11(%arg0: i32) -> (i32, i32) {
    %c0_i32 = arith.constant 0 : i32
    %c0_i32_0 = arith.constant 0 : i32
    return %arg0, %c0_i32 : i32, i32
  }
}

</mosaic_0001>

<llo_original>
// kernel: tpu_custom_call.1
$region0: #{tpu_custom_call.1}
  #allocation0 [shape = 'u32[]', space=smem, size = 0x4, offset = 0x4, fixed_abs, tag = 'smem constant byte address 0x4 - core index']
  #allocation1 [shape = 'u32[144,128]{1,0:T(1,128)}', space=vmem, size = 0x12000, scoped, tag = 'internal scratch']
  #allocation2 [shape = 'f32[1]{0:T(128)S(6)}', space=smem, size = 0x200, scoped, tag = 'scoped memory for tpu_custom_call.1']
  %s0 = inlined_call_operand.<no memory space> [shape: f32[1], index: 0, kind: input, shape index: {}]
  %s1 = inlined_call_operand.vmem [shape: f32[128,4], index: 1, kind: input, shape index: {}]
  %s2 = inlined_call_operand.vmem [shape: f32[4,128], index: 2, kind: input, shape index: {}]
  %s3 = inlined_call_operand.vmem [shape: f32[63,128], index: 3, kind: input, shape index: {}]
  %s4 = inlined_call_operand.vmem [shape: f32[63,128], index: 4, kind: input, shape index: {}]
  %s5 = inlined_call_operand.hbm [shape: f32[63,128], index: 5, kind: input, shape index: {}]
  %s6 = inlined_call_operand.hbm [shape: f32[63,128], index: 6, kind: input, shape index: {}]
  %s7 = inlined_call_operand.hbm [shape: f32[63,128], index: 7, kind: input, shape index: {}]
  %s8 = inlined_call_operand.hbm [shape: f32[63,128], index: 8, kind: input, shape index: {}]
  %s9 = inlined_call_operand.hbm [shape: f32[63,128], index: 9, kind: input, shape index: {}]
  %s10 = inlined_call_operand.hbm [shape: f32[63,128], index: 10, kind: input, shape index: {}]
  %s11 = inlined_call_operand.hbm [shape: f32[63,128], index: 11, kind: output, shape index: {}]
  %s12 = sld [smem:[#allocation0]]
  $region101: #{tpu_custom_call.1} parent=0
    _
  %s14 = ssub.s32 1, %s12
  %s15 = scalar_select 0, %s14, %s12
  %16 = sst [smem:[#allocation2]] %s0
  $region1: #{tpu_custom_call.1} parent=0
    #allocation3 [shape = 'u8[24576]{0}', space=vmem, size = 0x6000, scoped, tag = 'input window, operand 5']
    #allocation4 [shape = 's32[2]{0}', space=sflag, size = 0x8, scoped, tag = 'scoped memory for tpu_custom_call.1']
    #allocation5 [shape = 's32[2]{0}', space=sflag, size = 0x8, scoped, tag = 'scoped memory for tpu_custom_call.1']
    #allocation6 [shape = 'u8[24576]{0}', space=vmem, size = 0x6000, scoped, tag = 'input window, operand 6']
    #allocation7 [shape = 's32[2]{0}', space=sflag, size = 0x8, scoped, tag = 'scoped memory for tpu_custom_call.1']
    #allocation8 [shape = 'u8[24576]{0}', space=vmem, size = 0x6000, scoped, tag = 'input window, operand 7']
    #allocation9 [shape = 'u8[24576]{0}', space=vmem, size = 0x6000, scoped, tag = 'input window, operand 8']
    #allocation10 [shape = 's32[2]{0}', space=sflag, size = 0x8, scoped, tag = 'scoped memory for tpu_custom_call.1']
    #allocation11 [shape = 'u8[24576]{0}', space=vmem, size = 0x6000, scoped, tag = 'input window, operand 9']
    #allocation12 [shape = 'u8[24576]{0}', space=vmem, size = 0x6000, scoped, tag = 'input window, operand 10']
    #allocation13 [shape = 's32[2]{0}', space=sflag, size = 0x8, scoped, tag = 'scoped memory for tpu_custom_call.1']
    #allocation14 [shape = 'u8[24576]{0}', space=vmem, size = 0x6000, scoped, tag = 'output window, operand 0']
    %17 = vsyncpa [#allocation4], 0
    %s18 = scalar_lea.sflag [#allocation4], 1
    %19 = vsyncpa %s18, 0
    %20 = vsyncpa [#allocation7], 0
    %s21 = scalar_lea.sflag [#allocation7], 1
    %22 = vsyncpa %s21, 0
    %23 = vsyncpa [#allocation10], 0
    %s24 = scalar_lea.sflag [#allocation10], 1
    %25 = vsyncpa %s24, 0
    %26 = vsyncpa [#allocation13], 0
    %s27 = scalar_lea.sflag [#allocation13], 1
    %28 = vsyncpa %s27, 0
    %29 = vsyncpa [#allocation5], 0
    %s30 = scalar_lea.sflag [#allocation5], 1
    %31 = vsyncpa %s30, 0
    loop: start=0, step=1, limit=5
    $region2: #{tpu_custom_call.1} parent=1 // loop_pre_header
      _
    $region3: #{tpu_custom_call.1} parent=1 // loop_header
      %s33 = sphi 0, %s37
      %p34 = scmp.ge.s32.totalorder %s33, 5
      %s41 = sphi 0, %s41
      %s43 = sphi 0, %s41
      %s44 = sphi 0, %s43
      %s58 = sphi 0, %s44
      %s62 = sphi 0, %s62
      %s64 = sphi 0, %s62
      %s65 = sphi 0, %s64
      %s79 = sphi 0, %s65
      %s83 = sphi 0, %s83
      %s85 = sphi 0, %s83
      %s86 = sphi 0, %s85
      %s100 = sphi 0, %s86
      %s106 = sphi 0, %s108
      %s109 = sphi 0, %s106
      %s110 = sphi 0, %s109
      %s126 = sphi 0, %s110
      %s132 = sphi 0, %s134
      %s135 = sphi 0, %s132
      %s136 = sphi 0, %s135
      %s152 = sphi 0, %s136
      %s158 = sphi 0, %s160
      %s161 = sphi 0, %s158
      %s162 = sphi 0, %s161
      %s178 = sphi 0, %s162
      %s184 = sphi 0, %s186
      %s187 = sphi 0, %s184
      %s188 = sphi 0, %s187
      %s204 = sphi 0, %s188
      %s210 = sphi 0, %s212
      %s213 = sphi 0, %s210
      %s214 = sphi 0, %s213
      %s230 = sphi 0, %s214
      %s236 = sphi 0, %s238
      %s239 = sphi 0, %s236
      %s240 = sphi 0, %s239
      %s256 = sphi 0, %s240
      %s262 = sphi 0, %s264
      %s265 = sphi 0, %s262
      %s266 = sphi 0, %s265
      %s282 = sphi 0, %s266
      %s288 = sphi 0, %s290
      %s291 = sphi 0, %s288
      %s292 = sphi 0, %s291
      %s308 = sphi 0, %s292
      %s314 = sphi 0, %s316
      %s317 = sphi 0, %s314
      %s318 = sphi 0, %s317
      %s334 = sphi 0, %s318
    $region4: #{tpu_custom_call.1} parent=1 // loop_header_branch
      %36 = sbr.rel (%p34) target = $region8
    $region5: #{tpu_custom_call.1} parent=1 // loop_body
      %s38 = ssub.s32 %s33, 1
      %s39 = ssub.s32 %s33, 2
      %s40 = sadd.s32 %s33, 1
      %s42 = sadd.s32 %s41, 1
      %p45 = scmp.eq.s32.totalorder %s33, 2
      %p46 = scmp.ne.s32.totalorder %s41, %s43
      %p47 = scmp.eq.s32.totalorder %s33, 0
      %p48 = por %p46, %p47
      %p49 = scmp.ne.s32.totalorder %s41, %s43
      %p50 = scmp.eq.s32.totalorder %s38, 2
      %p51 = por %p49, %p50
      %p52 = scmp.ne.s32.totalorder %s43, %s44
      %p53 = scmp.eq.s32.totalorder %s38, 0
      %p54 = por %p52, %p53
      %p55 = scmp.ne.s32.totalorder %s43, %s44
      %p56 = scmp.eq.s32.totalorder %s39, 2
      %p57 = por %p55, %p56
      %p59 = scmp.ne.s32.totalorder %s44, %s58
      %p60 = scmp.eq.s32.totalorder %s39, 0
      %p61 = por %p59, %p60
      %s63 = sadd.s32 %s62, 1
      %p66 = scmp.eq.s32.totalorder %s33, 2
      %p67 = scmp.ne.s32.totalorder %s62, %s64
      %p68 = scmp.eq.s32.totalorder %s33, 0
      %p69 = por %p67, %p68
      %p70 = scmp.ne.s32.totalorder %s62, %s64
      %p71 = scmp.eq.s32.totalorder %s38, 2
      %p72 = por %p70, %p71
      %p73 = scmp.ne.s32.totalorder %s64, %s65
      %p74 = scmp.eq.s32.totalorder %s38, 0
      %p75 = por %p73, %p74
      %p76 = scmp.ne.s32.totalorder %s64, %s65
      %p77 = scmp.eq.s32.totalorder %s39, 2
      %p78 = por %p76, %p77
      %p80 = scmp.ne.s32.totalorder %s65, %s79
      %p81 = scmp.eq.s32.totalorder %s39, 0
      %p82 = por %p80, %p81
      %s84 = sadd.s32 %s83, 1
      %p87 = scmp.eq.s32.totalorder %s33, 2
      %p88 = scmp.ne.s32.totalorder %s83, %s85
      %p89 = scmp.eq.s32.totalorder %s33, 0
      %p90 = por %p88, %p89
      %p91 = scmp.ne.s32.totalorder %s83, %s85
      %p92 = scmp.eq.s32.totalorder %s38, 2
      %p93 = por %p91, %p92
      %p94 = scmp.ne.s32.totalorder %s85, %s86
      %p95 = scmp.eq.s32.totalorder %s38, 0
      %p96 = por %p94, %p95
      %p97 = scmp.ne.s32.totalorder %s85, %s86
      %p98 = scmp.eq.s32.totalorder %s39, 2
      %p99 = por %p97, %p98
      %p101 = scmp.ne.s32.totalorder %s86, %s100
      %p102 = scmp.eq.s32.totalorder %s39, 0
      %p103 = por %p101, %p102
      %s104 = ssub.s32 %s33, %s40
      %p105 = scmp.eq.s32.totalorder %s104, 0
      %s107 = sadd.s32 %s106, 1
      %s108 = scalar_select %p105, %s106, %s107
      %p111 = pneg %p105
      %p112 = scmp.eq.s32.totalorder %s33, 2
      %p113 = por %p111, %p112
      %p114 = scmp.ne.s32.totalorder %s106, %s109
      %p115 = scmp.eq.s32.totalorder %s33, 0
      %p116 = por %p114, %p115
      %p117 = scmp.ne.s32.totalorder %s106, %s109
      %p118 = scmp.eq.s32.totalorder %s38, 2
      %p119 = por %p117, %p118
      %p120 = scmp.ne.s32.totalorder %s109, %s110
      %p121 = scmp.eq.s32.totalorder %s38, 0
      %p122 = por %p120, %p121
      %p123 = scmp.ne.s32.totalorder %s109, %s110
      %p124 = scmp.eq.s32.totalorder %s39, 2
      %p125 = por %p123, %p124
      %p127 = scmp.ne.s32.totalorder %s110, %s126
      %p128 = scmp.eq.s32.totalorder %s39, 0
      %p129 = por %p127, %p128
      %s130 = ssub.s32 %s33, %s40
      %p131 = scmp.eq.s32.totalorder %s130, 0
      %s133 = sadd.s32 %s132, 1
      %s134 = scalar_select %p131, %s132, %s133
      %p137 = pneg %p131
      %p138 = scmp.eq.s32.totalorder %s33, 2
      %p139 = por %p137, %p138
      %p140 = scmp.ne.s32.totalorder %s132, %s135
      %p141 = scmp.eq.s32.totalorder %s33, 0
      %p142 = por %p140, %p141
      %p143 = scmp.ne.s32.totalorder %s132, %s135
      %p144 = scmp.eq.s32.totalorder %s38, 2
      %p145 = por %p143, %p144
      %p146 = scmp.ne.s32.totalorder %s135, %s136
      %p147 = scmp.eq.s32.totalorder %s38, 0
      %p148 = por %p146, %p147
      %p149 = scmp.ne.s32.totalorder %s135, %s136
      %p150 = scmp.eq.s32.totalorder %s39, 2
      %p151 = por %p149, %p150
      %p153 = scmp.ne.s32.totalorder %s136, %s152
      %p154 = scmp.eq.s32.totalorder %s39, 0
      %p155 = por %p153, %p154
      %s156 = ssub.s32 %s33, %s40
      %p157 = scmp.eq.s32.totalorder %s156, 0
      %s159 = sadd.s32 %s158, 1
      %s160 = scalar_select %p157, %s158, %s159
      %p163 = pneg %p157
      %p164 = scmp.eq.s32.totalorder %s33, 2
      %p165 = por %p163, %p164
      %p166 = scmp.ne.s32.totalorder %s158, %s161
      %p167 = scmp.eq.s32.totalorder %s33, 0
      %p168 = por %p166, %p167
      %p169 = scmp.ne.s32.totalorder %s158, %s161
      %p170 = scmp.eq.s32.totalorder %s38, 2
      %p171 = por %p169, %p170
      %p172 = scmp.ne.s32.totalorder %s161, %s162
      %p173 = scmp.eq.s32.totalorder %s38, 0
      %p174 = por %p172, %p173
      %p175 = scmp.ne.s32.totalorder %s161, %s162
      %p176 = scmp.eq.s32.totalorder %s39, 2
      %p177 = por %p175, %p176
      %p179 = scmp.ne.s32.totalorder %s162, %s178
      %p180 = scmp.eq.s32.totalorder %s39, 0
      %p181 = por %p179, %p180
      %s182 = ssub.s32 %s33, %s40
      %p183 = scmp.eq.s32.totalorder %s182, 0
      %s185 = sadd.s32 %s184, 1
      %s186 = scalar_select %p183, %s184, %s185
      %p189 = pneg %p183
      %p190 = scmp.eq.s32.totalorder %s33, 2
      %p191 = por %p189, %p190
      %p192 = scmp.ne.s32.totalorder %s184, %s187
      %p193 = scmp.eq.s32.totalorder %s33, 0
      %p194 = por %p192, %p193
      %p195 = scmp.ne.s32.totalorder %s184, %s187
      %p196 = scmp.eq.s32.totalorder %s38, 2
      %p197 = por %p195, %p196
      %p198 = scmp.ne.s32.totalorder %s187, %s188
      %p199 = scmp.eq.s32.totalorder %s38, 0
      %p200 = por %p198, %p199
      %p201 = scmp.ne.s32.totalorder %s187, %s188
      %p202 = scmp.eq.s32.totalorder %s39, 2
      %p203 = por %p201, %p202
      %p205 = scmp.ne.s32.totalorder %s188, %s204
      %p206 = scmp.eq.s32.totalorder %s39, 0
      %p207 = por %p205, %p206
      %s208 = ssub.s32 %s33, %s40
      %p209 = scmp.eq.s32.totalorder %s208, 0
      %s211 = sadd.s32 %s210, 1
      %s212 = scalar_select %p209, %s210, %s211
      %p215 = pneg %p209
      %p216 = scmp.eq.s32.totalorder %s33, 2
      %p217 = por %p215, %p216
      %p218 = scmp.ne.s32.totalorder %s210, %s213
      %p219 = scmp.eq.s32.totalorder %s33, 0
      %p220 = por %p218, %p219
      %p221 = scmp.ne.s32.totalorder %s210, %s213
      %p222 = scmp.eq.s32.totalorder %s38, 2
      %p223 = por %p221, %p222
      %p224 = scmp.ne.s32.totalorder %s213, %s214
      %p225 = scmp.eq.s32.totalorder %s38, 0
      %p226 = por %p224, %p225
      %p227 = scmp.ne.s32.totalorder %s213, %s214
      %p228 = scmp.eq.s32.totalorder %s39, 2
      %p229 = por %p227, %p228
      %p231 = scmp.ne.s32.totalorder %s214, %s230
      %p232 = scmp.eq.s32.totalorder %s39, 0
      %p233 = por %p231, %p232
      %s234 = ssub.s32 %s33, %s40
      %p235 = scmp.eq.s32.totalorder %s234, 0
      %s237 = sadd.s32 %s236, 1
      %s238 = scalar_select %p235, %s236, %s237
      %p241 = pneg %p235
      %p242 = scmp.eq.s32.totalorder %s33, 2
      %p243 = por %p241, %p242
      %p244 = scmp.ne.s32.totalorder %s236, %s239
      %p245 = scmp.eq.s32.totalorder %s33, 0
      %p246 = por %p244, %p245
      %p247 = scmp.ne.s32.totalorder %s236, %s239
      %p248 = scmp.eq.s32.totalorder %s38, 2
      %p249 = por %p247, %p248
      %p250 = scmp.ne.s32.totalorder %s239, %s240
      %p251 = scmp.eq.s32.totalorder %s38, 0
      %p252 = por %p250, %p251
      %p253 = scmp.ne.s32.totalorder %s239, %s240
      %p254 = scmp.eq.s32.totalorder %s39, 2
      %p255 = por %p253, %p254
      %p257 = scmp.ne.s32.totalorder %s240, %s256
      %p258 = scmp.eq.s32.totalorder %s39, 0
      %p259 = por %p257, %p258
      %s260 = ssub.s32 %s33, %s40
      %p261 = scmp.eq.s32.totalorder %s260, 0
      %s263 = sadd.s32 %s262, 1
      %s264 = scalar_select %p261, %s262, %s263
      %p267 = pneg %p261
      %p268 = scmp.eq.s32.totalorder %s33, 2
      %p269 = por %p267, %p268
      %p270 = scmp.ne.s32.totalorder %s262, %s265
      %p271 = scmp.eq.s32.totalorder %s33, 0
      %p272 = por %p270, %p271
      %p273 = scmp.ne.s32.totalorder %s262, %s265
      %p274 = scmp.eq.s32.totalorder %s38, 2
      %p275 = por %p273, %p274
      %p276 = scmp.ne.s32.totalorder %s265, %s266
      %p277 = scmp.eq.s32.totalorder %s38, 0
      %p278 = por %p276, %p277
      %p279 = scmp.ne.s32.totalorder %s265, %s266
      %p280 = scmp.eq.s32.totalorder %s39, 2
      %p281 = por %p279, %p280
      %p283 = scmp.ne.s32.totalorder %s266, %s282
      %p284 = scmp.eq.s32.totalorder %s39, 0
      %p285 = por %p283, %p284
      %s286 = ssub.s32 %s33, %s40
      %p287 = scmp.eq.s32.totalorder %s286, 0
      %s289 = sadd.s32 %s288, 1
      %s290 = scalar_select %p287, %s288, %s289
      %p293 = pneg %p287
      %p294 = scmp.eq.s32.totalorder %s33, 2
      %p295 = por %p293, %p294
      %p296 = scmp.ne.s32.totalorder %s288, %s291
      %p297 = scmp.eq.s32.totalorder %s33, 0
      %p298 = por %p296, %p297
      %p299 = scmp.ne.s32.totalorder %s288, %s291
      %p300 = scmp.eq.s32.totalorder %s38, 2
      %p301 = por %p299, %p300
      %p302 = scmp.ne.s32.totalorder %s291, %s292
      %p303 = scmp.eq.s32.totalorder %s38, 0
      %p304 = por %p302, %p303
      %p305 = scmp.ne.s32.totalorder %s291, %s292
      %p306 = scmp.eq.s32.totalorder %s39, 2
      %p307 = por %p305, %p306
      %p309 = scmp.ne.s32.totalorder %s292, %s308
      %p310 = scmp.eq.s32.totalorder %s39, 0
      %p311 = por %p309, %p310
      %s312 = ssub.s32 %s33, %s40
      %p313 = scmp.eq.s32.totalorder %s312, 0
      %s315 = sadd.s32 %s314, 1
      %s316 = scalar_select %p313, %s314, %s315
      %p319 = pneg %p313
      %p320 = scmp.eq.s32.totalorder %s33, 2
      %p321 = por %p319, %p320
      %p322 = scmp.ne.s32.totalorder %s314, %s317
      %p323 = scmp.eq.s32.totalorder %s33, 0
      %p324 = por %p322, %p323
      %p325 = scmp.ne.s32.totalorder %s314, %s317
      %p326 = scmp.eq.s32.totalorder %s38, 2
      %p327 = por %p325, %p326
      %p328 = scmp.ne.s32.totalorder %s317, %s318
      %p329 = scmp.eq.s32.totalorder %s38, 0
      %p330 = por %p328, %p329
      %p331 = scmp.ne.s32.totalorder %s317, %s318
      %p332 = scmp.eq.s32.totalorder %s39, 2
      %p333 = por %p331, %p332
      %p335 = scmp.ne.s32.totalorder %s318, %s334
      %p336 = scmp.eq.s32.totalorder %s39, 0
      %p337 = por %p335, %p336
      %p338 = scmp.le.s32.totalorder 1, %s33
      %p339 = scmp.lt.s32.totalorder %s33, 4
      %p340 = pnand %p338, %p339
      %p341 = pneg %p340
      // Predicated region
      $region9: #{tpu_custom_call.1} parent=5 // pred_check
        _
      $region10: #{tpu_custom_call.1} parent=5 // pred_check_branch
        %343 = sbr.rel (%p340) target = $region12
      $region11: #{tpu_custom_call.1} parent=5 // pred_region
        %s344 = ssub.s32 %s33, 1
        // Predicated region
        $region13: #{tpu_custom_call.1} parent=11 // pred_check
          %p345 = pneg %p54
        $region14: #{tpu_custom_call.1} parent=11 // pred_check_branch
          %347 = sbr.rel (%p345) target = $region16
        $region15: #{tpu_custom_call.1} parent=11 // pred_region
          _
        $region16: #{tpu_custom_call.1} parent=11 // pred_fallthru
          _
        // Predicated region
        $region17: #{tpu_custom_call.1} parent=11 // pred_check
          %p348 = pneg %p75
        $region18: #{tpu_custom_call.1} parent=11 // pred_check_branch
          %350 = sbr.rel (%p348) target = $region20
        $region19: #{tpu_custom_call.1} parent=11 // pred_region
          _
        $region20: #{tpu_custom_call.1} parent=11 // pred_fallthru
          _
        // Predicated region
        $region21: #{tpu_custom_call.1} parent=11 // pred_check
          %p351 = pneg %p96
        $region22: #{tpu_custom_call.1} parent=11 // pred_check_branch
          %353 = sbr.rel (%p351) target = $region24
        $region23: #{tpu_custom_call.1} parent=11 // pred_region
          _
        $region24: #{tpu_custom_call.1} parent=11 // pred_fallthru
          _
      $region12: #{tpu_custom_call.1} parent=5 // pred_fallthru
        _
      %p354 = scmp.lt.s32.totalorder %s33, 3
      // Predicated region
      $region25: #{tpu_custom_call.1} parent=5 // pred_check
        %p355 = pneg %p354
      $region26: #{tpu_custom_call.1} parent=5 // pred_check_branch
        %357 = sbr.rel (%p355) target = $region28
      $region27: #{tpu_custom_call.1} parent=5 // pred_region
        // Predicated region
        $region29: #{tpu_custom_call.1} parent=27 // pred_check
          %p358 = pneg %p116
        $region30: #{tpu_custom_call.1} parent=27 // pred_check_branch
          %360 = sbr.rel (%p358) target = $region32
        $region31: #{tpu_custom_call.1} parent=27 // pred_region
          %s361 = smul.u32 3, %s33
          %s362 = ssub.s32 8, %s361
          %p363 = scmp.lt.s32.totalorder %s362, 3
          %s364 = scalar_select %p363, %s362, 3
          %s365 = smul.u32 128, %s364
          %p366 = scmp.lt.s32.totalorder %s361, 7
          %s367 = scalar_select %p366, %s361, 7
          %s368 = smul.addr %s367, 8
          %s369 = scalar_lea.vmem %s3, %s368
          %s370 = smul.u32 3, %s33
          %s371 = ssub.s32 8, %s370
          %p372 = scmp.lt.s32.totalorder %s371, 3
          %s373 = scalar_select %p372, %s371, 3
          %s374 = smul.u32 128, %s373
        $region32: #{tpu_custom_call.1} parent=27 // pred_fallthru
          _
        // Predicated region
        $region33: #{tpu_custom_call.1} parent=27 // pred_check
          %p375 = pneg %p142
        $region34: #{tpu_custom_call.1} parent=27 // pred_check_branch
          %377 = sbr.rel (%p375) target = $region36
        $region35: #{tpu_custom_call.1} parent=27 // pred_region
          %s378 = smul.u32 3, %s33
          %s379 = ssub.s32 8, %s378
          %p380 = scmp.lt.s32.totalorder %s379, 3
          %s381 = scalar_select %p380, %s379, 3
          %s382 = smul.u32 128, %s381
          %p383 = scmp.lt.s32.totalorder %s378, 7
          %s384 = scalar_select %p383, %s378, 7
          %s385 = smul.addr %s384, 8
          %s386 = scalar_lea.vmem %s4, %s385
          %s387 = smul.u32 3, %s33
          %s388 = ssub.s32 8, %s387
          %p389 = scmp.lt.s32.totalorder %s388, 3
          %s390 = scalar_select %p389, %s388, 3
          %s391 = smul.u32 128, %s390
        $region36: #{tpu_custom_call.1} parent=27 // pred_fallthru
          _
        // Predicated region
        $region37: #{tpu_custom_call.1} parent=27 // pred_check
          %p392 = pneg %p168
        $region38: #{tpu_custom_call.1} parent=27 // pred_check_branch
          %394 = sbr.rel (%p392) target = $region40
        $region39: #{tpu_custom_call.1} parent=27 // pred_region
          %s395 = sand.u32 %s158, 1
          %s396 = scalar_lea.sflag [#allocation4], %s395
          %s397 = sand.u32 %s158, 1
          %s398 = smul.addr %s397, 24
          %s399 = scalar_lea.vmem [#allocation3], %s398
          %s400 = smul.u32 3, %s33
          %s401 = ssub.s32 8, %s400
          %p402 = scmp.lt.s32.totalorder %s401, 3
          %s403 = scalar_select %p402, %s401, 3
          %s404 = smul.u32 128, %s403
          %s406 = ssub.s32 384, %s404
          %407 = vsyncadd %s396, %s406
          %p408 = scmp.ne.s32.totalorder 0, %s404
          %s409 = smul.addr %s400, 128
          %s410 = scalar_lea.hbm %s5, %s409
          %s411 = smul.u32 8, %s403
          %s412 = sshll.u32 %s399, 4
          %s413 = int_to_ptr.vmem [resolvable:$true] %s412
          %s414 = sshll.u32 %s411, 4
          %418 = dma.hbm_to_vmem [thread:$0]  (%p408), %s410, %s414, %s413, %s396, 128, 128, 8
        $region40: #{tpu_custom_call.1} parent=27 // pred_fallthru
          _
        // Predicated region
        $region41: #{tpu_custom_call.1} parent=27 // pred_check
          %p419 = pneg %p194
        $region42: #{tpu_custom_call.1} parent=27 // pred_check_branch
          %421 = sbr.rel (%p419) target = $region44
        $region43: #{tpu_custom_call.1} parent=27 // pred_region
          %s422 = sand.u32 %s33, 1
          %s423 = scalar_lea.sflag [#allocation7], %s422
          %s424 = sand.u32 %s184, 1
          %s425 = smul.addr %s424, 24
          %s426 = scalar_lea.vmem [#allocation6], %s425
          %s427 = smul.u32 3, %s33
          %s428 = ssub.s32 8, %s427
          %p429 = scmp.lt.s32.totalorder %s428, 3
          %s430 = scalar_select %p429, %s428, 3
          %s431 = smul.u32 128, %s430
          %s433 = ssub.s32 384, %s431
          %434 = vsyncadd %s423, %s433
          %p435 = scmp.ne.s32.totalorder 0, %s431
          %s436 = smul.addr %s427, 128
          %s437 = scalar_lea.hbm %s6, %s436
          %s438 = smul.u32 8, %s430
          %s439 = sshll.u32 %s426, 4
          %s440 = int_to_ptr.vmem [resolvable:$true] %s439
          %s441 = sshll.u32 %s438, 4
          %445 = dma.hbm_to_vmem [thread:$0]  (%p435), %s437, %s441, %s440, %s423, 128, 128, 8
        $region44: #{tpu_custom_call.1} parent=27 // pred_fallthru
          _
        // Predicated region
        $region45: #{tpu_custom_call.1} parent=27 // pred_check
          %p446 = pneg %p220
        $region46: #{tpu_custom_call.1} parent=27 // pred_check_branch
          %448 = sbr.rel (%p446) target = $region48
        $region47: #{tpu_custom_call.1} parent=27 // pred_region
          %s449 = sand.u32 %s33, 1
          %s450 = scalar_lea.sflag [#allocation7], %s449
          %s451 = sand.u32 %s210, 1
          %s452 = smul.addr %s451, 24
          %s453 = scalar_lea.vmem [#allocation8], %s452
          %s454 = smul.u32 3, %s33
          %s455 = ssub.s32 8, %s454
          %p456 = scmp.lt.s32.totalorder %s455, 3
          %s457 = scalar_select %p456, %s455, 3
          %s458 = smul.u32 128, %s457
          %s460 = ssub.s32 384, %s458
          %461 = vsyncadd %s450, %s460
          %p462 = scmp.ne.s32.totalorder 0, %s458
          %s463 = smul.addr %s454, 128
          %s464 = scalar_lea.hbm %s7, %s463
          %s465 = smul.u32 8, %s457
          %s466 = sshll.u32 %s453, 4
          %s467 = int_to_ptr.vmem [resolvable:$true] %s466
          %s468 = sshll.u32 %s465, 4
          %472 = dma.hbm_to_vmem [thread:$0]  (%p462), %s464, %s468, %s467, %s450, 128, 128, 8
        $region48: #{tpu_custom_call.1} parent=27 // pred_fallthru
          _
        // Predicated region
        $region49: #{tpu_custom_call.1} parent=27 // pred_check
          %p473 = pneg %p246
        $region50: #{tpu_custom_call.1} parent=27 // pred_check_branch
          %475 = sbr.rel (%p473) target = $region52
        $region51: #{tpu_custom_call.1} parent=27 // pred_region
          %s476 = sand.u32 %s33, 1
          %s477 = scalar_lea.sflag [#allocation10], %s476
          %s478 = sand.u32 %s236, 1
          %s479 = smul.addr %s478, 24
          %s480 = scalar_lea.vmem [#allocation9], %s479
          %s481 = smul.u32 3, %s33
          %s482 = ssub.s32 8, %s481
          %p483 = scmp.lt.s32.totalorder %s482, 3
          %s484 = scalar_select %p483, %s482, 3
          %s485 = smul.u32 128, %s484
          %s487 = ssub.s32 384, %s485
          %488 = vsyncadd %s477, %s487
          %p489 = scmp.ne.s32.totalorder 0, %s485
          %s490 = smul.addr %s481, 128
          %s491 = scalar_lea.hbm %s8, %s490
          %s492 = smul.u32 8, %s484
          %s493 = sshll.u32 %s480, 4
          %s494 = int_to_ptr.vmem [resolvable:$true] %s493
          %s495 = sshll.u32 %s492, 4
          %499 = dma.hbm_to_vmem [thread:$0]  (%p489), %s491, %s495, %s494, %s477, 128, 128, 8
        $region52: #{tpu_custom_call.1} parent=27 // pred_fallthru
          _
        // Predicated region
        $region53: #{tpu_custom_call.1} parent=27 // pred_check
          %p500 = pneg %p272
        $region54: #{tpu_custom_call.1} parent=27 // pred_check_branch
          %502 = sbr.rel (%p500) target = $region56
        $region55: #{tpu_custom_call.1} parent=27 // pred_region
          %s503 = sand.u32 %s33, 1
          %s504 = scalar_lea.sflag [#allocation10], %s503
          %s505 = sand.u32 %s262, 1
          %s506 = smul.addr %s505, 24
          %s507 = scalar_lea.vmem [#allocation11], %s506
          %s508 = smul.u32 3, %s33
          %s509 = ssub.s32 8, %s508
          %p510 = scmp.lt.s32.totalorder %s509, 3
          %s511 = scalar_select %p510, %s509, 3
          %s512 = smul.u32 128, %s511
          %s514 = ssub.s32 384, %s512
          %515 = vsyncadd %s504, %s514
          %p516 = scmp.ne.s32.totalorder 0, %s512
          %s517 = smul.addr %s508, 128
          %s518 = scalar_lea.hbm %s9, %s517
          %s519 = smul.u32 8, %s511
          %s520 = sshll.u32 %s507, 4
          %s521 = int_to_ptr.vmem [resolvable:$true] %s520
          %s522 = sshll.u32 %s519, 4
          %526 = dma.hbm_to_vmem [thread:$0]  (%p516), %s518, %s522, %s521, %s504, 128, 128, 8
        $region56: #{tpu_custom_call.1} parent=27 // pred_fallthru
          _
        // Predicated region
        $region57: #{tpu_custom_call.1} parent=27 // pred_check
          %p527 = pneg %p298
        $region58: #{tpu_custom_call.1} parent=27 // pred_check_branch
          %529 = sbr.rel (%p527) target = $region60
        $region59: #{tpu_custom_call.1} parent=27 // pred_region
          %s530 = sand.u32 %s288, 1
          %s531 = scalar_lea.sflag [#allocation13], %s530
          %s532 = sand.u32 %s288, 1
          %s533 = smul.addr %s532, 24
          %s534 = scalar_lea.vmem [#allocation12], %s533
          %s535 = smul.u32 3, %s33
          %s536 = ssub.s32 8, %s535
          %p537 = scmp.lt.s32.totalorder %s536, 3
          %s538 = scalar_select %p537, %s536, 3
          %s539 = smul.u32 128, %s538
          %s541 = ssub.s32 384, %s539
          %542 = vsyncadd %s531, %s541
          %p543 = scmp.ne.s32.totalorder 0, %s539
          %s544 = smul.addr %s535, 128
          %s545 = scalar_lea.hbm %s10, %s544
          %s546 = smul.u32 8, %s538
          %s547 = sshll.u32 %s534, 4
          %s548 = int_to_ptr.vmem [resolvable:$true] %s547
          %s549 = sshll.u32 %s546, 4
          %553 = dma.hbm_to_vmem [thread:$0]  (%p543), %s545, %s549, %s548, %s531, 128, 128, 8
        $region60: #{tpu_custom_call.1} parent=27 // pred_fallthru
          _
      $region28: #{tpu_custom_call.1} parent=5 // pred_fallthru
        _
      %p554 = scmp.le.s32.totalorder 1, %s33
      %p555 = scmp.lt.s32.totalorder %s33, 4
      %p556 = pnand %p554, %p555
      %p557 = pneg %p556
      // Predicated region
      $region61: #{tpu_custom_call.1} parent=5 // pred_check
        _
      $region62: #{tpu_custom_call.1} parent=5 // pred_check_branch
        %559 = sbr.rel (%p556) target = $region64
      $region63: #{tpu_custom_call.1} parent=5 // pred_region
        %s560 = ssub.s32 %s33, 1
        %s561 = sand.u32 %s161, 1
        %s562 = scalar_lea.sflag [#allocation4], %s561
        %s563 = sand.u32 %s161, 1
        %s564 = smul.addr %s563, 24
        %s565 = scalar_lea.vmem [#allocation3], %s564
        // Predicated region
        $region65: #{tpu_custom_call.1} parent=63 // pred_check
          %p566 = pneg %p174
        $region66: #{tpu_custom_call.1} parent=63 // pred_check_branch
          %568 = sbr.rel (%p566) target = $region68
        $region67: #{tpu_custom_call.1} parent=63 // pred_region
          %569 = dma.done %s562, 384
        $region68: #{tpu_custom_call.1} parent=63 // pred_fallthru
          _
        %s570 = sand.u32 %s38, 1
        %s571 = scalar_lea.sflag [#allocation7], %s570
        %s572 = sand.u32 %s187, 1
        %s573 = smul.addr %s572, 24
        %s574 = scalar_lea.vmem [#allocation6], %s573
        // Predicated region
        $region69: #{tpu_custom_call.1} parent=63 // pred_check
          %p575 = pneg %p200
        $region70: #{tpu_custom_call.1} parent=63 // pred_check_branch
          %577 = sbr.rel (%p575) target = $region72
        $region71: #{tpu_custom_call.1} parent=63 // pred_region
          %578 = dma.done %s571, 384
        $region72: #{tpu_custom_call.1} parent=63 // pred_fallthru
          _
        %s579 = sand.u32 %s38, 1
        %s580 = scalar_lea.sflag [#allocation7], %s579
        %s581 = sand.u32 %s213, 1
        %s582 = smul.addr %s581, 24
        %s583 = scalar_lea.vmem [#allocation8], %s582
        // Predicated region
        $region73: #{tpu_custom_call.1} parent=63 // pred_check
          %p584 = pneg %p226
        $region74: #{tpu_custom_call.1} parent=63 // pred_check_branch
          %586 = sbr.rel (%p584) target = $region76
        $region75: #{tpu_custom_call.1} parent=63 // pred_region
          %587 = dma.done %s580, 384
        $region76: #{tpu_custom_call.1} parent=63 // pred_fallthru
          _
        %s588 = sand.u32 %s38, 1
        %s589 = scalar_lea.sflag [#allocation10], %s588
        %s590 = sand.u32 %s239, 1
        %s591 = smul.addr %s590, 24
        %s592 = scalar_lea.vmem [#allocation9], %s591
        // Predicated region
        $region77: #{tpu_custom_call.1} parent=63 // pred_check
          %p593 = pneg %p252
        $region78: #{tpu_custom_call.1} parent=63 // pred_check_branch
          %595 = sbr.rel (%p593) target = $region80
        $region79: #{tpu_custom_call.1} parent=63 // pred_region
          %596 = dma.done %s589, 384
        $region80: #{tpu_custom_call.1} parent=63 // pred_fallthru
          _
        %s597 = sand.u32 %s38, 1
        %s598 = scalar_lea.sflag [#allocation10], %s597
        %s599 = sand.u32 %s265, 1
        %s600 = smul.addr %s599, 24
        %s601 = scalar_lea.vmem [#allocation11], %s600
        // Predicated region
        $region81: #{tpu_custom_call.1} parent=63 // pred_check
          %p602 = pneg %p278
        $region82: #{tpu_custom_call.1} parent=63 // pred_check_branch
          %604 = sbr.rel (%p602) target = $region84
        $region83: #{tpu_custom_call.1} parent=63 // pred_region
          %605 = dma.done %s598, 384
        $region84: #{tpu_custom_call.1} parent=63 // pred_fallthru
          _
        %s606 = sand.u32 %s291, 1
        %s607 = scalar_lea.sflag [#allocation13], %s606
        %s608 = sand.u32 %s291, 1
        %s609 = smul.addr %s608, 24
        %s610 = scalar_lea.vmem [#allocation12], %s609
        // Predicated region
        $region85: #{tpu_custom_call.1} parent=63 // pred_check
          %p611 = pneg %p304
        $region86: #{tpu_custom_call.1} parent=63 // pred_check_branch
          %613 = sbr.rel (%p611) target = $region88
        $region87: #{tpu_custom_call.1} parent=63 // pred_region
          %614 = dma.done %s607, 384
        $region88: #{tpu_custom_call.1} parent=63 // pred_fallthru
          _
        %p615 = pneg %p54
        %p616 = pneg %p51
        %p617 = pneg %p75
        %p618 = pneg %p72
        %p619 = pneg %p96
        %p620 = pneg %p93
        %s621 = smul.u32 3, %s38
        %s622 = ssub.s32 8, %s621
        %p623 = scmp.lt.s32.totalorder %s622, 3
        %s624 = scalar_select %p623, %s622, 3
        %s625 = smul.u32 128, %s624
        %p626 = scmp.lt.s32.totalorder %s621, 7
        %s627 = scalar_select %p626, %s621, 7
        %s628 = smul.addr %s627, 8
        %s629 = scalar_lea.vmem %s3, %s628
        %p630 = pneg %p122
        %p631 = pneg %p119
        %s632 = smul.u32 3, %s38
        %s633 = ssub.s32 8, %s632
        %p634 = scmp.lt.s32.totalorder %s633, 3
        %s635 = scalar_select %p634, %s633, 3
        %s636 = smul.u32 128, %s635
        %p637 = scmp.lt.s32.totalorder %s632, 7
        %s638 = scalar_select %p637, %s632, 7
        %s639 = smul.addr %s638, 8
        %s640 = scalar_lea.vmem %s4, %s639
        %p641 = pneg %p148
        %p642 = pneg %p145
        %s643 = sand.u32 %s161, 1
        %s644 = scalar_lea.sflag [#allocation4], %s643
        %s645 = sand.u32 %s161, 1
        %s646 = smul.addr %s645, 24
        %s647 = scalar_lea.vmem [#allocation3], %s646
        %p648 = pneg %p174
        %p649 = pneg %p171
        %s650 = sand.u32 %s38, 1
        %s651 = scalar_lea.sflag [#allocation7], %s650
        %s652 = sand.u32 %s187, 1
        %s653 = smul.addr %s652, 24
        %s654 = scalar_lea.vmem [#allocation6], %s653
        %p655 = pneg %p200
        %p656 = pneg %p197
        %s657 = sand.u32 %s38, 1
        %s658 = scalar_lea.sflag [#allocation7], %s657
        %s659 = sand.u32 %s213, 1
        %s660 = smul.addr %s659, 24
        %s661 = scalar_lea.vmem [#allocation8], %s660
        %p662 = pneg %p226
        %p663 = pneg %p223
        %s664 = sand.u32 %s38, 1
        %s665 = scalar_lea.sflag [#allocation10], %s664
        %s666 = sand.u32 %s239, 1
        %s667 = smul.addr %s666, 24
        %s668 = scalar_lea.vmem [#allocation9], %s667
        %p669 = pneg %p252
        %p670 = pneg %p249
        %s671 = sand.u32 %s38, 1
        %s672 = scalar_lea.sflag [#allocation10], %s671
        %s673 = sand.u32 %s265, 1
        %s674 = smul.addr %s673, 24
        %s675 = scalar_lea.vmem [#allocation11], %s674
        %p676 = pneg %p278
        %p677 = pneg %p275
        %s678 = sand.u32 %s291, 1
        %s679 = scalar_lea.sflag [#allocation13], %s678
        %s680 = sand.u32 %s291, 1
        %s681 = smul.addr %s680, 24
        %s682 = scalar_lea.vmem [#allocation12], %s681
        %p683 = pneg %p304
        %p684 = pneg %p301
        %p685 = pneg %p330
        %p686 = pneg %p327
        %s687 = sand.u32 %s317, 1
        %s688 = scalar_lea.sflag [#allocation5], %s687
        %s689 = sand.u32 %s317, 1
        %s690 = smul.addr %s689, 24
        %s691 = scalar_lea.vmem [#allocation14], %s690
        %s692 = smul.u32 3, %s38
        %s693 = ssub.s32 8, %s692
        %p694 = scmp.lt.s32.totalorder %s693, 3
        %s695 = scalar_select %p694, %s693, 3
        %s696 = smul.u32 128, %s695
        %p697 = scmp.lt.s32.totalorder %s692, 7
        %s698 = scalar_select %p697, %s692, 7
        %s699 = smul.addr %s698, 8
        %s700 = scalar_lea.vmem %s3, %s699
        %s701 = smul.u32 3, %s38
        %s702 = ssub.s32 8, %s701
        %p703 = scmp.lt.s32.totalorder %s702, 3
        %s704 = scalar_select %p703, %s702, 3
        %s705 = smul.u32 128, %s704
        %s706 = smul.u32 3, %s38
        %s707 = ssub.s32 8, %s706
        %p708 = scmp.lt.s32.totalorder %s707, 3
        %s709 = scalar_select %p708, %s707, 3
        %s710 = smul.u32 128, %s709
        %p711 = scmp.lt.s32.totalorder %s706, 7
        %s712 = scalar_select %p711, %s706, 7
        %s713 = smul.addr %s712, 8
        %s714 = scalar_lea.vmem %s4, %s713
        %s715 = smul.u32 3, %s38
        %s716 = ssub.s32 8, %s715
        %p717 = scmp.lt.s32.totalorder %s716, 3
        %s718 = scalar_select %p717, %s716, 3
        %s719 = smul.u32 128, %s718
        %s720 = smul.u32 3, %s38
        %s721 = ssub.s32 8, %s720
        %p722 = scmp.lt.s32.totalorder %s721, 3
        %s723 = scalar_select %p722, %s721, 3
        %s724 = smul.u32 128, %s723
        %s725 = smul.u32 3, %s38
        %s726 = ssub.s32 8, %s725
        %p727 = scmp.lt.s32.totalorder %s726, 3
        %s728 = scalar_select %p727, %s726, 3
        %s729 = smul.u32 128, %s728
        %s730 = smul.u32 3, %s38
        %s731 = ssub.s32 8, %s730
        %p732 = scmp.lt.s32.totalorder %s731, 3
        %s733 = scalar_select %p732, %s731, 3
        %s734 = smul.u32 128, %s733
        %s735 = smul.u32 3, %s38
        %s736 = ssub.s32 8, %s735
        %p737 = scmp.lt.s32.totalorder %s736, 3
        %s738 = scalar_select %p737, %s736, 3
        %s739 = smul.u32 128, %s738
        %s740 = smul.u32 3, %s38
        %s741 = ssub.s32 8, %s740
        %p742 = scmp.lt.s32.totalorder %s741, 3
        %s743 = scalar_select %p742, %s741, 3
        %s744 = smul.u32 128, %s743
        %s745 = smul.u32 3, %s38
        %s746 = ssub.s32 8, %s745
        %p747 = scmp.lt.s32.totalorder %s746, 3
        %s748 = scalar_select %p747, %s746, 3
        %s749 = smul.u32 128, %s748
        %s750 = smul.u32 3, %s38
        %s751 = ssub.s32 8, %s750
        %p752 = scmp.lt.s32.totalorder %s751, 3
        %s753 = scalar_select %p752, %s751, 3
        %s754 = smul.u32 128, %s753
        %s755 = sld [smem:[#allocation2]]
        %v756 = vld [vmem:[%s1] sm:$0xff]
        %v757 = vld [vmem:[%s1 + $0x8] sm:$0xff]
        %v758 = vld [vmem:[%s1 + $0x10] sm:$0xff]
        %v759 = vld [vmem:[%s1 + $0x18] sm:$0xff]
        %v760 = vld [vmem:[%s1 + $0x20] sm:$0xff]
        %v761 = vld [vmem:[%s1 + $0x28] sm:$0xff]
        %v762 = vld [vmem:[%s1 + $0x30] sm:$0xff]
        %v763 = vld [vmem:[%s1 + $0x38] sm:$0xff]
        %v764 = vld [vmem:[%s1 + $0x40] sm:$0xff]
        %v765 = vld [vmem:[%s1 + $0x48] sm:$0xff]
        %v766 = vld [vmem:[%s1 + $0x50] sm:$0xff]
        %v767 = vld [vmem:[%s1 + $0x58] sm:$0xff]
        %v768 = vld [vmem:[%s1 + $0x60] sm:$0xff]
        %v769 = vld [vmem:[%s1 + $0x68] sm:$0xff]
        %v770 = vld [vmem:[%s1 + $0x70] sm:$0xff]
        %v771 = vld [vmem:[%s1 + $0x78] sm:$0xff]
        %v772 = vld [vmem:[%s2] sm:$0xf]
        %v773 = vld [vmem:[%s700] sm:$0xff]
        %v774 = vld [vmem:[%s700 + $0x8] sm:$0xff]
        %v775 = vld [vmem:[%s700 + $0x10] sm:$0xff]
        %v776 = vstv %s755
        %777 = vmatprep.subr.mxu0 0.0
        %778 = vmatpush1.msra.mxu0 %v756
        %779 = vmatprep.subr.mxu0 0.0
        %780 = vmatpush1.msra.mxu0 %v757
        %781 = vmatprep.subr.mxu0 0.0
        %782 = vmatpush1.msra.mxu0 %v758
        %783 = vmatprep.subr.mxu0 0.0
        %784 = vmatpush1.msra.mxu0 %v759
        %785 = vmatprep.subr.mxu0 0.0
        %786 = vmatpush1.msra.mxu0 %v760
        %787 = vmatprep.subr.mxu0 0.0
        %788 = vmatpush1.msra.mxu0 %v761
        %789 = vmatprep.subr.mxu0 0.0
        %790 = vmatpush1.msra.mxu0 %v762
        %791 = vmatprep.subr.mxu0 0.0
        %792 = vmatpush1.msra.mxu0 %v763
        %793 = vmatprep.subr.mxu0 0.0
        %794 = vmatpush1.msra.mxu0 %v764
        %795 = vmatprep.subr.mxu0 0.0
        %796 = vmatpush1.msra.mxu0 %v765
        %797 = vmatprep.subr.mxu0 0.0
        %798 = vmatpush1.msra.mxu0 %v766
        %799 = vmatprep.subr.mxu0 0.0
        %800 = vmatpush1.msra.mxu0 %v767
        %801 = vmatprep.subr.mxu0 0.0
        %802 = vmatpush1.msra.mxu0 %v768
        %803 = vmatprep.subr.mxu0 0.0
        %804 = vmatpush1.msra.mxu0 %v769
        %805 = vmatprep.subr.mxu0 0.0
        %806 = vmatpush1.msra.mxu0 %v770
        %807 = vmatprep.subr.mxu0 0.0
        %808 = vmatpush1.msra.mxu0 %v771
        %809 = vmatprep.subr.mxu0 0.0
        %810 = vmatpush1.msra.mxu0 0.0
        %811 = vmatprep.subr.mxu0 0.0
        %812 = vmatpush1.msra.mxu0 0.0
        %813 = vmatprep.subr.mxu0 0.0
        %814 = vmatpush1.msra.mxu0 0.0
        %815 = vmatprep.subr.mxu0 0.0
        %816 = vmatpush1.msra.mxu0 0.0
        %817 = vmatprep.subr.mxu0 0.0
        %818 = vmatpush1.msra.mxu0 0.0
        %819 = vmatprep.subr.mxu0 0.0
        %820 = vmatpush1.msra.mxu0 0.0
        %821 = vmatprep.subr.mxu0 0.0
        %822 = vmatpush1.msra.mxu0 0.0
        %823 = vmatprep.subr.mxu0 0.0
        %824 = vmatpush1.msra.mxu0 0.0
        %825 = vmatprep.subr.mxu0 0.0
        %826 = vmatpush1.msra.mxu0 0.0
        %827 = vmatprep.subr.mxu0 0.0
        %828 = vmatpush1.msra.mxu0 0.0
        %829 = vmatprep.subr.mxu0 0.0
        %830 = vmatpush1.msra.mxu0 0.0
        %831 = vmatprep.subr.mxu0 0.0
        %832 = vmatpush1.msra.mxu0 0.0
        %833 = vmatprep.subr.mxu0 0.0
        %834 = vmatpush1.msra.mxu0 0.0
        %835 = vmatprep.subr.mxu0 0.0
        %836 = vmatpush1.msra.mxu0 0.0
        %837 = vmatprep.subr.mxu0 0.0
        %838 = vmatpush1.msra.mxu0 0.0
        %839 = vmatprep.subr.mxu0 0.0
        %840 = vmatpush1.msra.mxu0 0.0
        %841 = vmatprep.mubr.f32.mxu0 0.0
        %842 = vmatmul.mubr.f32.gmra.mrb[0].mxu0 %v773
        %v843 = vpop.f32.mrb[0].mxu0
        %v844 = vadd.f32 %v776, %v843
        %v845 = vpop.f32.mrb[0].mxu0
        %846 = vmatprep.mubr.f32.mxu0 0.0
        %847 = vmatmul.mubr.f32.gmra.mrb[0].mxu0 %v774
        %v848 = vpop.f32.mrb[0].mxu0
        %v849 = vadd.f32 %v776, %v848
        %v850 = vpop.f32.mrb[0].mxu0
        %851 = vmatprep.mubr.f32.mxu0 0.0
        %852 = vmatmul.mubr.f32.gmra.mrb[0].mxu0 %v775
        %v853 = vpop.f32.mrb[0].mxu0
        %v854 = vadd.f32 %v776, %v853
        %v855 = vpop.f32.mrb[0].mxu0
        %856 = vdwg.mxu0
        %v857 = vld [vmem:[%s714] sm:$0xff]
        %v858 = vld [vmem:[%s714 + $0x8] sm:$0xff]
        %v859 = vld [vmem:[%s714 + $0x10] sm:$0xff]
        %860 = vmatprep.subr.mxu0 0.0
        %861 = vmatpush1.msra.mxu0 %v756
        %862 = vmatprep.subr.mxu0 0.0
        %863 = vmatpush1.msra.mxu0 %v757
        %864 = vmatprep.subr.mxu0 0.0
        %865 = vmatpush1.msra.mxu0 %v758
        %866 = vmatprep.subr.mxu0 0.0
        %867 = vmatpush1.msra.mxu0 %v759
        %868 = vmatprep.subr.mxu0 0.0
        %869 = vmatpush1.msra.mxu0 %v760
        %870 = vmatprep.subr.mxu0 0.0
        %871 = vmatpush1.msra.mxu0 %v761
        %872 = vmatprep.subr.mxu0 0.0
        %873 = vmatpush1.msra.mxu0 %v762
        %874 = vmatprep.subr.mxu0 0.0
        %875 = vmatpush1.msra.mxu0 %v763
        %876 = vmatprep.subr.mxu0 0.0
        %877 = vmatpush1.msra.mxu0 %v764
        %878 = vmatprep.subr.mxu0 0.0
        %879 = vmatpush1.msra.mxu0 %v765
        %880 = vmatprep.subr.mxu0 0.0
        %881 = vmatpush1.msra.mxu0 %v766
        %882 = vmatprep.subr.mxu0 0.0
        %883 = vmatpush1.msra.mxu0 %v767
        %884 = vmatprep.subr.mxu0 0.0
        %885 = vmatpush1.msra.mxu0 %v768
        %886 = vmatprep.subr.mxu0 0.0
        %887 = vmatpush1.msra.mxu0 %v769
        %888 = vmatprep.subr.mxu0 0.0
        %889 = vmatpush1.msra.mxu0 %v770
        %890 = vmatprep.subr.mxu0 0.0
        %891 = vmatpush1.msra.mxu0 %v771
        %892 = vmatprep.subr.mxu0 0.0
        %893 = vmatpush1.msra.mxu0 0.0
        %894 = vmatprep.subr.mxu0 0.0
        %895 = vmatpush1.msra.mxu0 0.0
        %896 = vmatprep.subr.mxu0 0.0
        %897 = vmatpush1.msra.mxu0 0.0
        %898 = vmatprep.subr.mxu0 0.0
        %899 = vmatpush1.msra.mxu0 0.0
        %900 = vmatprep.subr.mxu0 0.0
        %901 = vmatpush1.msra.mxu0 0.0
        %902 = vmatprep.subr.mxu0 0.0
        %903 = vmatpush1.msra.mxu0 0.0
        %904 = vmatprep.subr.mxu0 0.0
        %905 = vmatpush1.msra.mxu0 0.0
        %906 = vmatprep.subr.mxu0 0.0
        %907 = vmatpush1.msra.mxu0 0.0
        %908 = vmatprep.subr.mxu0 0.0
        %909 = vmatpush1.msra.mxu0 0.0
        %910 = vmatprep.subr.mxu0 0.0
        %911 = vmatpush1.msra.mxu0 0.0
        %912 = vmatprep.subr.mxu0 0.0
        %913 = vmatpush1.msra.mxu0 0.0
        %914 = vmatprep.subr.mxu0 0.0
        %915 = vmatpush1.msra.mxu0 0.0
        %916 = vmatprep.subr.mxu0 0.0
        %917 = vmatpush1.msra.mxu0 0.0
        %918 = vmatprep.subr.mxu0 0.0
        %919 = vmatpush1.msra.mxu0 0.0
        %920 = vmatprep.subr.mxu0 0.0
        %921 = vmatpush1.msra.mxu0 0.0
        %922 = vmatprep.subr.mxu0 0.0
        %923 = vmatpush1.msra.mxu0 0.0
        %924 = vmatprep.mubr.f32.mxu0 0.0
        %925 = vmatmul.mubr.f32.gmra.mrb[0].mxu0 %v857
        %v926 = vpop.f32.mrb[0].mxu0
        %v927 = vadd.f32 %v776, %v926
        %v928 = vpop.f32.mrb[0].mxu0
        %929 = vmatprep.mubr.f32.mxu0 0.0
        %930 = vmatmul.mubr.f32.gmra.mrb[0].mxu0 %v858
        %v931 = vpop.f32.mrb[0].mxu0
        %v932 = vadd.f32 %v776, %v931
        %v933 = vpop.f32.mrb[0].mxu0
        %934 = vmatprep.mubr.f32.mxu0 0.0
        %935 = vmatmul.mubr.f32.gmra.mrb[0].mxu0 %v859
        %v936 = vpop.f32.mrb[0].mxu0
        %v937 = vadd.f32 %v776, %v936
        %v938 = vpop.f32.mrb[0].mxu0
        %939 = vdwg.mxu0
        %v940 = vmax.f32 %v844, %v927
        %v941 = vmax.f32 %v849, %v932
        %v942 = vmax.f32 %v854, %v937
        %v943 = vsub.f32 %v844, %v940
        %v944 = vsub.f32 %v849, %v941
        %v945 = vsub.f32 %v854, %v942
        %v946 = vmul.f32 %v943, 1.442695
        %v947 = vpow.pop %v946
        %v948 = vmul.f32 %v944, 1.442695
        %v949 = vpow.pop %v948
        %v950 = vmul.f32 %v945, 1.442695
        %v951 = vpow.pop %v950
        %v952 = vsub.f32 %v927, %v940
        %v953 = vsub.f32 %v932, %v941
        %v954 = vsub.f32 %v937, %v942
        %v955 = vmul.f32 %v952, 1.442695
        %v956 = vpow.pop %v955
        %v957 = vmul.f32 %v953, 1.442695
        %v958 = vpow.pop %v957
        %v959 = vmul.f32 %v954, 1.442695
        %v960 = vpow.pop %v959
        %v961 = vadd.f32 %v947, %v956
        %v962 = vadd.f32 %v949, %v958
        %v963 = vadd.f32 %v951, %v960
        %vm964 = vcmask 31744
        %v966 = vsel %vm964, %v947, 0
        %v969 = vsel %vm964, %v949, 0
        %v972 = vsel %vm964, %v951, 0
        %vm974 = vcmask 1043456
        %v976 = vsel %vm974, %v772, 0
        %978 = vmatprep.subr.mxu0 0.0
        %979 = vmatpush1.msra.mxu0 %v976
        %980 = vmatprep.subr.mxu0 0.0
        %981 = vmatpush1.msra.mxu0 0.0
        %982 = vmatprep.subr.mxu0 0.0
        %983 = vmatpush1.msra.mxu0 0.0
        %984 = vmatprep.subr.mxu0 0.0
        %985 = vmatpush1.msra.mxu0 0.0
        %986 = vmatprep.subr.mxu0 0.0
        %987 = vmatpush1.msra.mxu0 0.0
        %988 = vmatprep.subr.mxu0 0.0
        %989 = vmatpush1.msra.mxu0 0.0
        %990 = vmatprep.subr.mxu0 0.0
        %991 = vmatpush1.msra.mxu0 0.0
        %992 = vmatprep.subr.mxu0 0.0
        %993 = vmatpush1.msra.mxu0 0.0
        %994 = vmatprep.subr.mxu0 0.0
        %995 = vmatpush1.msra.mxu0 0.0
        %996 = vmatprep.subr.mxu0 0.0
        %997 = vmatpush1.msra.mxu0 0.0
        %998 = vmatprep.subr.mxu0 0.0
        %999 = vmatpush1.msra.mxu0 0.0
        %1000 = vmatprep.subr.mxu0 0.0
        %1001 = vmatpush1.msra.mxu0 0.0
        %1002 = vmatprep.subr.mxu0 0.0
        %1003 = vmatpush1.msra.mxu0 0.0
        %1004 = vmatprep.subr.mxu0 0.0
        %1005 = vmatpush1.msra.mxu0 0.0
        %1006 = vmatprep.subr.mxu0 0.0
        %1007 = vmatpush1.msra.mxu0 0.0
        %1008 = vmatprep.subr.mxu0 0.0
        %1009 = vmatpush1.msra.mxu0 0.0
        %1010 = vmatprep.subr.mxu0 0.0
        %1011 = vmatpush1.msra.mxu0 0.0
        %1012 = vmatprep.subr.mxu0 0.0
        %1013 = vmatpush1.msra.mxu0 0.0
        %1014 = vmatprep.subr.mxu0 0.0
        %1015 = vmatpush1.msra.mxu0 0.0
        %1016 = vmatprep.subr.mxu0 0.0
        %1017 = vmatpush1.msra.mxu0 0.0
        %1018 = vmatprep.subr.mxu0 0.0
        %1019 = vmatpush1.msra.mxu0 0.0
        %1020 = vmatprep.subr.mxu0 0.0
        %1021 = vmatpush1.msra.mxu0 0.0
        %1022 = vmatprep.subr.mxu0 0.0
        %1023 = vmatpush1.msra.mxu0 0.0
        %1024 = vmatprep.subr.mxu0 0.0
        %1025 = vmatpush1.msra.mxu0 0.0
        %1026 = vmatprep.subr.mxu0 0.0
        %1027 = vmatpush1.msra.mxu0 0.0
        %1028 = vmatprep.subr.mxu0 0.0
        %1029 = vmatpush1.msra.mxu0 0.0
        %1030 = vmatprep.subr.mxu0 0.0
        %1031 = vmatpush1.msra.mxu0 0.0
        %1032 = vmatprep.subr.mxu0 0.0
        %1033 = vmatpush1.msra.mxu0 0.0
        %1034 = vmatprep.subr.mxu0 0.0
        %1035 = vmatpush1.msra.mxu0 0.0
        %1036 = vmatprep.subr.mxu0 0.0
        %1037 = vmatpush1.msra.mxu0 0.0
        %1038 = vmatprep.subr.mxu0 0.0
        %1039 = vmatpush1.msra.mxu0 0.0
        %1040 = vmatprep.subr.mxu0 0.0
        %1041 = vmatpush1.msra.mxu0 0.0
        %1042 = vmatprep.mubr.f32.mxu0 0.0
        %1043 = vmatmul.mubr.f32.gmra.mrb[0].mxu0 %v966
        %v1044 = vpop.f32.mrb[0].mxu0
        %v1045 = vadd.f32 0.0, %v1044
        %v1046 = vpop.f32.mrb[0].mxu0
        %1047 = vmatprep.mubr.f32.mxu0 0.0
        %1048 = vmatmul.mubr.f32.gmra.mrb[0].mxu0 %v969
        %v1049 = vpop.f32.mrb[0].mxu0
        %v1050 = vadd.f32 0.0, %v1049
        %v1051 = vpop.f32.mrb[0].mxu0
        %1052 = vmatprep.mubr.f32.mxu0 0.0
        %1053 = vmatmul.mubr.f32.gmra.mrb[0].mxu0 %v972
        %v1054 = vpop.f32.mrb[0].mxu0
        %v1055 = vadd.f32 0.0, %v1054
        %v1056 = vpop.f32.mrb[0].mxu0
        %1057 = vdwg.mxu0
        %v1058 = vmul.f32 %v773, %v1045
        %v1059 = vmul.f32 %v774, %v1050
        %v1060 = vmul.f32 %v775, %v1055
        %v1062 = vsel %vm964, %v956, 0
        %v1065 = vsel %vm964, %v958, 0
        %v1068 = vsel %vm964, %v960, 0
        %1070 = vmatprep.subr.mxu0 0.0
        %1071 = vmatpush1.msra.mxu0 %v976
        %1072 = vmatprep.subr.mxu0 0.0
        %1073 = vmatpush1.msra.mxu0 0.0
        %1074 = vmatprep.subr.mxu0 0.0
        %1075 = vmatpush1.msra.mxu0 0.0
        %1076 = vmatprep.subr.mxu0 0.0
        %1077 = vmatpush1.msra.mxu0 0.0
        %1078 = vmatprep.subr.mxu0 0.0
        %1079 = vmatpush1.msra.mxu0 0.0
        %1080 = vmatprep.subr.mxu0 0.0
        %1081 = vmatpush1.msra.mxu0 0.0
        %1082 = vmatprep.subr.mxu0 0.0
        %1083 = vmatpush1.msra.mxu0 0.0
        %1084 = vmatprep.subr.mxu0 0.0
        %1085 = vmatpush1.msra.mxu0 0.0
        %1086 = vmatprep.subr.mxu0 0.0
        %1087 = vmatpush1.msra.mxu0 0.0
        %1088 = vmatprep.subr.mxu0 0.0
        %1089 = vmatpush1.msra.mxu0 0.0
        %1090 = vmatprep.subr.mxu0 0.0
        %1091 = vmatpush1.msra.mxu0 0.0
        %1092 = vmatprep.subr.mxu0 0.0
        %1093 = vmatpush1.msra.mxu0 0.0
        %1094 = vmatprep.subr.mxu0 0.0
        %1095 = vmatpush1.msra.mxu0 0.0
        %1096 = vmatprep.subr.mxu0 0.0
        %1097 = vmatpush1.msra.mxu0 0.0
        %1098 = vmatprep.subr.mxu0 0.0
        %1099 = vmatpush1.msra.mxu0 0.0
        %1100 = vmatprep.subr.mxu0 0.0
        %1101 = vmatpush1.msra.mxu0 0.0
        %1102 = vmatprep.subr.mxu0 0.0
        %1103 = vmatpush1.msra.mxu0 0.0
        %1104 = vmatprep.subr.mxu0 0.0
        %1105 = vmatpush1.msra.mxu0 0.0
        %1106 = vmatprep.subr.mxu0 0.0
        %1107 = vmatpush1.msra.mxu0 0.0
        %1108 = vmatprep.subr.mxu0 0.0
        %1109 = vmatpush1.msra.mxu0 0.0
        %1110 = vmatprep.subr.mxu0 0.0
        %1111 = vmatpush1.msra.mxu0 0.0
        %1112 = vmatprep.subr.mxu0 0.0
        %1113 = vmatpush1.msra.mxu0 0.0
        %1114 = vmatprep.subr.mxu0 0.0
        %1115 = vmatpush1.msra.mxu0 0.0
        %1116 = vmatprep.subr.mxu0 0.0
        %1117 = vmatpush1.msra.mxu0 0.0
        %1118 = vmatprep.subr.mxu0 0.0
        %1119 = vmatpush1.msra.mxu0 0.0
        %1120 = vmatprep.subr.mxu0 0.0
        %1121 = vmatpush1.msra.mxu0 0.0
        %1122 = vmatprep.subr.mxu0 0.0
        %1123 = vmatpush1.msra.mxu0 0.0
        %1124 = vmatprep.subr.mxu0 0.0
        %1125 = vmatpush1.msra.mxu0 0.0
        %1126 = vmatprep.subr.mxu0 0.0
        %1127 = vmatpush1.msra.mxu0 0.0
        %1128 = vmatprep.subr.mxu0 0.0
        %1129 = vmatpush1.msra.mxu0 0.0
        %1130 = vmatprep.subr.mxu0 0.0
        %1131 = vmatpush1.msra.mxu0 0.0
        %1132 = vmatprep.subr.mxu0 0.0
        %1133 = vmatpush1.msra.mxu0 0.0
        %1134 = vmatprep.mubr.f32.mxu0 0.0
        %1135 = vmatmul.mubr.f32.gmra.mrb[0].mxu0 %v1062
        %v1136 = vpop.f32.mrb[0].mxu0
        %v1137 = vadd.f32 0.0, %v1136
        %v1138 = vpop.f32.mrb[0].mxu0
        %1139 = vmatprep.mubr.f32.mxu0 0.0
        %1140 = vmatmul.mubr.f32.gmra.mrb[0].mxu0 %v1065
        %v1141 = vpop.f32.mrb[0].mxu0
        %v1142 = vadd.f32 0.0, %v1141
        %v1143 = vpop.f32.mrb[0].mxu0
        %1144 = vmatprep.mubr.f32.mxu0 0.0
        %1145 = vmatmul.mubr.f32.gmra.mrb[0].mxu0 %v1068
        %v1146 = vpop.f32.mrb[0].mxu0
        %v1147 = vadd.f32 0.0, %v1146
        %v1148 = vpop.f32.mrb[0].mxu0
        %1149 = vdwg.mxu0
        %v1150 = vmul.f32 %v857, %v1137
        %v1151 = vmul.f32 %v858, %v1142
        %v1152 = vmul.f32 %v859, %v1147
        %v1153 = vadd.f32 %v1058, %v1150
        %v1154 = vadd.f32 %v1059, %v1151
        %v1155 = vadd.f32 %v1060, %v1152
        %v1156 = vld [vmem:[%s565] sm:$0xff]
        %v1157 = vld [vmem:[%s565 + $0x8] sm:$0xff]
        %v1158 = vld [vmem:[%s565 + $0x10] sm:$0xff]
        %1159 = vmatprep.subr.mxu0 0.0
        %1160 = vmatpush1.msra.mxu0 %v756
        %1161 = vmatprep.subr.mxu0 0.0
        %1162 = vmatpush1.msra.mxu0 %v757
        %1163 = vmatprep.subr.mxu0 0.0
        %1164 = vmatpush1.msra.mxu0 %v758
        %1165 = vmatprep.subr.mxu0 0.0
        %1166 = vmatpush1.msra.mxu0 %v759
        %1167 = vmatprep.subr.mxu0 0.0
        %1168 = vmatpush1.msra.mxu0 %v760
        %1169 = vmatprep.subr.mxu0 0.0
        %1170 = vmatpush1.msra.mxu0 %v761
        %1171 = vmatprep.subr.mxu0 0.0
        %1172 = vmatpush1.msra.mxu0 %v762
        %1173 = vmatprep.subr.mxu0 0.0
        %1174 = vmatpush1.msra.mxu0 %v763
        %1175 = vmatprep.subr.mxu0 0.0
        %1176 = vmatpush1.msra.mxu0 %v764
        %1177 = vmatprep.subr.mxu0 0.0
        %1178 = vmatpush1.msra.mxu0 %v765
        %1179 = vmatprep.subr.mxu0 0.0
        %1180 = vmatpush1.msra.mxu0 %v766
        %1181 = vmatprep.subr.mxu0 0.0
        %1182 = vmatpush1.msra.mxu0 %v767
        %1183 = vmatprep.subr.mxu0 0.0
        %1184 = vmatpush1.msra.mxu0 %v768
        %1185 = vmatprep.subr.mxu0 0.0
        %1186 = vmatpush1.msra.mxu0 %v769
        %1187 = vmatprep.subr.mxu0 0.0
        %1188 = vmatpush1.msra.mxu0 %v770
        %1189 = vmatprep.subr.mxu0 0.0
        %1190 = vmatpush1.msra.mxu0 %v771
        %1191 = vmatprep.subr.mxu0 0.0
        %1192 = vmatpush1.msra.mxu0 0.0
        %1193 = vmatprep.subr.mxu0 0.0
        %1194 = vmatpush1.msra.mxu0 0.0
        %1195 = vmatprep.subr.mxu0 0.0
        %1196 = vmatpush1.msra.mxu0 0.0
        %1197 = vmatprep.subr.mxu0 0.0
        %1198 = vmatpush1.msra.mxu0 0.0
        %1199 = vmatprep.subr.mxu0 0.0
        %1200 = vmatpush1.msra.mxu0 0.0
        %1201 = vmatprep.subr.mxu0 0.0
        %1202 = vmatpush1.msra.mxu0 0.0
        %1203 = vmatprep.subr.mxu0 0.0
        %1204 = vmatpush1.msra.mxu0 0.0
        %1205 = vmatprep.subr.mxu0 0.0
        %1206 = vmatpush1.msra.mxu0 0.0
        %1207 = vmatprep.subr.mxu0 0.0
        %1208 = vmatpush1.msra.mxu0 0.0
        %1209 = vmatprep.subr.mxu0 0.0
        %1210 = vmatpush1.msra.mxu0 0.0
        %1211 = vmatprep.subr.mxu0 0.0
        %1212 = vmatpush1.msra.mxu0 0.0
        %1213 = vmatprep.subr.mxu0 0.0
        %1214 = vmatpush1.msra.mxu0 0.0
        %1215 = vmatprep.subr.mxu0 0.0
        %1216 = vmatpush1.msra.mxu0 0.0
        %1217 = vmatprep.subr.mxu0 0.0
        %1218 = vmatpush1.msra.mxu0 0.0
        %1219 = vmatprep.subr.mxu0 0.0
        %1220 = vmatpush1.msra.mxu0 0.0
        %1221 = vmatprep.subr.mxu0 0.0
        %1222 = vmatpush1.msra.mxu0 0.0
        %1223 = vmatprep.mubr.f32.mxu0 0.0
        %1224 = vmatmul.mubr.f32.gmra.mrb[0].mxu0 %v1156
        %v1225 = vpop.f32.mrb[0].mxu0
        %v1226 = vadd.f32 %v776, %v1225
        %v1227 = vpop.f32.mrb[0].mxu0
        %1228 = vmatprep.mubr.f32.mxu0 0.0
        %1229 = vmatmul.mubr.f32.gmra.mrb[0].mxu0 %v1157
        %v1230 = vpop.f32.mrb[0].mxu0
        %v1231 = vadd.f32 %v776, %v1230
        %v1232 = vpop.f32.mrb[0].mxu0
        %1233 = vmatprep.mubr.f32.mxu0 0.0
        %1234 = vmatmul.mubr.f32.gmra.mrb[0].mxu0 %v1158
        %v1235 = vpop.f32.mrb[0].mxu0
        %v1236 = vadd.f32 %v776, %v1235
        %v1237 = vpop.f32.mrb[0].mxu0
        %1238 = vdwg.mxu0
        %v1239 = vmax.f32 %v940, %v1226
        %v1240 = vmax.f32 %v941, %v1231
        %v1241 = vmax.f32 %v942, %v1236
        %v1242 = vsub.f32 %v940, %v1239
        %v1243 = vsub.f32 %v941, %v1240
        %v1244 = vsub.f32 %v942, %v1241
        %v1245 = vmul.f32 %v1242, 1.442695
        %v1246 = vpow.pop %v1245
        %v1247 = vmul.f32 %v1243, 1.442695
        %v1248 = vpow.pop %v1247
        %v1249 = vmul.f32 %v1244, 1.442695
        %v1250 = vpow.pop %v1249
        %v1251 = vsub.f32 %v1226, %v1239
        %v1252 = vsub.f32 %v1231, %v1240
        %v1253 = vsub.f32 %v1236, %v1241
        %v1254 = vmul.f32 %v1251, 1.442695
        %v1255 = vpow.pop %v1254
        %v1256 = vmul.f32 %v1252, 1.442695
        %v1257 = vpow.pop %v1256
        %v1258 = vmul.f32 %v1253, 1.442695
        %v1259 = vpow.pop %v1258
        %v1260 = vmul.f32 %v1246, %v961
        %v1261 = vmul.f32 %v1248, %v962
        %v1262 = vmul.f32 %v1250, %v963
        %v1263 = vadd.f32 %v1260, %v1255
        %v1264 = vadd.f32 %v1261, %v1257
        %v1265 = vadd.f32 %v1262, %v1259
        %v1267 = vsel %vm964, %v1246, 0
        %v1270 = vsel %vm964, %v1248, 0
        %v1273 = vsel %vm964, %v1250, 0
        %1275 = vmatprep.subr.mxu0 0.0
        %1276 = vmatpush1.msra.mxu0 %v976
        %1277 = vmatprep.subr.mxu0 0.0
        %1278 = vmatpush1.msra.mxu0 0.0
        %1279 = vmatprep.subr.mxu0 0.0
        %1280 = vmatpush1.msra.mxu0 0.0
        %1281 = vmatprep.subr.mxu0 0.0
        %1282 = vmatpush1.msra.mxu0 0.0
        %1283 = vmatprep.subr.mxu0 0.0
        %1284 = vmatpush1.msra.mxu0 0.0
        %1285 = vmatprep.subr.mxu0 0.0
        %1286 = vmatpush1.msra.mxu0 0.0
        %1287 = vmatprep.subr.mxu0 0.0
        %1288 = vmatpush1.msra.mxu0 0.0
        %1289 = vmatprep.subr.mxu0 0.0
        %1290 = vmatpush1.msra.mxu0 0.0
        %1291 = vmatprep.subr.mxu0 0.0
        %1292 = vmatpush1.msra.mxu0 0.0
        %1293 = vmatprep.subr.mxu0 0.0
        %1294 = vmatpush1.msra.mxu0 0.0
        %1295 = vmatprep.subr.mxu0 0.0
        %1296 = vmatpush1.msra.mxu0 0.0
        %1297 = vmatprep.subr.mxu0 0.0
        %1298 = vmatpush1.msra.mxu0 0.0
        %1299 = vmatprep.subr.mxu0 0.0
        %1300 = vmatpush1.msra.mxu0 0.0
        %1301 = vmatprep.subr.mxu0 0.0
        %1302 = vmatpush1.msra.mxu0 0.0
        %1303 = vmatprep.subr.mxu0 0.0
        %1304 = vmatpush1.msra.mxu0 0.0
        %1305 = vmatprep.subr.mxu0 0.0
        %1306 = vmatpush1.msra.mxu0 0.0
        %1307 = vmatprep.subr.mxu0 0.0
        %1308 = vmatpush1.msra.mxu0 0.0
        %1309 = vmatprep.subr.mxu0 0.0
        %1310 = vmatpush1.msra.mxu0 0.0
        %1311 = vmatprep.subr.mxu0 0.0
        %1312 = vmatpush1.msra.mxu0 0.0
        %1313 = vmatprep.subr.mxu0 0.0
        %1314 = vmatpush1.msra.mxu0 0.0
        %1315 = vmatprep.subr.mxu0 0.0
        %1316 = vmatpush1.msra.mxu0 0.0
        %1317 = vmatprep.subr.mxu0 0.0
        %1318 = vmatpush1.msra.mxu0 0.0
        %1319 = vmatprep.subr.mxu0 0.0
        %1320 = vmatpush1.msra.mxu0 0.0
        %1321 = vmatprep.subr.mxu0 0.0
        %1322 = vmatpush1.msra.mxu0 0.0
        %1323 = vmatprep.subr.mxu0 0.0
        %1324 = vmatpush1.msra.mxu0 0.0
        %1325 = vmatprep.subr.mxu0 0.0
        %1326 = vmatpush1.msra.mxu0 0.0
        %1327 = vmatprep.subr.mxu0 0.0
        %1328 = vmatpush1.msra.mxu0 0.0
        %1329 = vmatprep.subr.mxu0 0.0
        %1330 = vmatpush1.msra.mxu0 0.0
        %1331 = vmatprep.subr.mxu0 0.0
        %1332 = vmatpush1.msra.mxu0 0.0
        %1333 = vmatprep.subr.mxu0 0.0
        %1334 = vmatpush1.msra.mxu0 0.0
        %1335 = vmatprep.subr.mxu0 0.0
        %1336 = vmatpush1.msra.mxu0 0.0
        %1337 = vmatprep.subr.mxu0 0.0
        %1338 = vmatpush1.msra.mxu0 0.0
        %1339 = vmatprep.mubr.f32.mxu0 0.0
        %1340 = vmatmul.mubr.f32.gmra.mrb[0].mxu0 %v1267
        %v1341 = vpop.f32.mrb[0].mxu0
        %v1342 = vadd.f32 0.0, %v1341
        %v1343 = vpop.f32.mrb[0].mxu0
        %1344 = vmatprep.mubr.f32.mxu0 0.0
        %1345 = vmatmul.mubr.f32.gmra.mrb[0].mxu0 %v1270
        %v1346 = vpop.f32.mrb[0].mxu0
        %v1347 = vadd.f32 0.0, %v1346
        %v1348 = vpop.f32.mrb[0].mxu0
        %1349 = vmatprep.mubr.f32.mxu0 0.0
        %1350 = vmatmul.mubr.f32.gmra.mrb[0].mxu0 %v1273
        %v1351 = vpop.f32.mrb[0].mxu0
        %v1352 = vadd.f32 0.0, %v1351
        %v1353 = vpop.f32.mrb[0].mxu0
        %1354 = vdwg.mxu0
        %v1355 = vmul.f32 %v1153, %v1342
        %v1356 = vmul.f32 %v1154, %v1347
        %v1357 = vmul.f32 %v1155, %v1352
        %v1359 = vsel %vm964, %v1255, 0
        %v1362 = vsel %vm964, %v1257, 0
        %v1365 = vsel %vm964, %v1259, 0
        %1367 = vmatprep.subr.mxu0 0.0
        %1368 = vmatpush1.msra.mxu0 %v976
        %1369 = vmatprep.subr.mxu0 0.0
        %1370 = vmatpush1.msra.mxu0 0.0
        %1371 = vmatprep.subr.mxu0 0.0
        %1372 = vmatpush1.msra.mxu0 0.0
        %1373 = vmatprep.subr.mxu0 0.0
        %1374 = vmatpush1.msra.mxu0 0.0
        %1375 = vmatprep.subr.mxu0 0.0
        %1376 = vmatpush1.msra.mxu0 0.0
        %1377 = vmatprep.subr.mxu0 0.0
        %1378 = vmatpush1.msra.mxu0 0.0
        %1379 = vmatprep.subr.mxu0 0.0
        %1380 = vmatpush1.msra.mxu0 0.0
        %1381 = vmatprep.subr.mxu0 0.0
        %1382 = vmatpush1.msra.mxu0 0.0
        %1383 = vmatprep.subr.mxu0 0.0
        %1384 = vmatpush1.msra.mxu0 0.0
        %1385 = vmatprep.subr.mxu0 0.0
        %1386 = vmatpush1.msra.mxu0 0.0
        %1387 = vmatprep.subr.mxu0 0.0
        %1388 = vmatpush1.msra.mxu0 0.0
        %1389 = vmatprep.subr.mxu0 0.0
        %1390 = vmatpush1.msra.mxu0 0.0
        %1391 = vmatprep.subr.mxu0 0.0
        %1392 = vmatpush1.msra.mxu0 0.0
        %1393 = vmatprep.subr.mxu0 0.0
        %1394 = vmatpush1.msra.mxu0 0.0
        %1395 = vmatprep.subr.mxu0 0.0
        %1396 = vmatpush1.msra.mxu0 0.0
        %1397 = vmatprep.subr.mxu0 0.0
        %1398 = vmatpush1.msra.mxu0 0.0
        %1399 = vmatprep.subr.mxu0 0.0
        %1400 = vmatpush1.msra.mxu0 0.0
        %1401 = vmatprep.subr.mxu0 0.0
        %1402 = vmatpush1.msra.mxu0 0.0
        %1403 = vmatprep.subr.mxu0 0.0
        %1404 = vmatpush1.msra.mxu0 0.0
        %1405 = vmatprep.subr.mxu0 0.0
        %1406 = vmatpush1.msra.mxu0 0.0
        %1407 = vmatprep.subr.mxu0 0.0
        %1408 = vmatpush1.msra.mxu0 0.0
        %1409 = vmatprep.subr.mxu0 0.0
        %1410 = vmatpush1.msra.mxu0 0.0
        %1411 = vmatprep.subr.mxu0 0.0
        %1412 = vmatpush1.msra.mxu0 0.0
        %1413 = vmatprep.subr.mxu0 0.0
        %1414 = vmatpush1.msra.mxu0 0.0
        %1415 = vmatprep.subr.mxu0 0.0
        %1416 = vmatpush1.msra.mxu0 0.0
        %1417 = vmatprep.subr.mxu0 0.0
        %1418 = vmatpush1.msra.mxu0 0.0
        %1419 = vmatprep.subr.mxu0 0.0
        %1420 = vmatpush1.msra.mxu0 0.0
        %1421 = vmatprep.subr.mxu0 0.0
        %1422 = vmatpush1.msra.mxu0 0.0
        %1423 = vmatprep.subr.mxu0 0.0
        %1424 = vmatpush1.msra.mxu0 0.0
        %1425 = vmatprep.subr.mxu0 0.0
        %1426 = vmatpush1.msra.mxu0 0.0
        %1427 = vmatprep.subr.mxu0 0.0
        %1428 = vmatpush1.msra.mxu0 0.0
        %1429 = vmatprep.subr.mxu0 0.0
        %1430 = vmatpush1.msra.mxu0 0.0
        %1431 = vmatprep.mubr.f32.mxu0 0.0
        %1432 = vmatmul.mubr.f32.gmra.mrb[0].mxu0 %v1359
        %v1433 = vpop.f32.mrb[0].mxu0
        %v1434 = vadd.f32 0.0, %v1433
        %v1435 = vpop.f32.mrb[0].mxu0
        %1436 = vmatprep.mubr.f32.mxu0 0.0
        %1437 = vmatmul.mubr.f32.gmra.mrb[0].mxu0 %v1362
        %v1438 = vpop.f32.mrb[0].mxu0
        %v1439 = vadd.f32 0.0, %v1438
        %v1440 = vpop.f32.mrb[0].mxu0
        %1441 = vmatprep.mubr.f32.mxu0 0.0
        %1442 = vmatmul.mubr.f32.gmra.mrb[0].mxu0 %v1365
        %v1443 = vpop.f32.mrb[0].mxu0
        %v1444 = vadd.f32 0.0, %v1443
        %v1445 = vpop.f32.mrb[0].mxu0
        %1446 = vdwg.mxu0
        %v1447 = vmul.f32 %v1156, %v1434
        %v1448 = vmul.f32 %v1157, %v1439
        %v1449 = vmul.f32 %v1158, %v1444
        %v1450 = vadd.f32 %v1355, %v1447
        %v1451 = vadd.f32 %v1356, %v1448
        %v1452 = vadd.f32 %v1357, %v1449
        %v1453 = vld [vmem:[%s574] sm:$0xff]
        %v1454 = vld [vmem:[%s574 + $0x8] sm:$0xff]
        %v1455 = vld [vmem:[%s574 + $0x10] sm:$0xff]
        %1456 = vmatprep.subr.mxu0 0.0
        %1457 = vmatpush1.msra.mxu0 %v756
        %1458 = vmatprep.subr.mxu0 0.0
        %1459 = vmatpush1.msra.mxu0 %v757
        %1460 = vmatprep.subr.mxu0 0.0
        %1461 = vmatpush1.msra.mxu0 %v758
        %1462 = vmatprep.subr.mxu0 0.0
        %1463 = vmatpush1.msra.mxu0 %v759
        %1464 = vmatprep.subr.mxu0 0.0
        %1465 = vmatpush1.msra.mxu0 %v760
        %1466 = vmatprep.subr.mxu0 0.0
        %1467 = vmatpush1.msra.mxu0 %v761
        %1468 = vmatprep.subr.mxu0 0.0
        %1469 = vmatpush1.msra.mxu0 %v762
        %1470 = vmatprep.subr.mxu0 0.0
        %1471 = vmatpush1.msra.mxu0 %v763
        %1472 = vmatprep.subr.mxu0 0.0
        %1473 = vmatpush1.msra.mxu0 %v764
        %1474 = vmatprep.subr.mxu0 0.0
        %1475 = vmatpush1.msra.mxu0 %v765
        %1476 = vmatprep.subr.mxu0 0.0
        %1477 = vmatpush1.msra.mxu0 %v766
        %1478 = vmatprep.subr.mxu0 0.0
        %1479 = vmatpush1.msra.mxu0 %v767
        %1480 = vmatprep.subr.mxu0 0.0
        %1481 = vmatpush1.msra.mxu0 %v768
        %1482 = vmatprep.subr.mxu0 0.0
        %1483 = vmatpush1.msra.mxu0 %v769
        %1484 = vmatprep.subr.mxu0 0.0
        %1485 = vmatpush1.msra.mxu0 %v770
        %1486 = vmatprep.subr.mxu0 0.0
        %1487 = vmatpush1.msra.mxu0 %v771
        %1488 = vmatprep.subr.mxu0 0.0
        %1489 = vmatpush1.msra.mxu0 0.0
        %1490 = vmatprep.subr.mxu0 0.0
        %1491 = vmatpush1.msra.mxu0 0.0
        %1492 = vmatprep.subr.mxu0 0.0
        %1493 = vmatpush1.msra.mxu0 0.0
        %1494 = vmatprep.subr.mxu0 0.0
        %1495 = vmatpush1.msra.mxu0 0.0
        %1496 = vmatprep.subr.mxu0 0.0
        %1497 = vmatpush1.msra.mxu0 0.0
        %1498 = vmatprep.subr.mxu0 0.0
        %1499 = vmatpush1.msra.mxu0 0.0
        %1500 = vmatprep.subr.mxu0 0.0
        %1501 = vmatpush1.msra.mxu0 0.0
        %1502 = vmatprep.subr.mxu0 0.0
        %1503 = vmatpush1.msra.mxu0 0.0
        %1504 = vmatprep.subr.mxu0 0.0
        %1505 = vmatpush1.msra.mxu0 0.0
        %1506 = vmatprep.subr.mxu0 0.0
        %1507 = vmatpush1.msra.mxu0 0.0
        %1508 = vmatprep.subr.mxu0 0.0
        %1509 = vmatpush1.msra.mxu0 0.0
        %1510 = vmatprep.subr.mxu0 0.0
        %1511 = vmatpush1.msra.mxu0 0.0
        %1512 = vmatprep.subr.mxu0 0.0
        %1513 = vmatpush1.msra.mxu0 0.0
        %1514 = vmatprep.subr.mxu0 0.0
        %1515 = vmatpush1.msra.mxu0 0.0
        %1516 = vmatprep.subr.mxu0 0.0
        %1517 = vmatpush1.msra.mxu0 0.0
        %1518 = vmatprep.subr.mxu0 0.0
        %1519 = vmatpush1.msra.mxu0 0.0
        %1520 = vmatprep.mubr.f32.mxu0 0.0
        %1521 = vmatmul.mubr.f32.gmra.mrb[0].mxu0 %v1453
        %v1522 = vpop.f32.mrb[0].mxu0
        %v1523 = vadd.f32 %v776, %v1522
        %v1524 = vpop.f32.mrb[0].mxu0
        %1525 = vmatprep.mubr.f32.mxu0 0.0
        %1526 = vmatmul.mubr.f32.gmra.mrb[0].mxu0 %v1454
        %v1527 = vpop.f32.mrb[0].mxu0
        %v1528 = vadd.f32 %v776, %v1527
        %v1529 = vpop.f32.mrb[0].mxu0
        %1530 = vmatprep.mubr.f32.mxu0 0.0
        %1531 = vmatmul.mubr.f32.gmra.mrb[0].mxu0 %v1455
        %v1532 = vpop.f32.mrb[0].mxu0
        %v1533 = vadd.f32 %v776, %v1532
        %v1534 = vpop.f32.mrb[0].mxu0
        %1535 = vdwg.mxu0
        %v1536 = vmax.f32 %v1239, %v1523
        %v1537 = vmax.f32 %v1240, %v1528
        %v1538 = vmax.f32 %v1241, %v1533
        %v1539 = vsub.f32 %v1239, %v1536
        %v1540 = vsub.f32 %v1240, %v1537
        %v1541 = vsub.f32 %v1241, %v1538
        %v1542 = vmul.f32 %v1539, 1.442695
        %v1543 = vpow.pop %v1542
        %v1544 = vmul.f32 %v1540, 1.442695
        %v1545 = vpow.pop %v1544
        %v1546 = vmul.f32 %v1541, 1.442695
        %v1547 = vpow.pop %v1546
        %v1548 = vsub.f32 %v1523, %v1536
        %v1549 = vsub.f32 %v1528, %v1537
        %v1550 = vsub.f32 %v1533, %v1538
        %v1551 = vmul.f32 %v1548, 1.442695
        %v1552 = vpow.pop %v1551
        %v1553 = vmul.f32 %v1549, 1.442695
        %v1554 = vpow.pop %v1553
        %v1555 = vmul.f32 %v1550, 1.442695
        %v1556 = vpow.pop %v1555
        %v1557 = vmul.f32 %v1543, %v1263
        %v1558 = vmul.f32 %v1545, %v1264
        %v1559 = vmul.f32 %v1547, %v1265
        %v1560 = vadd.f32 %v1557, %v1552
        %v1561 = vadd.f32 %v1558, %v1554
        %v1562 = vadd.f32 %v1559, %v1556
        %v1564 = vsel %vm964, %v1543, 0
        %v1567 = vsel %vm964, %v1545, 0
        %v1570 = vsel %vm964, %v1547, 0
        %1572 = vmatprep.subr.mxu0 0.0
        %1573 = vmatpush1.msra.mxu0 %v976
        %1574 = vmatprep.subr.mxu0 0.0
        %1575 = vmatpush1.msra.mxu0 0.0
        %1576 = vmatprep.subr.mxu0 0.0
        %1577 = vmatpush1.msra.mxu0 0.0
        %1578 = vmatprep.subr.mxu0 0.0
        %1579 = vmatpush1.msra.mxu0 0.0
        %1580 = vmatprep.subr.mxu0 0.0
        %1581 = vmatpush1.msra.mxu0 0.0
        %1582 = vmatprep.subr.mxu0 0.0
        %1583 = vmatpush1.msra.mxu0 0.0
        %1584 = vmatprep.subr.mxu0 0.0
        %1585 = vmatpush1.msra.mxu0 0.0
        %1586 = vmatprep.subr.mxu0 0.0
        %1587 = vmatpush1.msra.mxu0 0.0
        %1588 = vmatprep.subr.mxu0 0.0
        %1589 = vmatpush1.msra.mxu0 0.0
        %1590 = vmatprep.subr.mxu0 0.0
        %1591 = vmatpush1.msra.mxu0 0.0
        %1592 = vmatprep.subr.mxu0 0.0
        %1593 = vmatpush1.msra.mxu0 0.0
        %1594 = vmatprep.subr.mxu0 0.0
        %1595 = vmatpush1.msra.mxu0 0.0
        %1596 = vmatprep.subr.mxu0 0.0
        %1597 = vmatpush1.msra.mxu0 0.0
        %1598 = vmatprep.subr.mxu0 0.0
        %1599 = vmatpush1.msra.mxu0 0.0
        %1600 = vmatprep.subr.mxu0 0.0
        %1601 = vmatpush1.msra.mxu0 0.0
        %1602 = vmatprep.subr.mxu0 0.0
        %1603 = vmatpush1.msra.mxu0 0.0
        %1604 = vmatprep.subr.mxu0 0.0
        %1605 = vmatpush1.msra.mxu0 0.0
        %1606 = vmatprep.subr.mxu0 0.0
        %1607 = vmatpush1.msra.mxu0 0.0
        %1608 = vmatprep.subr.mxu0 0.0
        %1609 = vmatpush1.msra.mxu0 0.0
        %1610 = vmatprep.subr.mxu0 0.0
        %1611 = vmatpush1.msra.mxu0 0.0
        %1612 = vmatprep.subr.mxu0 0.0
        %1613 = vmatpush1.msra.mxu0 0.0
        %1614 = vmatprep.subr.mxu0 0.0
        %1615 = vmatpush1.msra.mxu0 0.0
        %1616 = vmatprep.subr.mxu0 0.0
        %1617 = vmatpush1.msra.mxu0 0.0
        %1618 = vmatprep.subr.mxu0 0.0
        %1619 = vmatpush1.msra.mxu0 0.0
        %1620 = vmatprep.subr.mxu0 0.0
        %1621 = vmatpush1.msra.mxu0 0.0
        %1622 = vmatprep.subr.mxu0 0.0
        %1623 = vmatpush1.msra.mxu0 0.0
        %1624 = vmatprep.subr.mxu0 0.0
        %1625 = vmatpush1.msra.mxu0 0.0
        %1626 = vmatprep.subr.mxu0 0.0
        %1627 = vmatpush1.msra.mxu0 0.0
        %1628 = vmatprep.subr.mxu0 0.0
        %1629 = vmatpush1.msra.mxu0 0.0
        %1630 = vmatprep.subr.mxu0 0.0
        %1631 = vmatpush1.msra.mxu0 0.0
        %1632 = vmatprep.subr.mxu0 0.0
        %1633 = vmatpush1.msra.mxu0 0.0
        %1634 = vmatprep.subr.mxu0 0.0
        %1635 = vmatpush1.msra.mxu0 0.0
        %1636 = vmatprep.mubr.f32.mxu0 0.0
        %1637 = vmatmul.mubr.f32.gmra.mrb[0].mxu0 %v1564
        %v1638 = vpop.f32.mrb[0].mxu0
        %v1639 = vadd.f32 0.0, %v1638
        %v1640 = vpop.f32.mrb[0].mxu0
        %1641 = vmatprep.mubr.f32.mxu0 0.0
        %1642 = vmatmul.mubr.f32.gmra.mrb[0].mxu0 %v1567
        %v1643 = vpop.f32.mrb[0].mxu0
        %v1644 = vadd.f32 0.0, %v1643
        %v1645 = vpop.f32.mrb[0].mxu0
        %1646 = vmatprep.mubr.f32.mxu0 0.0
        %1647 = vmatmul.mubr.f32.gmra.mrb[0].mxu0 %v1570
        %v1648 = vpop.f32.mrb[0].mxu0
        %v1649 = vadd.f32 0.0, %v1648
        %v1650 = vpop.f32.mrb[0].mxu0
        %1651 = vdwg.mxu0
        %v1652 = vmul.f32 %v1450, %v1639
        %v1653 = vmul.f32 %v1451, %v1644
        %v1654 = vmul.f32 %v1452, %v1649
        %v1656 = vsel %vm964, %v1552, 0
        %v1659 = vsel %vm964, %v1554, 0
        %v1662 = vsel %vm964, %v1556, 0
        %1664 = vmatprep.subr.mxu0 0.0
        %1665 = vmatpush1.msra.mxu0 %v976
        %1666 = vmatprep.subr.mxu0 0.0
        %1667 = vmatpush1.msra.mxu0 0.0
        %1668 = vmatprep.subr.mxu0 0.0
        %1669 = vmatpush1.msra.mxu0 0.0
        %1670 = vmatprep.subr.mxu0 0.0
        %1671 = vmatpush1.msra.mxu0 0.0
        %1672 = vmatprep.subr.mxu0 0.0
        %1673 = vmatpush1.msra.mxu0 0.0
        %1674 = vmatprep.subr.mxu0 0.0
        %1675 = vmatpush1.msra.mxu0 0.0
        %1676 = vmatprep.subr.mxu0 0.0
        %1677 = vmatpush1.msra.mxu0 0.0
        %1678 = vmatprep.subr.mxu0 0.0
        %1679 = vmatpush1.msra.mxu0 0.0
        %1680 = vmatprep.subr.mxu0 0.0
        %1681 = vmatpush1.msra.mxu0 0.0
        %1682 = vmatprep.subr.mxu0 0.0
        %1683 = vmatpush1.msra.mxu0 0.0
        %1684 = vmatprep.subr.mxu0 0.0
        %1685 = vmatpush1.msra.mxu0 0.0
        %1686 = vmatprep.subr.mxu0 0.0
        %1687 = vmatpush1.msra.mxu0 0.0
        %1688 = vmatprep.subr.mxu0 0.0
        %1689 = vmatpush1.msra.mxu0 0.0
        %1690 = vmatprep.subr.mxu0 0.0
        %1691 = vmatpush1.msra.mxu0 0.0
        %1692 = vmatprep.subr.mxu0 0.0
        %1693 = vmatpush1.msra.mxu0 0.0
        %1694 = vmatprep.subr.mxu0 0.0
        %1695 = vmatpush1.msra.mxu0 0.0
        %1696 = vmatprep.subr.mxu0 0.0
        %1697 = vmatpush1.msra.mxu0 0.0
        %1698 = vmatprep.subr.mxu0 0.0
        %1699 = vmatpush1.msra.mxu0 0.0
        %1700 = vmatprep.subr.mxu0 0.0
        %1701 = vmatpush1.msra.mxu0 0.0
        %1702 = vmatprep.subr.mxu0 0.0
        %1703 = vmatpush1.msra.mxu0 0.0
        %1704 = vmatprep.subr.mxu0 0.0
        %1705 = vmatpush1.msra.mxu0 0.0
        %1706 = vmatprep.subr.mxu0 0.0
        %1707 = vmatpush1.msra.mxu0 0.0
        %1708 = vmatprep.subr.mxu0 0.0
        %1709 = vmatpush1.msra.mxu0 0.0
        %1710 = vmatprep.subr.mxu0 0.0
        %1711 = vmatpush1.msra.mxu0 0.0
        %1712 = vmatprep.subr.mxu0 0.0
        %1713 = vmatpush1.msra.mxu0 0.0
        %1714 = vmatprep.subr.mxu0 0.0
        %1715 = vmatpush1.msra.mxu0 0.0
        %1716 = vmatprep.subr.mxu0 0.0
        %1717 = vmatpush1.msra.mxu0 0.0
        %1718 = vmatprep.subr.mxu0 0.0
        %1719 = vmatpush1.msra.mxu0 0.0
        %1720 = vmatprep.subr.mxu0 0.0
        %1721 = vmatpush1.msra.mxu0 0.0
        %1722 = vmatprep.subr.mxu0 0.0
        %1723 = vmatpush1.msra.mxu0 0.0
        %1724 = vmatprep.subr.mxu0 0.0
        %1725 = vmatpush1.msra.mxu0 0.0
        %1726 = vmatprep.subr.mxu0 0.0
        %1727 = vmatpush1.msra.mxu0 0.0
        %1728 = vmatprep.mubr.f32.mxu0 0.0
        %1729 = vmatmul.mubr.f32.gmra.mrb[0].mxu0 %v1656
        %v1730 = vpop.f32.mrb[0].mxu0
        %v1731 = vadd.f32 0.0, %v1730
        %v1732 = vpop.f32.mrb[0].mxu0
        %1733 = vmatprep.mubr.f32.mxu0 0.0
        %1734 = vmatmul.mubr.f32.gmra.mrb[0].mxu0 %v1659
        %v1735 = vpop.f32.mrb[0].mxu0
        %v1736 = vadd.f32 0.0, %v1735
        %v1737 = vpop.f32.mrb[0].mxu0
        %1738 = vmatprep.mubr.f32.mxu0 0.0
        %1739 = vmatmul.mubr.f32.gmra.mrb[0].mxu0 %v1662
        %v1740 = vpop.f32.mrb[0].mxu0
        %v1741 = vadd.f32 0.0, %v1740
        %v1742 = vpop.f32.mrb[0].mxu0
        %1743 = vdwg.mxu0
        %v1744 = vmul.f32 %v1453, %v1731
        %v1745 = vmul.f32 %v1454, %v1736
        %v1746 = vmul.f32 %v1455, %v1741
        %v1747 = vadd.f32 %v1652, %v1744
        %v1748 = vadd.f32 %v1653, %v1745
        %v1749 = vadd.f32 %v1654, %v1746
        %v1750 = vld [vmem:[%s583] sm:$0xff]
        %v1751 = vld [vmem:[%s583 + $0x8] sm:$0xff]
        %v1752 = vld [vmem:[%s583 + $0x10] sm:$0xff]
        %1753 = vmatprep.subr.mxu0 0.0
        %1754 = vmatpush1.msra.mxu0 %v756
        %1755 = vmatprep.subr.mxu0 0.0
        %1756 = vmatpush1.msra.mxu0 %v757
        %1757 = vmatprep.subr.mxu0 0.0
        %1758 = vmatpush1.msra.mxu0 %v758
        %1759 = vmatprep.subr.mxu0 0.0
        %1760 = vmatpush1.msra.mxu0 %v759
        %1761 = vmatprep.subr.mxu0 0.0
        %1762 = vmatpush1.msra.mxu0 %v760
        %1763 = vmatprep.subr.mxu0 0.0
        %1764 = vmatpush1.msra.mxu0 %v761
        %1765 = vmatprep.subr.mxu0 0.0
        %1766 = vmatpush1.msra.mxu0 %v762
        %1767 = vmatprep.subr.mxu0 0.0
        %1768 = vmatpush1.msra.mxu0 %v763
        %1769 = vmatprep.subr.mxu0 0.0
        %1770 = vmatpush1.msra.mxu0 %v764
        %1771 = vmatprep.subr.mxu0 0.0
        %1772 = vmatpush1.msra.mxu0 %v765
        %1773 = vmatprep.subr.mxu0 0.0
        %1774 = vmatpush1.msra.mxu0 %v766
        %1775 = vmatprep.subr.mxu0 0.0
        %1776 = vmatpush1.msra.mxu0 %v767
        %1777 = vmatprep.subr.mxu0 0.0
        %1778 = vmatpush1.msra.mxu0 %v768
        %1779 = vmatprep.subr.mxu0 0.0
        %1780 = vmatpush1.msra.mxu0 %v769
        %1781 = vmatprep.subr.mxu0 0.0
        %1782 = vmatpush1.msra.mxu0 %v770
        %1783 = vmatprep.subr.mxu0 0.0
        %1784 = vmatpush1.msra.mxu0 %v771
        %1785 = vmatprep.subr.mxu0 0.0
        %1786 = vmatpush1.msra.mxu0 0.0
        %1787 = vmatprep.subr.mxu0 0.0
        %1788 = vmatpush1.msra.mxu0 0.0
        %1789 = vmatprep.subr.mxu0 0.0
        %1790 = vmatpush1.msra.mxu0 0.0
        %1791 = vmatprep.subr.mxu0 0.0
        %1792 = vmatpush1.msra.mxu0 0.0
        %1793 = vmatprep.subr.mxu0 0.0
        %1794 = vmatpush1.msra.mxu0 0.0
        %1795 = vmatprep.subr.mxu0 0.0
        %1796 = vmatpush1.msra.mxu0 0.0
        %1797 = vmatprep.subr.mxu0 0.0
        %1798 = vmatpush1.msra.mxu0 0.0
        %1799 = vmatprep.subr.mxu0 0.0
        %1800 = vmatpush1.msra.mxu0 0.0
        %1801 = vmatprep.subr.mxu0 0.0
        %1802 = vmatpush1.msra.mxu0 0.0
        %1803 = vmatprep.subr.mxu0 0.0
        %1804 = vmatpush1.msra.mxu0 0.0
        %1805 = vmatprep.subr.mxu0 0.0
        %1806 = vmatpush1.msra.mxu0 0.0
        %1807 = vmatprep.subr.mxu0 0.0
        %1808 = vmatpush1.msra.mxu0 0.0
        %1809 = vmatprep.subr.mxu0 0.0
        %1810 = vmatpush1.msra.mxu0 0.0
        %1811 = vmatprep.subr.mxu0 0.0
        %1812 = vmatpush1.msra.mxu0 0.0
        %1813 = vmatprep.subr.mxu0 0.0
        %1814 = vmatpush1.msra.mxu0 0.0
        %1815 = vmatprep.subr.mxu0 0.0
        %1816 = vmatpush1.msra.mxu0 0.0
        %1817 = vmatprep.mubr.f32.mxu0 0.0
        %1818 = vmatmul.mubr.f32.gmra.mrb[0].mxu0 %v1750
        %v1819 = vpop.f32.mrb[0].mxu0
        %v1820 = vadd.f32 %v776, %v1819
        %v1821 = vpop.f32.mrb[0].mxu0
        %1822 = vmatprep.mubr.f32.mxu0 0.0
        %1823 = vmatmul.mubr.f32.gmra.mrb[0].mxu0 %v1751
        %v1824 = vpop.f32.mrb[0].mxu0
        %v1825 = vadd.f32 %v776, %v1824
        %v1826 = vpop.f32.mrb[0].mxu0
        %1827 = vmatprep.mubr.f32.mxu0 0.0
        %1828 = vmatmul.mubr.f32.gmra.mrb[0].mxu0 %v1752
        %v1829 = vpop.f32.mrb[0].mxu0
        %v1830 = vadd.f32 %v776, %v1829
        %v1831 = vpop.f32.mrb[0].mxu0
        %1832 = vdwg.mxu0
        %v1833 = vmax.f32 %v1536, %v1820
        %v1834 = vmax.f32 %v1537, %v1825
        %v1835 = vmax.f32 %v1538, %v1830
        %v1836 = vsub.f32 %v1536, %v1833
        %v1837 = vsub.f32 %v1537, %v1834
        %v1838 = vsub.f32 %v1538, %v1835
        %v1839 = vmul.f32 %v1836, 1.442695
        %v1840 = vpow.pop %v1839
        %v1841 = vmul.f32 %v1837, 1.442695
        %v1842 = vpow.pop %v1841
        %v1843 = vmul.f32 %v1838, 1.442695
        %v1844 = vpow.pop %v1843
        %v1845 = vsub.f32 %v1820, %v1833
        %v1846 = vsub.f32 %v1825, %v1834
        %v1847 = vsub.f32 %v1830, %v1835
        %v1848 = vmul.f32 %v1845, 1.442695
        %v1849 = vpow.pop %v1848
        %v1850 = vmul.f32 %v1846, 1.442695
        %v1851 = vpow.pop %v1850
        %v1852 = vmul.f32 %v1847, 1.442695
        %v1853 = vpow.pop %v1852
        %v1854 = vmul.f32 %v1840, %v1560
        %v1855 = vmul.f32 %v1842, %v1561
        %v1856 = vmul.f32 %v1844, %v1562
        %v1857 = vadd.f32 %v1854, %v1849
        %v1858 = vadd.f32 %v1855, %v1851
        %v1859 = vadd.f32 %v1856, %v1853
        %v1861 = vsel %vm964, %v1840, 0
        %v1864 = vsel %vm964, %v1842, 0
        %v1867 = vsel %vm964, %v1844, 0
        %1869 = vmatprep.subr.mxu0 0.0
        %1870 = vmatpush1.msra.mxu0 %v976
        %1871 = vmatprep.subr.mxu0 0.0
        %1872 = vmatpush1.msra.mxu0 0.0
        %1873 = vmatprep.subr.mxu0 0.0
        %1874 = vmatpush1.msra.mxu0 0.0
        %1875 = vmatprep.subr.mxu0 0.0
        %1876 = vmatpush1.msra.mxu0 0.0
        %1877 = vmatprep.subr.mxu0 0.0
        %1878 = vmatpush1.msra.mxu0 0.0
        %1879 = vmatprep.subr.mxu0 0.0
        %1880 = vmatpush1.msra.mxu0 0.0
        %1881 = vmatprep.subr.mxu0 0.0
        %1882 = vmatpush1.msra.mxu0 0.0
        %1883 = vmatprep.subr.mxu0 0.0
        %1884 = vmatpush1.msra.mxu0 0.0
        %1885 = vmatprep.subr.mxu0 0.0
        %1886 = vmatpush1.msra.mxu0 0.0
        %1887 = vmatprep.subr.mxu0 0.0
        %1888 = vmatpush1.msra.mxu0 0.0
        %1889 = vmatprep.subr.mxu0 0.0
        %1890 = vmatpush1.msra.mxu0 0.0
        %1891 = vmatprep.subr.mxu0 0.0
        %1892 = vmatpush1.msra.mxu0 0.0
        %1893 = vmatprep.subr.mxu0 0.0
        %1894 = vmatpush1.msra.mxu0 0.0
        %1895 = vmatprep.subr.mxu0 0.0
        %1896 = vmatpush1.msra.mxu0 0.0
        %1897 = vmatprep.subr.mxu0 0.0
        %1898 = vmatpush1.msra.mxu0 0.0
        %1899 = vmatprep.subr.mxu0 0.0
        %1900 = vmatpush1.msra.mxu0 0.0
        %1901 = vmatprep.subr.mxu0 0.0
        %1902 = vmatpush1.msra.mxu0 0.0
        %1903 = vmatprep.subr.mxu0 0.0
        %1904 = vmatpush1.msra.mxu0 0.0
        %1905 = vmatprep.subr.mxu0 0.0
        %1906 = vmatpush1.msra.mxu0 0.0
        %1907 = vmatprep.subr.mxu0 0.0
        %1908 = vmatpush1.msra.mxu0 0.0
        %1909 = vmatprep.subr.mxu0 0.0
        %1910 = vmatpush1.msra.mxu0 0.0
        %1911 = vmatprep.subr.mxu0 0.0
        %1912 = vmatpush1.msra.mxu0 0.0
        %1913 = vmatprep.subr.mxu0 0.0
        %1914 = vmatpush1.msra.mxu0 0.0
        %1915 = vmatprep.subr.mxu0 0.0
        %1916 = vmatpush1.msra.mxu0 0.0
        %1917 = vmatprep.subr.mxu0 0.0
        %1918 = vmatpush1.msra.mxu0 0.0
        %1919 = vmatprep.subr.mxu0 0.0
        %1920 = vmatpush1.msra.mxu0 0.0
        %1921 = vmatprep.subr.mxu0 0.0
        %1922 = vmatpush1.msra.mxu0 0.0
        %1923 = vmatprep.subr.mxu0 0.0
        %1924 = vmatpush1.msra.mxu0 0.0
        %1925 = vmatprep.subr.mxu0 0.0
        %1926 = vmatpush1.msra.mxu0 0.0
        %1927 = vmatprep.subr.mxu0 0.0
        %1928 = vmatpush1.msra.mxu0 0.0
        %1929 = vmatprep.subr.mxu0 0.0
        %1930 = vmatpush1.msra.mxu0 0.0
        %1931 = vmatprep.subr.mxu0 0.0
        %1932 = vmatpush1.msra.mxu0 0.0
        %1933 = vmatprep.mubr.f32.mxu0 0.0
        %1934 = vmatmul.mubr.f32.gmra.mrb[0].mxu0 %v1861
        %v1935 = vpop.f32.mrb[0].mxu0
        %v1936 = vadd.f32 0.0, %v1935
        %v1937 = vpop.f32.mrb[0].mxu0
        %1938 = vmatprep.mubr.f32.mxu0 0.0
        %1939 = vmatmul.mubr.f32.gmra.mrb[0].mxu0 %v1864
        %v1940 = vpop.f32.mrb[0].mxu0
        %v1941 = vadd.f32 0.0, %v1940
        %v1942 = vpop.f32.mrb[0].mxu0
        %1943 = vmatprep.mubr.f32.mxu0 0.0
        %1944 = vmatmul.mubr.f32.gmra.mrb[0].mxu0 %v1867
        %v1945 = vpop.f32.mrb[0].mxu0
        %v1946 = vadd.f32 0.0, %v1945
        %v1947 = vpop.f32.mrb[0].mxu0
        %1948 = vdwg.mxu0
        %v1949 = vmul.f32 %v1747, %v1936
        %v1950 = vmul.f32 %v1748, %v1941
        %v1951 = vmul.f32 %v1749, %v1946
        %v1953 = vsel %vm964, %v1849, 0
        %v1956 = vsel %vm964, %v1851, 0
        %v1959 = vsel %vm964, %v1853, 0
        %1961 = vmatprep.subr.mxu0 0.0
        %1962 = vmatpush1.msra.mxu0 %v976
        %1963 = vmatprep.subr.mxu0 0.0
        %1964 = vmatpush1.msra.mxu0 0.0
        %1965 = vmatprep.subr.mxu0 0.0
        %1966 = vmatpush1.msra.mxu0 0.0
        %1967 = vmatprep.subr.mxu0 0.0
        %1968 = vmatpush1.msra.mxu0 0.0
        %1969 = vmatprep.subr.mxu0 0.0
        %1970 = vmatpush1.msra.mxu0 0.0
        %1971 = vmatprep.subr.mxu0 0.0
        %1972 = vmatpush1.msra.mxu0 0.0
        %1973 = vmatprep.subr.mxu0 0.0
        %1974 = vmatpush1.msra.mxu0 0.0
        %1975 = vmatprep.subr.mxu0 0.0
        %1976 = vmatpush1.msra.mxu0 0.0
        %1977 = vmatprep.subr.mxu0 0.0
        %1978 = vmatpush1.msra.mxu0 0.0
        %1979 = vmatprep.subr.mxu0 0.0
        %1980 = vmatpush1.msra.mxu0 0.0
        %1981 = vmatprep.subr.mxu0 0.0
        %1982 = vmatpush1.msra.mxu0 0.0
        %1983 = vmatprep.subr.mxu0 0.0
        %1984 = vmatpush1.msra.mxu0 0.0
        %1985 = vmatprep.subr.mxu0 0.0
        %1986 = vmatpush1.msra.mxu0 0.0
        %1987 = vmatprep.subr.mxu0 0.0
        %1988 = vmatpush1.msra.mxu0 0.0
        %1989 = vmatprep.subr.mxu0 0.0
        %1990 = vmatpush1.msra.mxu0 0.0
        %1991 = vmatprep.subr.mxu0 0.0
        %1992 = vmatpush1.msra.mxu0 0.0
        %1993 = vmatprep.subr.mxu0 0.0
        %1994 = vmatpush1.msra.mxu0 0.0
        %1995 = vmatprep.subr.mxu0 0.0
        %1996 = vmatpush1.msra.mxu0 0.0
        %1997 = vmatprep.subr.mxu0 0.0
        %1998 = vmatpush1.msra.mxu0 0.0
        %1999 = vmatprep.subr.mxu0 0.0
        %2000 = vmatpush1.msra.mxu0 0.0
        %2001 = vmatprep.subr.mxu0 0.0
        %2002 = vmatpush1.msra.mxu0 0.0
        %2003 = vmatprep.subr.mxu0 0.0
        %2004 = vmatpush1.msra.mxu0 0.0
        %2005 = vmatprep.subr.mxu0 0.0
        %2006 = vmatpush1.msra.mxu0 0.0
        %2007 = vmatprep.subr.mxu0 0.0
        %2008 = vmatpush1.msra.mxu0 0.0
        %2009 = vmatprep.subr.mxu0 0.0
        %2010 = vmatpush1.msra.mxu0 0.0
        %2011 = vmatprep.subr.mxu0 0.0
        %2012 = vmatpush1.msra.mxu0 0.0
        %2013 = vmatprep.subr.mxu0 0.0
        %2014 = vmatpush1.msra.mxu0 0.0
        %2015 = vmatprep.subr.mxu0 0.0
        %2016 = vmatpush1.msra.mxu0 0.0
        %2017 = vmatprep.subr.mxu0 0.0
        %2018 = vmatpush1.msra.mxu0 0.0
        %2019 = vmatprep.subr.mxu0 0.0
        %2020 = vmatpush1.msra.mxu0 0.0
        %2021 = vmatprep.subr.mxu0 0.0
        %2022 = vmatpush1.msra.mxu0 0.0
        %2023 = vmatprep.subr.mxu0 0.0
        %2024 = vmatpush1.msra.mxu0 0.0
        %2025 = vmatprep.mubr.f32.mxu0 0.0
        %2026 = vmatmul.mubr.f32.gmra.mrb[0].mxu0 %v1953
        %v2027 = vpop.f32.mrb[0].mxu0
        %v2028 = vadd.f32 0.0, %v2027
        %v2029 = vpop.f32.mrb[0].mxu0
        %2030 = vmatprep.mubr.f32.mxu0 0.0
        %2031 = vmatmul.mubr.f32.gmra.mrb[0].mxu0 %v1956
        %v2032 = vpop.f32.mrb[0].mxu0
        %v2033 = vadd.f32 0.0, %v2032
        %v2034 = vpop.f32.mrb[0].mxu0
        %2035 = vmatprep.mubr.f32.mxu0 0.0
        %2036 = vmatmul.mubr.f32.gmra.mrb[0].mxu0 %v1959
        %v2037 = vpop.f32.mrb[0].mxu0
        %v2038 = vadd.f32 0.0, %v2037
        %v2039 = vpop.f32.mrb[0].mxu0
        %2040 = vdwg.mxu0
        %v2041 = vmul.f32 %v1750, %v2028
        %v2042 = vmul.f32 %v1751, %v2033
        %v2043 = vmul.f32 %v1752, %v2038
        %v2044 = vadd.f32 %v1949, %v2041
        %v2045 = vadd.f32 %v1950, %v2042
        %v2046 = vadd.f32 %v1951, %v2043
        %v2047 = vld [vmem:[%s592] sm:$0xff]
        %v2048 = vld [vmem:[%s592 + $0x8] sm:$0xff]
        %v2049 = vld [vmem:[%s592 + $0x10] sm:$0xff]
        %2050 = vmatprep.subr.mxu0 0.0
        %2051 = vmatpush1.msra.mxu0 %v756
        %2052 = vmatprep.subr.mxu0 0.0
        %2053 = vmatpush1.msra.mxu0 %v757
        %2054 = vmatprep.subr.mxu0 0.0
        %2055 = vmatpush1.msra.mxu0 %v758
        %2056 = vmatprep.subr.mxu0 0.0
        %2057 = vmatpush1.msra.mxu0 %v759
        %2058 = vmatprep.subr.mxu0 0.0
        %2059 = vmatpush1.msra.mxu0 %v760
        %2060 = vmatprep.subr.mxu0 0.0
        %2061 = vmatpush1.msra.mxu0 %v761
        %2062 = vmatprep.subr.mxu0 0.0
        %2063 = vmatpush1.msra.mxu0 %v762
        %2064 = vmatprep.subr.mxu0 0.0
        %2065 = vmatpush1.msra.mxu0 %v763
        %2066 = vmatprep.subr.mxu0 0.0
        %2067 = vmatpush1.msra.mxu0 %v764
        %2068 = vmatprep.subr.mxu0 0.0
        %2069 = vmatpush1.msra.mxu0 %v765
        %2070 = vmatprep.subr.mxu0 0.0
        %2071 = vmatpush1.msra.mxu0 %v766
        %2072 = vmatprep.subr.mxu0 0.0
        %2073 = vmatpush1.msra.mxu0 %v767
        %2074 = vmatprep.subr.mxu0 0.0
        %2075 = vmatpush1.msra.mxu0 %v768
        %2076 = vmatprep.subr.mxu0 0.0
        %2077 = vmatpush1.msra.mxu0 %v769
        %2078 = vmatprep.subr.mxu0 0.0
        %2079 = vmatpush1.msra.mxu0 %v770
        %2080 = vmatprep.subr.mxu0 0.0
        %2081 = vmatpush1.msra.mxu0 %v771
        %2082 = vmatprep.subr.mxu0 0.0
        %2083 = vmatpush1.msra.mxu0 0.0
        %2084 = vmatprep.subr.mxu0 0.0
        %2085 = vmatpush1.msra.mxu0 0.0
        %2086 = vmatprep.subr.mxu0 0.0
        %2087 = vmatpush1.msra.mxu0 0.0
        %2088 = vmatprep.subr.mxu0 0.0
        %2089 = vmatpush1.msra.mxu0 0.0
        %2090 = vmatprep.subr.mxu0 0.0
        %2091 = vmatpush1.msra.mxu0 0.0
        %2092 = vmatprep.subr.mxu0 0.0
        %2093 = vmatpush1.msra.mxu0 0.0
        %2094 = vmatprep.subr.mxu0 0.0
        %2095 = vmatpush1.msra.mxu0 0.0
        %2096 = vmatprep.subr.mxu0 0.0
        %2097 = vmatpush1.msra.mxu0 0.0
        %2098 = vmatprep.subr.mxu0 0.0
        %2099 = vmatpush1.msra.mxu0 0.0
        %2100 = vmatprep.subr.mxu0 0.0
        %2101 = vmatpush1.msra.mxu0 0.0
        %2102 = vmatprep.subr.mxu0 0.0
        %2103 = vmatpush1.msra.mxu0 0.0
        %2104 = vmatprep.subr.mxu0 0.0
        %2105 = vmatpush1.msra.mxu0 0.0
        %2106 = vmatprep.subr.mxu0 0.0
        %2107 = vmatpush1.msra.mxu0 0.0
        %2108 = vmatprep.subr.mxu0 0.0
        %2109 = vmatpush1.msra.mxu0 0.0
        %2110 = vmatprep.subr.mxu0 0.0
        %2111 = vmatpush1.msra.mxu0 0.0
        %2112 = vmatprep.subr.mxu0 0.0
        %2113 = vmatpush1.msra.mxu0 0.0
        %2114 = vmatprep.mubr.f32.mxu0 0.0
        %2115 = vmatmul.mubr.f32.gmra.mrb[0].mxu0 %v2047
        %v2116 = vpop.f32.mrb[0].mxu0
        %v2117 = vadd.f32 %v776, %v2116
        %v2118 = vpop.f32.mrb[0].mxu0
        %2119 = vmatprep.mubr.f32.mxu0 0.0
        %2120 = vmatmul.mubr.f32.gmra.mrb[0].mxu0 %v2048
        %v2121 = vpop.f32.mrb[0].mxu0
        %v2122 = vadd.f32 %v776, %v2121
        %v2123 = vpop.f32.mrb[0].mxu0
        %2124 = vmatprep.mubr.f32.mxu0 0.0
        %2125 = vmatmul.mubr.f32.gmra.mrb[0].mxu0 %v2049
        %v2126 = vpop.f32.mrb[0].mxu0
        %v2127 = vadd.f32 %v776, %v2126
        %v2128 = vpop.f32.mrb[0].mxu0
        %2129 = vdwg.mxu0
        %v2130 = vmax.f32 %v1833, %v2117
        %v2131 = vmax.f32 %v1834, %v2122
        %v2132 = vmax.f32 %v1835, %v2127
        %v2133 = vsub.f32 %v1833, %v2130
        %v2134 = vsub.f32 %v1834, %v2131
        %v2135 = vsub.f32 %v1835, %v2132
        %v2136 = vmul.f32 %v2133, 1.442695
        %v2137 = vpow.pop %v2136
        %v2138 = vmul.f32 %v2134, 1.442695
        %v2139 = vpow.pop %v2138
        %v2140 = vmul.f32 %v2135, 1.442695
        %v2141 = vpow.pop %v2140
        %v2142 = vsub.f32 %v2117, %v2130
        %v2143 = vsub.f32 %v2122, %v2131
        %v2144 = vsub.f32 %v2127, %v2132
        %v2145 = vmul.f32 %v2142, 1.442695
        %v2146 = vpow.pop %v2145
        %v2147 = vmul.f32 %v2143, 1.442695
        %v2148 = vpow.pop %v2147
        %v2149 = vmul.f32 %v2144, 1.442695
        %v2150 = vpow.pop %v2149
        %v2151 = vmul.f32 %v2137, %v1857
        %v2152 = vmul.f32 %v2139, %v1858
        %v2153 = vmul.f32 %v2141, %v1859
        %v2154 = vadd.f32 %v2151, %v2146
        %v2155 = vadd.f32 %v2152, %v2148
        %v2156 = vadd.f32 %v2153, %v2150
        %v2158 = vsel %vm964, %v2137, 0
        %v2161 = vsel %vm964, %v2139, 0
        %v2164 = vsel %vm964, %v2141, 0
        %2166 = vmatprep.subr.mxu0 0.0
        %2167 = vmatpush1.msra.mxu0 %v976
        %2168 = vmatprep.subr.mxu0 0.0
        %2169 = vmatpush1.msra.mxu0 0.0
        %2170 = vmatprep.subr.mxu0 0.0
        %2171 = vmatpush1.msra.mxu0 0.0
        %2172 = vmatprep.subr.mxu0 0.0
        %2173 = vmatpush1.msra.mxu0 0.0
        %2174 = vmatprep.subr.mxu0 0.0
        %2175 = vmatpush1.msra.mxu0 0.0
        %2176 = vmatprep.subr.mxu0 0.0
        %2177 = vmatpush1.msra.mxu0 0.0
        %2178 = vmatprep.subr.mxu0 0.0
        %2179 = vmatpush1.msra.mxu0 0.0
        %2180 = vmatprep.subr.mxu0 0.0
        %2181 = vmatpush1.msra.mxu0 0.0
        %2182 = vmatprep.subr.mxu0 0.0
        %2183 = vmatpush1.msra.mxu0 0.0
        %2184 = vmatprep.subr.mxu0 0.0
        %2185 = vmatpush1.msra.mxu0 0.0
        %2186 = vmatprep.subr.mxu0 0.0
        %2187 = vmatpush1.msra.mxu0 0.0
        %2188 = vmatprep.subr.mxu0 0.0
        %2189 = vmatpush1.msra.mxu0 0.0
        %2190 = vmatprep.subr.mxu0 0.0
        %2191 = vmatpush1.msra.mxu0 0.0
        %2192 = vmatprep.subr.mxu0 0.0
        %2193 = vmatpush1.msra.mxu0 0.0
        %2194 = vmatprep.subr.mxu0 0.0
        %2195 = vmatpush1.msra.mxu0 0.0
        %2196 = vmatprep.subr.mxu0 0.0
        %2197 = vmatpush1.msra.mxu0 0.0
        %2198 = vmatprep.subr.mxu0 0.0
        %2199 = vmatpush1.msra.mxu0 0.0
        %2200 = vmatprep.subr.mxu0 0.0
        %2201 = vmatpush1.msra.mxu0 0.0
        %2202 = vmatprep.subr.mxu0 0.0
        %2203 = vmatpush1.msra.mxu0 0.0
        %2204 = vmatprep.subr.mxu0 0.0
        %2205 = vmatpush1.msra.mxu0 0.0
        %2206 = vmatprep.subr.mxu0 0.0
        %2207 = vmatpush1.msra.mxu0 0.0
        %2208 = vmatprep.subr.mxu0 0.0
        %2209 = vmatpush1.msra.mxu0 0.0
        %2210 = vmatprep.subr.mxu0 0.0
        %2211 = vmatpush1.msra.mxu0 0.0
        %2212 = vmatprep.subr.mxu0 0.0
        %2213 = vmatpush1.msra.mxu0 0.0
        %2214 = vmatprep.subr.mxu0 0.0
        %2215 = vmatpush1.msra.mxu0 0.0
        %2216 = vmatprep.subr.mxu0 0.0
        %2217 = vmatpush1.msra.mxu0 0.0
        %2218 = vmatprep.subr.mxu0 0.0
        %2219 = vmatpush1.msra.mxu0 0.0
        %2220 = vmatprep.subr.mxu0 0.0
        %2221 = vmatpush1.msra.mxu0 0.0
        %2222 = vmatprep.subr.mxu0 0.0
        %2223 = vmatpush1.msra.mxu0 0.0
        %2224 = vmatprep.subr.mxu0 0.0
        %2225 = vmatpush1.msra.mxu0 0.0
        %2226 = vmatprep.subr.mxu0 0.0
        %2227 = vmatpush1.msra.mxu0 0.0
        %2228 = vmatprep.subr.mxu0 0.0
        %2229 = vmatpush1.msra.mxu0 0.0
        %2230 = vmatprep.mubr.f32.mxu0 0.0
        %2231 = vmatmul.mubr.f32.gmra.mrb[0].mxu0 %v2158
        %v2232 = vpop.f32.mrb[0].mxu0
        %v2233 = vadd.f32 0.0, %v2232
        %v2234 = vpop.f32.mrb[0].mxu0
        %2235 = vmatprep.mubr.f32.mxu0 0.0
        %2236 = vmatmul.mubr.f32.gmra.mrb[0].mxu0 %v2161
        %v2237 = vpop.f32.mrb[0].mxu0
        %v2238 = vadd.f32 0.0, %v2237
        %v2239 = vpop.f32.mrb[0].mxu0
        %2240 = vmatprep.mubr.f32.mxu0 0.0
        %2241 = vmatmul.mubr.f32.gmra.mrb[0].mxu0 %v2164
        %v2242 = vpop.f32.mrb[0].mxu0
        %v2243 = vadd.f32 0.0, %v2242
        %v2244 = vpop.f32.mrb[0].mxu0
        %2245 = vdwg.mxu0
        %v2246 = vmul.f32 %v2044, %v2233
        %v2247 = vmul.f32 %v2045, %v2238
        %v2248 = vmul.f32 %v2046, %v2243
        %v2250 = vsel %vm964, %v2146, 0
        %v2253 = vsel %vm964, %v2148, 0
        %v2256 = vsel %vm964, %v2150, 0
        %2258 = vmatprep.subr.mxu0 0.0
        %2259 = vmatpush1.msra.mxu0 %v976
        %2260 = vmatprep.subr.mxu0 0.0
        %2261 = vmatpush1.msra.mxu0 0.0
        %2262 = vmatprep.subr.mxu0 0.0
        %2263 = vmatpush1.msra.mxu0 0.0
        %2264 = vmatprep.subr.mxu0 0.0
        %2265 = vmatpush1.msra.mxu0 0.0
        %2266 = vmatprep.subr.mxu0 0.0
        %2267 = vmatpush1.msra.mxu0 0.0
        %2268 = vmatprep.subr.mxu0 0.0
        %2269 = vmatpush1.msra.mxu0 0.0
        %2270 = vmatprep.subr.mxu0 0.0
        %2271 = vmatpush1.msra.mxu0 0.0
        %2272 = vmatprep.subr.mxu0 0.0
        %2273 = vmatpush1.msra.mxu0 0.0
        %2274 = vmatprep.subr.mxu0 0.0
        %2275 = vmatpush1.msra.mxu0 0.0
        %2276 = vmatprep.subr.mxu0 0.0
        %2277 = vmatpush1.msra.mxu0 0.0
        %2278 = vmatprep.subr.mxu0 0.0
        %2279 = vmatpush1.msra.mxu0 0.0
        %2280 = vmatprep.subr.mxu0 0.0
        %2281 = vmatpush1.msra.mxu0 0.0
        %2282 = vmatprep.subr.mxu0 0.0
        %2283 = vmatpush1.msra.mxu0 0.0
        %2284 = vmatprep.subr.mxu0 0.0
        %2285 = vmatpush1.msra.mxu0 0.0
        %2286 = vmatprep.subr.mxu0 0.0
        %2287 = vmatpush1.msra.mxu0 0.0
        %2288 = vmatprep.subr.mxu0 0.0
        %2289 = vmatpush1.msra.mxu0 0.0
        %2290 = vmatprep.subr.mxu0 0.0
        %2291 = vmatpush1.msra.mxu0 0.0
        %2292 = vmatprep.subr.mxu0 0.0
        %2293 = vmatpush1.msra.mxu0 0.0
        %2294 = vmatprep.subr.mxu0 0.0
        %2295 = vmatpush1.msra.mxu0 0.0
        %2296 = vmatprep.subr.mxu0 0.0
        %2297 = vmatpush1.msra.mxu0 0.0
        %2298 = vmatprep.subr.mxu0 0.0
        %2299 = vmatpush1.msra.mxu0 0.0
        %2300 = vmatprep.subr.mxu0 0.0
        %2301 = vmatpush1.msra.mxu0 0.0
        %2302 = vmatprep.subr.mxu0 0.0
        %2303 = vmatpush1.msra.mxu0 0.0
        %2304 = vmatprep.subr.mxu0 0.0
        %2305 = vmatpush1.msra.mxu0 0.0
        %2306 = vmatprep.subr.mxu0 0.0
        %2307 = vmatpush1.msra.mxu0 0.0
        %2308 = vmatprep.subr.mxu0 0.0
        %2309 = vmatpush1.msra.mxu0 0.0
        %2310 = vmatprep.subr.mxu0 0.0
        %2311 = vmatpush1.msra.mxu0 0.0
        %2312 = vmatprep.subr.mxu0 0.0
        %2313 = vmatpush1.msra.mxu0 0.0
        %2314 = vmatprep.subr.mxu0 0.0
        %2315 = vmatpush1.msra.mxu0 0.0
        %2316 = vmatprep.subr.mxu0 0.0
        %2317 = vmatpush1.msra.mxu0 0.0
        %2318 = vmatprep.subr.mxu0 0.0
        %2319 = vmatpush1.msra.mxu0 0.0
        %2320 = vmatprep.subr.mxu0 0.0
        %2321 = vmatpush1.msra.mxu0 0.0
        %2322 = vmatprep.mubr.f32.mxu0 0.0
        %2323 = vmatmul.mubr.f32.gmra.mrb[0].mxu0 %v2250
        %v2324 = vpop.f32.mrb[0].mxu0
        %v2325 = vadd.f32 0.0, %v2324
        %v2326 = vpop.f32.mrb[0].mxu0
        %2327 = vmatprep.mubr.f32.mxu0 0.0
        %2328 = vmatmul.mubr.f32.gmra.mrb[0].mxu0 %v2253
        %v2329 = vpop.f32.mrb[0].mxu0
        %v2330 = vadd.f32 0.0, %v2329
        %v2331 = vpop.f32.mrb[0].mxu0
        %2332 = vmatprep.mubr.f32.mxu0 0.0
        %2333 = vmatmul.mubr.f32.gmra.mrb[0].mxu0 %v2256
        %v2334 = vpop.f32.mrb[0].mxu0
        %v2335 = vadd.f32 0.0, %v2334
        %v2336 = vpop.f32.mrb[0].mxu0
        %2337 = vdwg.mxu0
        %v2338 = vmul.f32 %v2047, %v2325
        %v2339 = vmul.f32 %v2048, %v2330
        %v2340 = vmul.f32 %v2049, %v2335
        %v2341 = vadd.f32 %v2246, %v2338
        %v2342 = vadd.f32 %v2247, %v2339
        %v2343 = vadd.f32 %v2248, %v2340
        %v2344 = vld [vmem:[%s601] sm:$0xff]
        %v2345 = vld [vmem:[%s601 + $0x8] sm:$0xff]
        %v2346 = vld [vmem:[%s601 + $0x10] sm:$0xff]
        %2347 = vmatprep.subr.mxu0 0.0
        %2348 = vmatpush1.msra.mxu0 %v756
        %2349 = vmatprep.subr.mxu0 0.0
        %2350 = vmatpush1.msra.mxu0 %v757
        %2351 = vmatprep.subr.mxu0 0.0
        %2352 = vmatpush1.msra.mxu0 %v758
        %2353 = vmatprep.subr.mxu0 0.0
        %2354 = vmatpush1.msra.mxu0 %v759
        %2355 = vmatprep.subr.mxu0 0.0
        %2356 = vmatpush1.msra.mxu0 %v760
        %2357 = vmatprep.subr.mxu0 0.0
        %2358 = vmatpush1.msra.mxu0 %v761
        %2359 = vmatprep.subr.mxu0 0.0
        %2360 = vmatpush1.msra.mxu0 %v762
        %2361 = vmatprep.subr.mxu0 0.0
        %2362 = vmatpush1.msra.mxu0 %v763
        %2363 = vmatprep.subr.mxu0 0.0
        %2364 = vmatpush1.msra.mxu0 %v764
        %2365 = vmatprep.subr.mxu0 0.0
        %2366 = vmatpush1.msra.mxu0 %v765
        %2367 = vmatprep.subr.mxu0 0.0
        %2368 = vmatpush1.msra.mxu0 %v766
        %2369 = vmatprep.subr.mxu0 0.0
        %2370 = vmatpush1.msra.mxu0 %v767
        %2371 = vmatprep.subr.mxu0 0.0
        %2372 = vmatpush1.msra.mxu0 %v768
        %2373 = vmatprep.subr.mxu0 0.0
        %2374 = vmatpush1.msra.mxu0 %v769
        %2375 = vmatprep.subr.mxu0 0.0
        %2376 = vmatpush1.msra.mxu0 %v770
        %2377 = vmatprep.subr.mxu0 0.0
        %2378 = vmatpush1.msra.mxu0 %v771
        %2379 = vmatprep.subr.mxu0 0.0
        %2380 = vmatpush1.msra.mxu0 0.0
        %2381 = vmatprep.subr.mxu0 0.0
        %2382 = vmatpush1.msra.mxu0 0.0
        %2383 = vmatprep.subr.mxu0 0.0
        %2384 = vmatpush1.msra.mxu0 0.0
        %2385 = vmatprep.subr.mxu0 0.0
        %2386 = vmatpush1.msra.mxu0 0.0
        %2387 = vmatprep.subr.mxu0 0.0
        %2388 = vmatpush1.msra.mxu0 0.0
        %2389 = vmatprep.subr.mxu0 0.0
        %2390 = vmatpush1.msra.mxu0 0.0
        %2391 = vmatprep.subr.mxu0 0.0
        %2392 = vmatpush1.msra.mxu0 0.0
        %2393 = vmatprep.subr.mxu0 0.0
        %2394 = vmatpush1.msra.mxu0 0.0
        %2395 = vmatprep.subr.mxu0 0.0
        %2396 = vmatpush1.msra.mxu0 0.0
        %2397 = vmatprep.subr.mxu0 0.0
        %2398 = vmatpush1.msra.mxu0 0.0
        %2399 = vmatprep.subr.mxu0 0.0
        %2400 = vmatpush1.msra.mxu0 0.0
        %2401 = vmatprep.subr.mxu0 0.0
        %2402 = vmatpush1.msra.mxu0 0.0
        %2403 = vmatprep.subr.mxu0 0.0
        %2404 = vmatpush1.msra.mxu0 0.0
        %2405 = vmatprep.subr.mxu0 0.0
        %2406 = vmatpush1.msra.mxu0 0.0
        %2407 = vmatprep.subr.mxu0 0.0
        %2408 = vmatpush1.msra.mxu0 0.0
        %2409 = vmatprep.subr.mxu0 0.0
        %2410 = vmatpush1.msra.mxu0 0.0
        %2411 = vmatprep.mubr.f32.mxu0 0.0
        %2412 = vmatmul.mubr.f32.gmra.mrb[0].mxu0 %v2344
        %v2413 = vpop.f32.mrb[0].mxu0
        %v2414 = vadd.f32 %v776, %v2413
        %v2415 = vpop.f32.mrb[0].mxu0
        %2416 = vmatprep.mubr.f32.mxu0 0.0
        %2417 = vmatmul.mubr.f32.gmra.mrb[0].mxu0 %v2345
        %v2418 = vpop.f32.mrb[0].mxu0
        %v2419 = vadd.f32 %v776, %v2418
        %v2420 = vpop.f32.mrb[0].mxu0
        %2421 = vmatprep.mubr.f32.mxu0 0.0
        %2422 = vmatmul.mubr.f32.gmra.mrb[0].mxu0 %v2346
        %v2423 = vpop.f32.mrb[0].mxu0
        %v2424 = vadd.f32 %v776, %v2423
        %v2425 = vpop.f32.mrb[0].mxu0
        %2426 = vdwg.mxu0
        %v2427 = vmax.f32 %v2130, %v2414
        %v2428 = vmax.f32 %v2131, %v2419
        %v2429 = vmax.f32 %v2132, %v2424
        %v2430 = vsub.f32 %v2130, %v2427
        %v2431 = vsub.f32 %v2131, %v2428
        %v2432 = vsub.f32 %v2132, %v2429
        %v2433 = vmul.f32 %v2430, 1.442695
        %v2434 = vpow.pop %v2433
        %v2435 = vmul.f32 %v2431, 1.442695
        %v2436 = vpow.pop %v2435
        %v2437 = vmul.f32 %v2432, 1.442695
        %v2438 = vpow.pop %v2437
        %v2439 = vsub.f32 %v2414, %v2427
        %v2440 = vsub.f32 %v2419, %v2428
        %v2441 = vsub.f32 %v2424, %v2429
        %v2442 = vmul.f32 %v2439, 1.442695
        %v2443 = vpow.pop %v2442
        %v2444 = vmul.f32 %v2440, 1.442695
        %v2445 = vpow.pop %v2444
        %v2446 = vmul.f32 %v2441, 1.442695
        %v2447 = vpow.pop %v2446
        %v2448 = vmul.f32 %v2434, %v2154
        %v2449 = vmul.f32 %v2436, %v2155
        %v2450 = vmul.f32 %v2438, %v2156
        %v2451 = vadd.f32 %v2448, %v2443
        %v2452 = vadd.f32 %v2449, %v2445
        %v2453 = vadd.f32 %v2450, %v2447
        %v2455 = vsel %vm964, %v2434, 0
        %v2458 = vsel %vm964, %v2436, 0
        %v2461 = vsel %vm964, %v2438, 0
        %2463 = vmatprep.subr.mxu0 0.0
        %2464 = vmatpush1.msra.mxu0 %v976
        %2465 = vmatprep.subr.mxu0 0.0
        %2466 = vmatpush1.msra.mxu0 0.0
        %2467 = vmatprep.subr.mxu0 0.0
        %2468 = vmatpush1.msra.mxu0 0.0
        %2469 = vmatprep.subr.mxu0 0.0
        %2470 = vmatpush1.msra.mxu0 0.0
        %2471 = vmatprep.subr.mxu0 0.0
        %2472 = vmatpush1.msra.mxu0 0.0
        %2473 = vmatprep.subr.mxu0 0.0
        %2474 = vmatpush1.msra.mxu0 0.0
        %2475 = vmatprep.subr.mxu0 0.0
        %2476 = vmatpush1.msra.mxu0 0.0
        %2477 = vmatprep.subr.mxu0 0.0
        %2478 = vmatpush1.msra.mxu0 0.0
        %2479 = vmatprep.subr.mxu0 0.0
        %2480 = vmatpush1.msra.mxu0 0.0
        %2481 = vmatprep.subr.mxu0 0.0
        %2482 = vmatpush1.msra.mxu0 0.0
        %2483 = vmatprep.subr.mxu0 0.0
        %2484 = vmatpush1.msra.mxu0 0.0
        %2485 = vmatprep.subr.mxu0 0.0
        %2486 = vmatpush1.msra.mxu0 0.0
        %2487 = vmatprep.subr.mxu0 0.0
        %2488 = vmatpush1.msra.mxu0 0.0
        %2489 = vmatprep.subr.mxu0 0.0
        %2490 = vmatpush1.msra.mxu0 0.0
        %2491 = vmatprep.subr.mxu0 0.0
        %2492 = vmatpush1.msra.mxu0 0.0
        %2493 = vmatprep.subr.mxu0 0.0
        %2494 = vmatpush1.msra.mxu0 0.0
        %2495 = vmatprep.subr.mxu0 0.0
        %2496 = vmatpush1.msra.mxu0 0.0
        %2497 = vmatprep.subr.mxu0 0.0
        %2498 = vmatpush1.msra.mxu0 0.0
        %2499 = vmatprep.subr.mxu0 0.0
        %2500 = vmatpush1.msra.mxu0 0.0
        %2501 = vmatprep.subr.mxu0 0.0
        %2502 = vmatpush1.msra.mxu0 0.0
        %2503 = vmatprep.subr.mxu0 0.0
        %2504 = vmatpush1.msra.mxu0 0.0
        %2505 = vmatprep.subr.mxu0 0.0
        %2506 = vmatpush1.msra.mxu0 0.0
        %2507 = vmatprep.subr.mxu0 0.0
        %2508 = vmatpush1.msra.mxu0 0.0
        %2509 = vmatprep.subr.mxu0 0.0
        %2510 = vmatpush1.msra.mxu0 0.0
        %2511 = vmatprep.subr.mxu0 0.0
        %2512 = vmatpush1.msra.mxu0 0.0
        %2513 = vmatprep.subr.mxu0 0.0
        %2514 = vmatpush1.msra.mxu0 0.0
        %2515 = vmatprep.subr.mxu0 0.0
        %2516 = vmatpush1.msra.mxu0 0.0
        %2517 = vmatprep.subr.mxu0 0.0
        %2518 = vmatpush1.msra.mxu0 0.0
        %2519 = vmatprep.subr.mxu0 0.0
        %2520 = vmatpush1.msra.mxu0 0.0
        %2521 = vmatprep.subr.mxu0 0.0
        %2522 = vmatpush1.msra.mxu0 0.0
        %2523 = vmatprep.subr.mxu0 0.0
        %2524 = vmatpush1.msra.mxu0 0.0
        %2525 = vmatprep.subr.mxu0 0.0
        %2526 = vmatpush1.msra.mxu0 0.0
        %2527 = vmatprep.mubr.f32.mxu0 0.0
        %2528 = vmatmul.mubr.f32.gmra.mrb[0].mxu0 %v2455
        %v2529 = vpop.f32.mrb[0].mxu0
        %v2530 = vadd.f32 0.0, %v2529
        %v2531 = vpop.f32.mrb[0].mxu0
        %2532 = vmatprep.mubr.f32.mxu0 0.0
        %2533 = vmatmul.mubr.f32.gmra.mrb[0].mxu0 %v2458
        %v2534 = vpop.f32.mrb[0].mxu0
        %v2535 = vadd.f32 0.0, %v2534
        %v2536 = vpop.f32.mrb[0].mxu0
        %2537 = vmatprep.mubr.f32.mxu0 0.0
        %2538 = vmatmul.mubr.f32.gmra.mrb[0].mxu0 %v2461
        %v2539 = vpop.f32.mrb[0].mxu0
        %v2540 = vadd.f32 0.0, %v2539
        %v2541 = vpop.f32.mrb[0].mxu0
        %2542 = vdwg.mxu0
        %v2543 = vmul.f32 %v2341, %v2530
        %v2544 = vmul.f32 %v2342, %v2535
        %v2545 = vmul.f32 %v2343, %v2540
        %v2547 = vsel %vm964, %v2443, 0
        %v2550 = vsel %vm964, %v2445, 0
        %v2553 = vsel %vm964, %v2447, 0
        %2555 = vmatprep.subr.mxu0 0.0
        %2556 = vmatpush1.msra.mxu0 %v976
        %2557 = vmatprep.subr.mxu0 0.0
        %2558 = vmatpush1.msra.mxu0 0.0
        %2559 = vmatprep.subr.mxu0 0.0
        %2560 = vmatpush1.msra.mxu0 0.0
        %2561 = vmatprep.subr.mxu0 0.0
        %2562 = vmatpush1.msra.mxu0 0.0
        %2563 = vmatprep.subr.mxu0 0.0
        %2564 = vmatpush1.msra.mxu0 0.0
        %2565 = vmatprep.subr.mxu0 0.0
        %2566 = vmatpush1.msra.mxu0 0.0
        %2567 = vmatprep.subr.mxu0 0.0
        %2568 = vmatpush1.msra.mxu0 0.0
        %2569 = vmatprep.subr.mxu0 0.0
        %2570 = vmatpush1.msra.mxu0 0.0
        %2571 = vmatprep.subr.mxu0 0.0
        %2572 = vmatpush1.msra.mxu0 0.0
        %2573 = vmatprep.subr.mxu0 0.0
        %2574 = vmatpush1.msra.mxu0 0.0
        %2575 = vmatprep.subr.mxu0 0.0
        %2576 = vmatpush1.msra.mxu0 0.0
        %2577 = vmatprep.subr.mxu0 0.0
        %2578 = vmatpush1.msra.mxu0 0.0
        %2579 = vmatprep.subr.mxu0 0.0
        %2580 = vmatpush1.msra.mxu0 0.0
        %2581 = vmatprep.subr.mxu0 0.0
        %2582 = vmatpush1.msra.mxu0 0.0
        %2583 = vmatprep.subr.mxu0 0.0
        %2584 = vmatpush1.msra.mxu0 0.0
        %2585 = vmatprep.subr.mxu0 0.0
        %2586 = vmatpush1.msra.mxu0 0.0
        %2587 = vmatprep.subr.mxu0 0.0
        %2588 = vmatpush1.msra.mxu0 0.0
        %2589 = vmatprep.subr.mxu0 0.0
        %2590 = vmatpush1.msra.mxu0 0.0
        %2591 = vmatprep.subr.mxu0 0.0
        %2592 = vmatpush1.msra.mxu0 0.0
        %2593 = vmatprep.subr.mxu0 0.0
        %2594 = vmatpush1.msra.mxu0 0.0
        %2595 = vmatprep.subr.mxu0 0.0
        %2596 = vmatpush1.msra.mxu0 0.0
        %2597 = vmatprep.subr.mxu0 0.0
        %2598 = vmatpush1.msra.mxu0 0.0
        %2599 = vmatprep.subr.mxu0 0.0
        %2600 = vmatpush1.msra.mxu0 0.0
        %2601 = vmatprep.subr.mxu0 0.0
        %2602 = vmatpush1.msra.mxu0 0.0
        %2603 = vmatprep.subr.mxu0 0.0
        %2604 = vmatpush1.msra.mxu0 0.0
        %2605 = vmatprep.subr.mxu0 0.0
        %2606 = vmatpush1.msra.mxu0 0.0
        %2607 = vmatprep.subr.mxu0 0.0
        %2608 = vmatpush1.msra.mxu0 0.0
        %2609 = vmatprep.subr.mxu0 0.0
        %2610 = vmatpush1.msra.mxu0 0.0
        %2611 = vmatprep.subr.mxu0 0.0
        %2612 = vmatpush1.msra.mxu0 0.0
        %2613 = vmatprep.subr.mxu0 0.0
        %2614 = vmatpush1.msra.mxu0 0.0
        %2615 = vmatprep.subr.mxu0 0.0
        %2616 = vmatpush1.msra.mxu0 0.0
        %2617 = vmatprep.subr.mxu0 0.0
        %2618 = vmatpush1.msra.mxu0 0.0
        %2619 = vmatprep.mubr.f32.mxu0 0.0
        %2620 = vmatmul.mubr.f32.gmra.mrb[0].mxu0 %v2547
        %v2621 = vpop.f32.mrb[0].mxu0
        %v2622 = vadd.f32 0.0, %v2621
        %v2623 = vpop.f32.mrb[0].mxu0
        %2624 = vmatprep.mubr.f32.mxu0 0.0
        %2625 = vmatmul.mubr.f32.gmra.mrb[0].mxu0 %v2550
        %v2626 = vpop.f32.mrb[0].mxu0
        %v2627 = vadd.f32 0.0, %v2626
        %v2628 = vpop.f32.mrb[0].mxu0
        %2629 = vmatprep.mubr.f32.mxu0 0.0
        %2630 = vmatmul.mubr.f32.gmra.mrb[0].mxu0 %v2553
        %v2631 = vpop.f32.mrb[0].mxu0
        %v2632 = vadd.f32 0.0, %v2631
        %v2633 = vpop.f32.mrb[0].mxu0
        %2634 = vdwg.mxu0
        %v2635 = vmul.f32 %v2344, %v2622
        %v2636 = vmul.f32 %v2345, %v2627
        %v2637 = vmul.f32 %v2346, %v2632
        %v2638 = vadd.f32 %v2543, %v2635
        %v2639 = vadd.f32 %v2544, %v2636
        %v2640 = vadd.f32 %v2545, %v2637
        %v2641 = vld [vmem:[%s610] sm:$0xff]
        %v2642 = vld [vmem:[%s610 + $0x8] sm:$0xff]
        %v2643 = vld [vmem:[%s610 + $0x10] sm:$0xff]
        %2644 = vmatprep.subr.mxu0 0.0
        %2645 = vmatpush1.msra.mxu0 %v756
        %2646 = vmatprep.subr.mxu0 0.0
        %2647 = vmatpush1.msra.mxu0 %v757
        %2648 = vmatprep.subr.mxu0 0.0
        %2649 = vmatpush1.msra.mxu0 %v758
        %2650 = vmatprep.subr.mxu0 0.0
        %2651 = vmatpush1.msra.mxu0 %v759
        %2652 = vmatprep.subr.mxu0 0.0
        %2653 = vmatpush1.msra.mxu0 %v760
        %2654 = vmatprep.subr.mxu0 0.0
        %2655 = vmatpush1.msra.mxu0 %v761
        %2656 = vmatprep.subr.mxu0 0.0
        %2657 = vmatpush1.msra.mxu0 %v762
        %2658 = vmatprep.subr.mxu0 0.0
        %2659 = vmatpush1.msra.mxu0 %v763
        %2660 = vmatprep.subr.mxu0 0.0
        %2661 = vmatpush1.msra.mxu0 %v764
        %2662 = vmatprep.subr.mxu0 0.0
        %2663 = vmatpush1.msra.mxu0 %v765
        %2664 = vmatprep.subr.mxu0 0.0
        %2665 = vmatpush1.msra.mxu0 %v766
        %2666 = vmatprep.subr.mxu0 0.0
        %2667 = vmatpush1.msra.mxu0 %v767
        %2668 = vmatprep.subr.mxu0 0.0
        %2669 = vmatpush1.msra.mxu0 %v768
        %2670 = vmatprep.subr.mxu0 0.0
        %2671 = vmatpush1.msra.mxu0 %v769
        %2672 = vmatprep.subr.mxu0 0.0
        %2673 = vmatpush1.msra.mxu0 %v770
        %2674 = vmatprep.subr.mxu0 0.0
        %2675 = vmatpush1.msra.mxu0 %v771
        %2676 = vmatprep.subr.mxu0 0.0
        %2677 = vmatpush1.msra.mxu0 0.0
        %2678 = vmatprep.subr.mxu0 0.0
        %2679 = vmatpush1.msra.mxu0 0.0
        %2680 = vmatprep.subr.mxu0 0.0
        %2681 = vmatpush1.msra.mxu0 0.0
        %2682 = vmatprep.subr.mxu0 0.0
        %2683 = vmatpush1.msra.mxu0 0.0
        %2684 = vmatprep.subr.mxu0 0.0
        %2685 = vmatpush1.msra.mxu0 0.0
        %2686 = vmatprep.subr.mxu0 0.0
        %2687 = vmatpush1.msra.mxu0 0.0
        %2688 = vmatprep.subr.mxu0 0.0
        %2689 = vmatpush1.msra.mxu0 0.0
        %2690 = vmatprep.subr.mxu0 0.0
        %2691 = vmatpush1.msra.mxu0 0.0
        %2692 = vmatprep.subr.mxu0 0.0
        %2693 = vmatpush1.msra.mxu0 0.0
        %2694 = vmatprep.subr.mxu0 0.0
        %2695 = vmatpush1.msra.mxu0 0.0
        %2696 = vmatprep.subr.mxu0 0.0
        %2697 = vmatpush1.msra.mxu0 0.0
        %2698 = vmatprep.subr.mxu0 0.0
        %2699 = vmatpush1.msra.mxu0 0.0
        %2700 = vmatprep.subr.mxu0 0.0
        %2701 = vmatpush1.msra.mxu0 0.0
        %2702 = vmatprep.subr.mxu0 0.0
        %2703 = vmatpush1.msra.mxu0 0.0
        %2704 = vmatprep.subr.mxu0 0.0
        %2705 = vmatpush1.msra.mxu0 0.0
        %2706 = vmatprep.subr.mxu0 0.0
        %2707 = vmatpush1.msra.mxu0 0.0
        %2708 = vmatprep.mubr.f32.mxu0 0.0
        %2709 = vmatmul.mubr.f32.gmra.mrb[0].mxu0 %v2641
        %v2710 = vpop.f32.mrb[0].mxu0
        %v2711 = vadd.f32 %v776, %v2710
        %v2712 = vpop.f32.mrb[0].mxu0
        %2713 = vmatprep.mubr.f32.mxu0 0.0
        %2714 = vmatmul.mubr.f32.gmra.mrb[0].mxu0 %v2642
        %v2715 = vpop.f32.mrb[0].mxu0
        %v2716 = vadd.f32 %v776, %v2715
        %v2717 = vpop.f32.mrb[0].mxu0
        %2718 = vmatprep.mubr.f32.mxu0 0.0
        %2719 = vmatmul.mubr.f32.gmra.mrb[0].mxu0 %v2643
        %v2720 = vpop.f32.mrb[0].mxu0
        %v2721 = vadd.f32 %v776, %v2720
        %v2722 = vpop.f32.mrb[0].mxu0
        %2723 = vdwg.mxu0
        %v2724 = vmax.f32 %v2427, %v2711
        %v2725 = vmax.f32 %v2428, %v2716
        %v2726 = vmax.f32 %v2429, %v2721
        %v2727 = vsub.f32 %v2427, %v2724
        %v2728 = vsub.f32 %v2428, %v2725
        %v2729 = vsub.f32 %v2429, %v2726
        %v2730 = vmul.f32 %v2727, 1.442695
        %v2731 = vpow.pop %v2730
        %v2732 = vmul.f32 %v2728, 1.442695
        %v2733 = vpow.pop %v2732
        %v2734 = vmul.f32 %v2729, 1.442695
        %v2735 = vpow.pop %v2734
        %v2736 = vsub.f32 %v2711, %v2724
        %v2737 = vsub.f32 %v2716, %v2725
        %v2738 = vsub.f32 %v2721, %v2726
        %v2739 = vmul.f32 %v2736, 1.442695
        %v2740 = vpow.pop %v2739
        %v2741 = vmul.f32 %v2737, 1.442695
        %v2742 = vpow.pop %v2741
        %v2743 = vmul.f32 %v2738, 1.442695
        %v2744 = vpow.pop %v2743
        %v2745 = vmul.f32 %v2731, %v2451
        %v2746 = vmul.f32 %v2733, %v2452
        %v2747 = vmul.f32 %v2735, %v2453
        %v2748 = vadd.f32 %v2745, %v2740
        %v2749 = vadd.f32 %v2746, %v2742
        %v2750 = vadd.f32 %v2747, %v2744
        %v2752 = vsel %vm964, %v2731, 0
        %v2755 = vsel %vm964, %v2733, 0
        %v2758 = vsel %vm964, %v2735, 0
        %2760 = vmatprep.subr.mxu0 0.0
        %2761 = vmatpush1.msra.mxu0 %v976
        %2762 = vmatprep.subr.mxu0 0.0
        %2763 = vmatpush1.msra.mxu0 0.0
        %2764 = vmatprep.subr.mxu0 0.0
        %2765 = vmatpush1.msra.mxu0 0.0
        %2766 = vmatprep.subr.mxu0 0.0
        %2767 = vmatpush1.msra.mxu0 0.0
        %2768 = vmatprep.subr.mxu0 0.0
        %2769 = vmatpush1.msra.mxu0 0.0
        %2770 = vmatprep.subr.mxu0 0.0
        %2771 = vmatpush1.msra.mxu0 0.0
        %2772 = vmatprep.subr.mxu0 0.0
        %2773 = vmatpush1.msra.mxu0 0.0
        %2774 = vmatprep.subr.mxu0 0.0
        %2775 = vmatpush1.msra.mxu0 0.0
        %2776 = vmatprep.subr.mxu0 0.0
        %2777 = vmatpush1.msra.mxu0 0.0
        %2778 = vmatprep.subr.mxu0 0.0
        %2779 = vmatpush1.msra.mxu0 0.0
        %2780 = vmatprep.subr.mxu0 0.0
        %2781 = vmatpush1.msra.mxu0 0.0
        %2782 = vmatprep.subr.mxu0 0.0
        %2783 = vmatpush1.msra.mxu0 0.0
        %2784 = vmatprep.subr.mxu0 0.0
        %2785 = vmatpush1.msra.mxu0 0.0
        %2786 = vmatprep.subr.mxu0 0.0
        %2787 = vmatpush1.msra.mxu0 0.0
        %2788 = vmatprep.subr.mxu0 0.0
        %2789 = vmatpush1.msra.mxu0 0.0
        %2790 = vmatprep.subr.mxu0 0.0
        %2791 = vmatpush1.msra.mxu0 0.0
        %2792 = vmatprep.subr.mxu0 0.0
        %2793 = vmatpush1.msra.mxu0 0.0
        %2794 = vmatprep.subr.mxu0 0.0
        %2795 = vmatpush1.msra.mxu0 0.0
        %2796 = vmatprep.subr.mxu0 0.0
        %2797 = vmatpush1.msra.mxu0 0.0
        %2798 = vmatprep.subr.mxu0 0.0
        %2799 = vmatpush1.msra.mxu0 0.0
        %2800 = vmatprep.subr.mxu0 0.0
        %2801 = vmatpush1.msra.mxu0 0.0
        %2802 = vmatprep.subr.mxu0 0.0
        %2803 = vmatpush1.msra.mxu0 0.0
        %2804 = vmatprep.subr.mxu0 0.0
        %2805 = vmatpush1.msra.mxu0 0.0
        %2806 = vmatprep.subr.mxu0 0.0
        %2807 = vmatpush1.msra.mxu0 0.0
        %2808 = vmatprep.subr.mxu0 0.0
        %2809 = vmatpush1.msra.mxu0 0.0
        %2810 = vmatprep.subr.mxu0 0.0
        %2811 = vmatpush1.msra.mxu0 0.0
        %2812 = vmatprep.subr.mxu0 0.0
        %2813 = vmatpush1.msra.mxu0 0.0
        %2814 = vmatprep.subr.mxu0 0.0
        %2815 = vmatpush1.msra.mxu0 0.0
        %2816 = vmatprep.subr.mxu0 0.0
        %2817 = vmatpush1.msra.mxu0 0.0
        %2818 = vmatprep.subr.mxu0 0.0
        %2819 = vmatpush1.msra.mxu0 0.0
        %2820 = vmatprep.subr.mxu0 0.0
        %2821 = vmatpush1.msra.mxu0 0.0
        %2822 = vmatprep.subr.mxu0 0.0
        %2823 = vmatpush1.msra.mxu0 0.0
        %2824 = vmatprep.mubr.f32.mxu0 0.0
        %2825 = vmatmul.mubr.f32.gmra.mrb[0].mxu0 %v2752
        %v2826 = vpop.f32.mrb[0].mxu0
        %v2827 = vadd.f32 0.0, %v2826
        %v2828 = vpop.f32.mrb[0].mxu0
        %2829 = vmatprep.mubr.f32.mxu0 0.0
        %2830 = vmatmul.mubr.f32.gmra.mrb[0].mxu0 %v2755
        %v2831 = vpop.f32.mrb[0].mxu0
        %v2832 = vadd.f32 0.0, %v2831
        %v2833 = vpop.f32.mrb[0].mxu0
        %2834 = vmatprep.mubr.f32.mxu0 0.0
        %2835 = vmatmul.mubr.f32.gmra.mrb[0].mxu0 %v2758
        %v2836 = vpop.f32.mrb[0].mxu0
        %v2837 = vadd.f32 0.0, %v2836
        %v2838 = vpop.f32.mrb[0].mxu0
        %2839 = vdwg.mxu0
        %v2840 = vmul.f32 %v2638, %v2827
        %v2841 = vmul.f32 %v2639, %v2832
        %v2842 = vmul.f32 %v2640, %v2837
        %v2844 = vsel %vm964, %v2740, 0
        %v2847 = vsel %vm964, %v2742, 0
        %v2850 = vsel %vm964, %v2744, 0
        %2852 = vmatprep.subr.mxu0 0.0
        %2853 = vmatpush1.msra.mxu0 %v976
        %2854 = vmatprep.subr.mxu0 0.0
        %2855 = vmatpush1.msra.mxu0 0.0
        %2856 = vmatprep.subr.mxu0 0.0
        %2857 = vmatpush1.msra.mxu0 0.0
        %2858 = vmatprep.subr.mxu0 0.0
        %2859 = vmatpush1.msra.mxu0 0.0
        %2860 = vmatprep.subr.mxu0 0.0
        %2861 = vmatpush1.msra.mxu0 0.0
        %2862 = vmatprep.subr.mxu0 0.0
        %2863 = vmatpush1.msra.mxu0 0.0
        %2864 = vmatprep.subr.mxu0 0.0
        %2865 = vmatpush1.msra.mxu0 0.0
        %2866 = vmatprep.subr.mxu0 0.0
        %2867 = vmatpush1.msra.mxu0 0.0
        %2868 = vmatprep.subr.mxu0 0.0
        %2869 = vmatpush1.msra.mxu0 0.0
        %2870 = vmatprep.subr.mxu0 0.0
        %2871 = vmatpush1.msra.mxu0 0.0
        %2872 = vmatprep.subr.mxu0 0.0
        %2873 = vmatpush1.msra.mxu0 0.0
        %2874 = vmatprep.subr.mxu0 0.0
        %2875 = vmatpush1.msra.mxu0 0.0
        %2876 = vmatprep.subr.mxu0 0.0
        %2877 = vmatpush1.msra.mxu0 0.0
        %2878 = vmatprep.subr.mxu0 0.0
        %2879 = vmatpush1.msra.mxu0 0.0
        %2880 = vmatprep.subr.mxu0 0.0
        %2881 = vmatpush1.msra.mxu0 0.0
        %2882 = vmatprep.subr.mxu0 0.0
        %2883 = vmatpush1.msra.mxu0 0.0
        %2884 = vmatprep.subr.mxu0 0.0
        %2885 = vmatpush1.msra.mxu0 0.0
        %2886 = vmatprep.subr.mxu0 0.0
        %2887 = vmatpush1.msra.mxu0 0.0
        %2888 = vmatprep.subr.mxu0 0.0
        %2889 = vmatpush1.msra.mxu0 0.0
        %2890 = vmatprep.subr.mxu0 0.0
        %2891 = vmatpush1.msra.mxu0 0.0
        %2892 = vmatprep.subr.mxu0 0.0
        %2893 = vmatpush1.msra.mxu0 0.0
        %2894 = vmatprep.subr.mxu0 0.0
        %2895 = vmatpush1.msra.mxu0 0.0
        %2896 = vmatprep.subr.mxu0 0.0
        %2897 = vmatpush1.msra.mxu0 0.0
        %2898 = vmatprep.subr.mxu0 0.0
        %2899 = vmatpush1.msra.mxu0 0.0
        %2900 = vmatprep.subr.mxu0 0.0
        %2901 = vmatpush1.msra.mxu0 0.0
        %2902 = vmatprep.subr.mxu0 0.0
        %2903 = vmatpush1.msra.mxu0 0.0
        %2904 = vmatprep.subr.mxu0 0.0
        %2905 = vmatpush1.msra.mxu0 0.0
        %2906 = vmatprep.subr.mxu0 0.0
        %2907 = vmatpush1.msra.mxu0 0.0
        %2908 = vmatprep.subr.mxu0 0.0
        %2909 = vmatpush1.msra.mxu0 0.0
        %2910 = vmatprep.subr.mxu0 0.0
        %2911 = vmatpush1.msra.mxu0 0.0
        %2912 = vmatprep.subr.mxu0 0.0
        %2913 = vmatpush1.msra.mxu0 0.0
        %2914 = vmatprep.subr.mxu0 0.0
        %2915 = vmatpush1.msra.mxu0 0.0
        %2916 = vmatprep.mubr.f32.mxu0 0.0
        %2917 = vmatmul.mubr.f32.gmra.mrb[0].mxu0 %v2844
        %v2918 = vpop.f32.mrb[0].mxu0
        %v2919 = vadd.f32 0.0, %v2918
        %v2920 = vpop.f32.mrb[0].mxu0
        %2921 = vmatprep.mubr.f32.mxu0 0.0
        %2922 = vmatmul.mubr.f32.gmra.mrb[0].mxu0 %v2847
        %v2923 = vpop.f32.mrb[0].mxu0
        %v2924 = vadd.f32 0.0, %v2923
        %v2925 = vpop.f32.mrb[0].mxu0
        %2926 = vmatprep.mubr.f32.mxu0 0.0
        %2927 = vmatmul.mubr.f32.gmra.mrb[0].mxu0 %v2850
        %v2928 = vpop.f32.mrb[0].mxu0
        %v2929 = vadd.f32 0.0, %v2928
        %v2930 = vpop.f32.mrb[0].mxu0
        %2931 = vdwg.mxu0
        %v2932 = vmul.f32 %v2641, %v2919
        %v2933 = vmul.f32 %v2642, %v2924
        %v2934 = vmul.f32 %v2643, %v2929
        %v2935 = vadd.f32 %v2840, %v2932
        %v2936 = vadd.f32 %v2841, %v2933
        %v2937 = vadd.f32 %v2842, %v2934
        %v2938 = vrcp.pop %v2748
        %v2939 = vrcp.pop %v2749
        %v2940 = vrcp.pop %v2750
        %v2942 = vsel %vm964, %v2938, 0
        %v2945 = vsel %vm964, %v2939, 0
        %v2948 = vsel %vm964, %v2940, 0
        %2950 = vmatprep.subr.mxu0 0.0
        %2951 = vmatpush1.msra.mxu0 %v976
        %2952 = vmatprep.subr.mxu0 0.0
        %2953 = vmatpush1.msra.mxu0 0.0
        %2954 = vmatprep.subr.mxu0 0.0
        %2955 = vmatpush1.msra.mxu0 0.0
        %2956 = vmatprep.subr.mxu0 0.0
        %2957 = vmatpush1.msra.mxu0 0.0
        %2958 = vmatprep.subr.mxu0 0.0
        %2959 = vmatpush1.msra.mxu0 0.0
        %2960 = vmatprep.subr.mxu0 0.0
        %2961 = vmatpush1.msra.mxu0 0.0
        %2962 = vmatprep.subr.mxu0 0.0
        %2963 = vmatpush1.msra.mxu0 0.0
        %2964 = vmatprep.subr.mxu0 0.0
        %2965 = vmatpush1.msra.mxu0 0.0
        %2966 = vmatprep.subr.mxu0 0.0
        %2967 = vmatpush1.msra.mxu0 0.0
        %2968 = vmatprep.subr.mxu0 0.0
        %2969 = vmatpush1.msra.mxu0 0.0
        %2970 = vmatprep.subr.mxu0 0.0
        %2971 = vmatpush1.msra.mxu0 0.0
        %2972 = vmatprep.subr.mxu0 0.0
        %2973 = vmatpush1.msra.mxu0 0.0
        %2974 = vmatprep.subr.mxu0 0.0
        %2975 = vmatpush1.msra.mxu0 0.0
        %2976 = vmatprep.subr.mxu0 0.0
        %2977 = vmatpush1.msra.mxu0 0.0
        %2978 = vmatprep.subr.mxu0 0.0
        %2979 = vmatpush1.msra.mxu0 0.0
        %2980 = vmatprep.subr.mxu0 0.0
        %2981 = vmatpush1.msra.mxu0 0.0
        %2982 = vmatprep.subr.mxu0 0.0
        %2983 = vmatpush1.msra.mxu0 0.0
        %2984 = vmatprep.subr.mxu0 0.0
        %2985 = vmatpush1.msra.mxu0 0.0
        %2986 = vmatprep.subr.mxu0 0.0
        %2987 = vmatpush1.msra.mxu0 0.0
        %2988 = vmatprep.subr.mxu0 0.0
        %2989 = vmatpush1.msra.mxu0 0.0
        %2990 = vmatprep.subr.mxu0 0.0
        %2991 = vmatpush1.msra.mxu0 0.0
        %2992 = vmatprep.subr.mxu0 0.0
        %2993 = vmatpush1.msra.mxu0 0.0
        %2994 = vmatprep.subr.mxu0 0.0
        %2995 = vmatpush1.msra.mxu0 0.0
        %2996 = vmatprep.subr.mxu0 0.0
        %2997 = vmatpush1.msra.mxu0 0.0
        %2998 = vmatprep.subr.mxu0 0.0
        %2999 = vmatpush1.msra.mxu0 0.0
        %3000 = vmatprep.subr.mxu0 0.0
        %3001 = vmatpush1.msra.mxu0 0.0
        %3002 = vmatprep.subr.mxu0 0.0
        %3003 = vmatpush1.msra.mxu0 0.0
        %3004 = vmatprep.subr.mxu0 0.0
        %3005 = vmatpush1.msra.mxu0 0.0
        %3006 = vmatprep.subr.mxu0 0.0
        %3007 = vmatpush1.msra.mxu0 0.0
        %3008 = vmatprep.subr.mxu0 0.0
        %3009 = vmatpush1.msra.mxu0 0.0
        %3010 = vmatprep.subr.mxu0 0.0
        %3011 = vmatpush1.msra.mxu0 0.0
        %3012 = vmatprep.subr.mxu0 0.0
        %3013 = vmatpush1.msra.mxu0 0.0
        %3014 = vmatprep.mubr.f32.mxu0 0.0
        %3015 = vmatmul.mubr.f32.gmra.mrb[0].mxu0 %v2942
        %v3016 = vpop.f32.mrb[0].mxu0
        %v3017 = vadd.f32 0.0, %v3016
        %v3018 = vpop.f32.mrb[0].mxu0
        %3019 = vmatprep.mubr.f32.mxu0 0.0
        %3020 = vmatmul.mubr.f32.gmra.mrb[0].mxu0 %v2945
        %v3021 = vpop.f32.mrb[0].mxu0
        %v3022 = vadd.f32 0.0, %v3021
        %v3023 = vpop.f32.mrb[0].mxu0
        %3024 = vmatprep.mubr.f32.mxu0 0.0
        %3025 = vmatmul.mubr.f32.gmra.mrb[0].mxu0 %v2948
        %v3026 = vpop.f32.mrb[0].mxu0
        %v3027 = vadd.f32 0.0, %v3026
        %v3028 = vpop.f32.mrb[0].mxu0
        %3029 = vdwg.mxu0
        %v3030 = vmul.f32 %v2935, %v3017
        %v3031 = vmul.f32 %v2936, %v3022
        %v3032 = vmul.f32 %v2937, %v3027
        %3033 = vst [vmem:[%s691] sm:$0xff] %v3030
        %3034 = vst [vmem:[%s691 + $0x8] sm:$0xff] %v3031
        %3035 = vst [vmem:[%s691 + $0x10] sm:$0xff] %v3032
        %s3036 = sand.u32 %s317, 1
        %s3037 = scalar_lea.sflag [#allocation5], %s3036
        %s3038 = sand.u32 %s317, 1
        %s3039 = smul.addr %s3038, 24
        %s3040 = scalar_lea.vmem [#allocation14], %s3039
        // Predicated region
        $region89: #{tpu_custom_call.1} parent=63 // pred_check
          %p3041 = pneg %p327
        $region90: #{tpu_custom_call.1} parent=63 // pred_check_branch
          %3043 = sbr.rel (%p3041) target = $region92
        $region91: #{tpu_custom_call.1} parent=63 // pred_region
          %s3044 = smul.u32 3, %s38
          %s3045 = ssub.s32 8, %s3044
          %p3046 = scmp.lt.s32.totalorder %s3045, 3
          %s3047 = scalar_select %p3046, %s3045, 3
          %s3048 = smul.u32 128, %s3047
          %s3050 = ssub.s32 384, %s3048
          %3051 = vsyncadd %s3037, %s3050
          %p3052 = scmp.ne.s32.totalorder 0, %s3048
          %s3053 = smul.addr %s3044, 128
          %s3054 = scalar_lea.hbm %s11, %s3053
          %s3055 = smul.u32 8, %s3047
          %s3056 = sshll.u32 %s3040, 4
          %s3057 = int_to_ptr.vmem [resolvable:$true] %s3056
          %s3058 = sshll.u32 %s3055, 4
          %3062 = dma.vmem_to_hbm [thread:$0]  (%p3052), %s3057, %s3058, %s3054, %s3037, 128, 128, 8
        $region92: #{tpu_custom_call.1} parent=63 // pred_fallthru
          _
      $region64: #{tpu_custom_call.1} parent=5 // pred_fallthru
        _
      %p3063 = scmp.le.s32.totalorder 2, %s33
      // Predicated region
      $region93: #{tpu_custom_call.1} parent=5 // pred_check
        %p3064 = pneg %p3063
      $region94: #{tpu_custom_call.1} parent=5 // pred_check_branch
        %3066 = sbr.rel (%p3064) target = $region96
      $region95: #{tpu_custom_call.1} parent=5 // pred_region
        %s3067 = ssub.s32 %s33, 2
        // Predicated region
        $region97: #{tpu_custom_call.1} parent=95 // pred_check
          %p3068 = pneg %p333
        $region98: #{tpu_custom_call.1} parent=95 // pred_check_branch
          %3070 = sbr.rel (%p3068) target = $region100
        $region99: #{tpu_custom_call.1} parent=95 // pred_region
          %s3071 = sand.u32 %s318, 1
          %s3072 = scalar_lea.sflag [#allocation5], %s3071
          %s3073 = sand.u32 %s318, 1
          %s3074 = smul.addr %s3073, 24
          %s3075 = scalar_lea.vmem [#allocation14], %s3074
          %3076 = dma.done %s3072, 384
        $region100: #{tpu_custom_call.1} parent=95 // pred_fallthru
          _
      $region96: #{tpu_custom_call.1} parent=5 // pred_fallthru
        _
    $region6: #{tpu_custom_call.1} parent=1 // loop_footer
      %s37 = sadd.s32 1, %s33
    $region7: #{tpu_custom_call.1} parent=1 // loop_footer_branch
      %32 = sbr.rel target = $region3
    $region8: #{tpu_custom_call.1} parent=1 // loop_exit
      _
    %3077 = vsyncpa [#allocation4], 1
    %s3078 = scalar_lea.sflag [#allocation4], 1
    %3079 = vsyncpa %s3078, 1
    %3080 = vsyncpa [#allocation7], 1
    %s3081 = scalar_lea.sflag [#allocation7], 1
    %3082 = vsyncpa %s3081, 1
    %3083 = vsyncpa [#allocation10], 1
    %s3084 = scalar_lea.sflag [#allocation10], 1
    %3085 = vsyncpa %s3084, 1
    %3086 = vsyncpa [#allocation13], 1
    %s3087 = scalar_lea.sflag [#allocation13], 1
    %3088 = vsyncpa %s3087, 1
    %3089 = vsyncpa [#allocation5], 1
    %s3090 = scalar_lea.sflag [#allocation5], 1
    %3091 = vsyncpa %s3090, 1

</llo_original>
